<compile_context>
chip_gen: v5e
topology: v5e:2x2
jax: 0.10.0
libtpu: 0.0.40
codegen_flags: <defaults>
</compile_context>

<pallas_src>
import jax
import jax.numpy as jnp
from jax.experimental import pallas as pl
from jax.experimental.pallas import tpu as pltpu

INPUT_SIZE = 2
HIDDEN_SIZE = 100
NUM_LAYERS = 2
OUTPUT_SIZE = 2
DROPOUT_PROB = 0.2  # nn.LSTM inter-layer dropout is train-mode only -> identity here

H_PAD = 128          # hidden size padded to one full lane register
GH = 4 * H_PAD       # fused gate width (i,f,g,o blocks concatenated)
O_PAD = 128          # FC output padded to a full lane register


def lstm_fc_kernel(xw0_ref, whh0_ref, wih1_ref, whh1_ref, b1_ref,
                   wfc_ref, bfc_ref, out_ref):
    # xw0_ref:  (T, B_pad, 4*H_PAD)  precomputed x @ Wih0_cat + b0 (layer-0 input proj)
    # whh0_ref: (H_PAD, 4*H_PAD)     layer-0 recurrent weights, gate blocks on lanes
    # wih1_ref: (H_PAD, 4*H_PAD)     layer-1 input weights
    # whh1_ref: (H_PAD, 4*H_PAD)     layer-1 recurrent weights
    # b1_ref:   (B_pad, 4*H_PAD)     layer-1 fused bias, pre-broadcast
    # wfc_ref:  (H_PAD, O_PAD)       final Linear weight (padded)
    # bfc_ref:  (B_pad, O_PAD)       final Linear bias, pre-broadcast
    # out_ref:  (B_pad, O_PAD)
    T = xw0_ref.shape[0]
    B = xw0_ref.shape[1]
    Hp = whh0_ref.shape[0]

    whh0 = whh0_ref[...]
    wih1 = wih1_ref[...]
    whh1 = whh1_ref[...]
    b1 = b1_ref[...]

    def apply_gates(pre, c):
        # pre: (B, 4*Hp), PyTorch gate order i, f, g, o; each slice is 128 lanes wide.
        i_g = jax.nn.sigmoid(pre[:, 0 * Hp:1 * Hp])
        f_g = jax.nn.sigmoid(pre[:, 1 * Hp:2 * Hp])
        g_g = jnp.tanh(pre[:, 2 * Hp:3 * Hp])
        o_g = jax.nn.sigmoid(pre[:, 3 * Hp:4 * Hp])
        c_new = f_g * c + i_g * g_g
        h_new = o_g * jnp.tanh(c_new)
        return h_new, c_new

    h0 = jnp.zeros((B, Hp), jnp.float32)
    c0 = jnp.zeros((B, Hp), jnp.float32)
    h1 = jnp.zeros((B, Hp), jnp.float32)
    c1 = jnp.zeros((B, Hp), jnp.float32)

    # TODO(synk): nn.LSTM inter-layer dropout (p=0.2) applies only in train mode;
    #             eval-mode forward is identity, so it is omitted here.
    for t in range(T):  # T is static and tiny (8): fully unrolled recurrence
        # layer 0: input projection (incl. bias) precomputed outside the kernel
        pre0 = xw0_ref[t] + jnp.dot(h0, whh0, preferred_element_type=jnp.float32)
        h0, c0 = apply_gates(pre0, c0)
        # layer 1: two fused lane-dense matmuls + pre-broadcast bias
        pre1 = (jnp.dot(h0, wih1, preferred_element_type=jnp.float32)
                + jnp.dot(h1, whh1, preferred_element_type=jnp.float32)
                + b1)
        h1, c1 = apply_gates(pre1, c1)

    # final Linear on the last timestep's top-layer hidden state (lane-dense, padded)
    out_ref[...] = (jnp.dot(h1, wfc_ref[...], preferred_element_type=jnp.float32)
                    + bfc_ref[...])


@jax.jit
def lstm_model_forward(x, params):
    """x: (B, T, I) batch-first, like the PyTorch module. Returns (B, OUTPUT_SIZE)."""
    B, T, _ = x.shape
    B_pad = ((B + 7) // 8) * 8

    x = x.astype(jnp.float32)
    x_p = jnp.pad(x, ((0, B_pad - B), (0, 0), (0, 0)))      # pad batch to multiple of 8
    x_tm = jnp.transpose(x_p, (1, 0, 2))                    # time-major (T, B_pad, I)

    # Hoisted layer-0 input projection (+ fused bias) as plain XLA inside the same jit.
    xw0 = jnp.matmul(x_tm, params["wih0"]) + params["b0"]   # (T, B_pad, 4*H_PAD)

    # Pre-broadcast biases once (avoids per-timestep broadcast_in_dim inside the kernel).
    b1 = jnp.broadcast_to(params["b1"], (B_pad, GH))
    bfc = jnp.broadcast_to(params["bfc"], (B_pad, O_PAD))

    vmem = pl.BlockSpec(memory_space=pltpu.MemorySpace.VMEM)
    out = pl.pallas_call(
        lstm_fc_kernel,
        out_shape=jax.ShapeDtypeStruct((B_pad, O_PAD), jnp.float32),
        in_specs=[vmem] * 7,
        out_specs=vmem,
    )(xw0, params["whh0"], params["wih1"], params["whh1"], b1,
      params["wfc"], bfc)

    return out[:B, :OUTPUT_SIZE]


def pack_params(tp):
    """Pack PyTorch-layout weights into padded, gate-fused kernel layout."""
    H, I, O = HIDDEN_SIZE, INPUT_SIZE, OUTPUT_SIZE

    def pack_w(w, in_dim, in_pad):
        # PyTorch (4H, in_dim) with gate row-blocks i,f,g,o
        #   -> (in_pad, 4*H_PAD) with gate column-blocks of width H_PAD (zero-padded).
        w4 = jnp.transpose(w.reshape(4, H, in_dim), (0, 2, 1))           # (4, in, H)
        w4 = jnp.pad(w4, ((0, 0), (0, in_pad - in_dim), (0, H_PAD - H)))  # (4, in_pad, H_PAD)
        return jnp.transpose(w4, (1, 0, 2)).reshape(in_pad, GH)

    def pack_b(b_ih, b_hh):
        b = (b_ih + b_hh).reshape(4, H)
        b = jnp.pad(b, ((0, 0), (0, H_PAD - H)))
        return b.reshape(1, GH)

    wfc = jnp.pad(tp["w_fc"].T, ((0, H_PAD - H), (0, O_PAD - O)))         # (H_PAD, O_PAD)
    bfc = jnp.pad(tp["b_fc"].reshape(1, O), ((0, 0), (0, O_PAD - O)))     # (1, O_PAD)

    return dict(
        wih0=pack_w(tp["w_ih_l0"], I, I),          # (I, 4*H_PAD)   used outside the kernel
        b0=pack_b(tp["b_ih_l0"], tp["b_hh_l0"]),   # (1, 4*H_PAD)   folded into xw0
        whh0=pack_w(tp["w_hh_l0"], H, H_PAD),      # (H_PAD, 4*H_PAD)
        wih1=pack_w(tp["w_ih_l1"], H, H_PAD),
        whh1=pack_w(tp["w_hh_l1"], H, H_PAD),
        b1=pack_b(tp["b_ih_l1"], tp["b_hh_l1"]),
        wfc=wfc,
        bfc=bfc,
    )


def init_params(key):
    """Deterministic synthetic params in PyTorch nn.LSTM / nn.Linear layout + packed form."""
    H, I, O = HIDDEN_SIZE, INPUT_SIZE, OUTPUT_SIZE
    scale = 1.0 / (H ** 0.5)
    ks = jax.random.split(key, 10)

    def u(k, shape):
        return jax.random.uniform(k, shape, jnp.float32, -scale, scale)

    torch_params = dict(
        w_ih_l0=u(ks[0], (4 * H, I)),
        w_hh_l0=u(ks[1], (4 * H, H)),
        b_ih_l0=u(ks[2], (4 * H,)),
        b_hh_l0=u(ks[3], (4 * H,)),
        w_ih_l1=u(ks[4], (4 * H, H)),
        w_hh_l1=u(ks[5], (4 * H, H)),
        b_ih_l1=u(ks[6], (4 * H,)),
        b_hh_l1=u(ks[7], (4 * H,)),
        w_fc=u(ks[8], (O, H)),
        b_fc=u(ks[9], (O,)),
    )
    return torch_params, pack_params(torch_params)


def lstm_model_reference(x, tp):
    """Pure-JAX reference with PyTorch-layout weights (matches nn.LSTM eval forward)."""
    B, T, _ = x.shape
    H = HIDDEN_SIZE

    def cell(x_t, h, c, w_ih, w_hh, b_ih, b_hh):
        g = x_t @ w_ih.T + h @ w_hh.T + b_ih + b_hh     # (B, 4H), gate order i,f,g,o
        i_g = jax.nn.sigmoid(g[:, 0:H])
        f_g = jax.nn.sigmoid(g[:, H:2 * H])
        g_g = jnp.tanh(g[:, 2 * H:3 * H])
        o_g = jax.nn.sigmoid(g[:, 3 * H:4 * H])
        c_new = f_g * c + i_g * g_g
        return o_g * jnp.tanh(c_new), c_new

    h0 = c0 = h1 = c1 = jnp.zeros((B, H), jnp.float32)
    for t in range(T):
        h0, c0 = cell(x[:, t], h0, c0, tp["w_ih_l0"], tp["w_hh_l0"],
                      tp["b_ih_l0"], tp["b_hh_l0"])
        h1, c1 = cell(h0, h1, c1, tp["w_ih_l1"], tp["w_hh_l1"],
                      tp["b_ih_l1"], tp["b_hh_l1"])
    return h1 @ tp["w_fc"].T + tp["b_fc"]


if __name__ == "__main__":
    key = jax.random.PRNGKey(0)
    k_param, k_x = jax.random.split(key)

    B, T = 4, 8  # small batch / sequence length
    x = jax.random.normal(k_x, (B, T, INPUT_SIZE), dtype=jnp.float32)
    torch_params, kernel_params = init_params(k_param)

    out = lstm_model_forward(x, kernel_params)
    out = jax.block_until_ready(out)

    ref = lstm_model_reference(x, torch_params)
    assert out.shape == (B, OUTPUT_SIZE)
    assert jnp.allclose(out, ref, atol=1e-4, rtol=1e-4), "Pallas kernel mismatch vs JAX reference"

    print("KERNEL_OK")
</pallas_src>

<mosaic_0001>
module attributes {stable_mosaic.version = 11 : i64} {
  func.func @lstm_fc_kernel(%arg0: memref<8x8x512xf32, #tpu.memory_space<vmem>>, %arg1: memref<128x512xf32, #tpu.memory_space<vmem>>, %arg2: memref<128x512xf32, #tpu.memory_space<vmem>>, %arg3: memref<128x512xf32, #tpu.memory_space<vmem>>, %arg4: memref<8x512xf32, #tpu.memory_space<vmem>>, %arg5: memref<128x128xf32, #tpu.memory_space<vmem>>, %arg6: memref<8x128xf32, #tpu.memory_space<vmem>>, %arg7: memref<8x128xf32, #tpu.memory_space<vmem>>) attributes {dimension_semantics = [], scalar_prefetch = 0 : i64, scratch_operands = 0 : i64, tpu.core_type = #tpu.core_type<tc>} {
    %c0 = arith.constant 0 : index
    %c0_0 = arith.constant 0 : index
    %0 = vector.load %arg1[%c0, %c0_0] : memref<128x512xf32, #tpu.memory_space<vmem>>, vector<128x512xf32>
    %c0_1 = arith.constant 0 : index
    %c0_2 = arith.constant 0 : index
    %1 = vector.load %arg2[%c0_1, %c0_2] : memref<128x512xf32, #tpu.memory_space<vmem>>, vector<128x512xf32>
    %c0_3 = arith.constant 0 : index
    %c0_4 = arith.constant 0 : index
    %2 = vector.load %arg3[%c0_3, %c0_4] : memref<128x512xf32, #tpu.memory_space<vmem>>, vector<128x512xf32>
    %c0_5 = arith.constant 0 : index
    %c0_6 = arith.constant 0 : index
    %3 = vector.load %arg4[%c0_5, %c0_6] : memref<8x512xf32, #tpu.memory_space<vmem>>, vector<8x512xf32>
    %cst = arith.constant 0.000000e+00 : f32
    %4 = vector.broadcast %cst : f32 to vector<8x128xf32>
    %cst_7 = arith.constant 0.000000e+00 : f32
    %5 = vector.broadcast %cst_7 : f32 to vector<8x128xf32>
    %cst_8 = arith.constant 0.000000e+00 : f32
    %6 = vector.broadcast %cst_8 : f32 to vector<8x128xf32>
    %cst_9 = arith.constant 0.000000e+00 : f32
    %7 = vector.broadcast %cst_9 : f32 to vector<8x128xf32>
    %c0_10 = arith.constant 0 : index
    %c0_11 = arith.constant 0 : index
    %c0_12 = arith.constant 0 : index
    %8 = vector.load %arg0[%c0_10, %c0_11, %c0_12] : memref<8x8x512xf32, #tpu.memory_space<vmem>>, vector<1x8x512xf32>
    %9 = vector.shape_cast %8 : vector<1x8x512xf32> to vector<8x512xf32>
    %cst_13 = arith.constant dense<0.000000e+00> : vector<8x512xf32>
    %10 = tpu.matmul %4, %0, %cst_13 {dimension_numbers = #tpu.dot_dimension_numbers<[1], [0], [0], [1], [0, 0, 1, 1], [], []>} : vector<8x128xf32>, vector<128x512xf32>, vector<8x512xf32> -> vector<8x512xf32>
    %11 = arith.addf %9, %10 : vector<8x512xf32>
    %12 = vector.extract_strided_slice %11 {offsets = [0, 0], sizes = [8, 128], strides = [1, 1]} : vector<8x512xf32> to vector<8x128xf32>
    %13 = arith.negf %12 : vector<8x128xf32>
    %14 = math.exp %13 : vector<8x128xf32>
    %cst_14 = arith.constant 1.000000e+00 : f32
    %15 = vector.broadcast %cst_14 : f32 to vector<8x128xf32>
    %16 = arith.addf %15, %14 : vector<8x128xf32>
    %17 = arith.divf %15, %16 : vector<8x128xf32>
    %18 = vector.extract_strided_slice %11 {offsets = [0, 128], sizes = [8, 128], strides = [1, 1]} : vector<8x512xf32> to vector<8x128xf32>
    %19 = arith.negf %18 : vector<8x128xf32>
    %20 = math.exp %19 : vector<8x128xf32>
    %cst_15 = arith.constant 1.000000e+00 : f32
    %21 = vector.broadcast %cst_15 : f32 to vector<8x128xf32>
    %22 = arith.addf %21, %20 : vector<8x128xf32>
    %23 = arith.divf %21, %22 : vector<8x128xf32>
    %24 = vector.extract_strided_slice %11 {offsets = [0, 256], sizes = [8, 128], strides = [1, 1]} : vector<8x512xf32> to vector<8x128xf32>
    %25 = math.tanh %24 : vector<8x128xf32>
    %26 = vector.extract_strided_slice %11 {offsets = [0, 384], sizes = [8, 128], strides = [1, 1]} : vector<8x512xf32> to vector<8x128xf32>
    %27 = arith.negf %26 : vector<8x128xf32>
    %28 = math.exp %27 : vector<8x128xf32>
    %cst_16 = arith.constant 1.000000e+00 : f32
    %29 = vector.broadcast %cst_16 : f32 to vector<8x128xf32>
    %30 = arith.addf %29, %28 : vector<8x128xf32>
    %31 = arith.divf %29, %30 : vector<8x128xf32>
    %32 = arith.mulf %23, %5 : vector<8x128xf32>
    %33 = arith.mulf %17, %25 : vector<8x128xf32>
    %34 = arith.addf %32, %33 : vector<8x128xf32>
    %35 = math.tanh %34 : vector<8x128xf32>
    %36 = arith.mulf %31, %35 : vector<8x128xf32>
    %cst_17 = arith.constant dense<0.000000e+00> : vector<8x512xf32>
    %37 = tpu.matmul %36, %1, %cst_17 {dimension_numbers = #tpu.dot_dimension_numbers<[1], [0], [0], [1], [0, 0, 1, 1], [], []>} : vector<8x128xf32>, vector<128x512xf32>, vector<8x512xf32> -> vector<8x512xf32>
    %cst_18 = arith.constant dense<0.000000e+00> : vector<8x512xf32>
    %38 = tpu.matmul %6, %2, %cst_18 {dimension_numbers = #tpu.dot_dimension_numbers<[1], [0], [0], [1], [0, 0, 1, 1], [], []>} : vector<8x128xf32>, vector<128x512xf32>, vector<8x512xf32> -> vector<8x512xf32>
    %39 = arith.addf %37, %38 : vector<8x512xf32>
    %40 = arith.addf %39, %3 : vector<8x512xf32>
    %41 = vector.extract_strided_slice %40 {offsets = [0, 0], sizes = [8, 128], strides = [1, 1]} : vector<8x512xf32> to vector<8x128xf32>
    %42 = arith.negf %41 : vector<8x128xf32>
    %43 = math.exp %42 : vector<8x128xf32>
    %cst_19 = arith.constant 1.000000e+00 : f32
    %44 = vector.broadcast %cst_19 : f32 to vector<8x128xf32>
    %45 = arith.addf %44, %43 : vector<8x128xf32>
    %46 = arith.divf %44, %45 : vector<8x128xf32>
    %47 = vector.extract_strided_slice %40 {offsets = [0, 128], sizes = [8, 128], strides = [1, 1]} : vector<8x512xf32> to vector<8x128xf32>
    %48 = arith.negf %47 : vector<8x128xf32>
    %49 = math.exp %48 : vector<8x128xf32>
    %cst_20 = arith.constant 1.000000e+00 : f32
    %50 = vector.broadcast %cst_20 : f32 to vector<8x128xf32>
    %51 = arith.addf %50, %49 : vector<8x128xf32>
    %52 = arith.divf %50, %51 : vector<8x128xf32>
    %53 = vector.extract_strided_slice %40 {offsets = [0, 256], sizes = [8, 128], strides = [1, 1]} : vector<8x512xf32> to vector<8x128xf32>
    %54 = math.tanh %53 : vector<8x128xf32>
    %55 = vector.extract_strided_slice %40 {offsets = [0, 384], sizes = [8, 128], strides = [1, 1]} : vector<8x512xf32> to vector<8x128xf32>
    %56 = arith.negf %55 : vector<8x128xf32>
    %57 = math.exp %56 : vector<8x128xf32>
    %cst_21 = arith.constant 1.000000e+00 : f32
    %58 = vector.broadcast %cst_21 : f32 to vector<8x128xf32>
    %59 = arith.addf %58, %57 : vector<8x128xf32>
    %60 = arith.divf %58, %59 : vector<8x128xf32>
    %61 = arith.mulf %52, %7 : vector<8x128xf32>
    %62 = arith.mulf %46, %54 : vector<8x128xf32>
    %63 = arith.addf %61, %62 : vector<8x128xf32>
    %64 = math.tanh %63 : vector<8x128xf32>
    %65 = arith.mulf %60, %64 : vector<8x128xf32>
    %c1 = arith.constant 1 : index
    %c0_22 = arith.constant 0 : index
    %c0_23 = arith.constant 0 : index
    %66 = vector.load %arg0[%c1, %c0_22, %c0_23] : memref<8x8x512xf32, #tpu.memory_space<vmem>>, vector<1x8x512xf32>
    %67 = vector.shape_cast %66 : vector<1x8x512xf32> to vector<8x512xf32>
    %cst_24 = arith.constant dense<0.000000e+00> : vector<8x512xf32>
    %68 = tpu.matmul %36, %0, %cst_24 {dimension_numbers = #tpu.dot_dimension_numbers<[1], [0], [0], [1], [0, 0, 1, 1], [], []>} : vector<8x128xf32>, vector<128x512xf32>, vector<8x512xf32> -> vector<8x512xf32>
    %69 = arith.addf %67, %68 : vector<8x512xf32>
    %70 = vector.extract_strided_slice %69 {offsets = [0, 0], sizes = [8, 128], strides = [1, 1]} : vector<8x512xf32> to vector<8x128xf32>
    %71 = arith.negf %70 : vector<8x128xf32>
    %72 = math.exp %71 : vector<8x128xf32>
    %cst_25 = arith.constant 1.000000e+00 : f32
    %73 = vector.broadcast %cst_25 : f32 to vector<8x128xf32>
    %74 = arith.addf %73, %72 : vector<8x128xf32>
    %75 = arith.divf %73, %74 : vector<8x128xf32>
    %76 = vector.extract_strided_slice %69 {offsets = [0, 128], sizes = [8, 128], strides = [1, 1]} : vector<8x512xf32> to vector<8x128xf32>
    %77 = arith.negf %76 : vector<8x128xf32>
    %78 = math.exp %77 : vector<8x128xf32>
    %cst_26 = arith.constant 1.000000e+00 : f32
    %79 = vector.broadcast %cst_26 : f32 to vector<8x128xf32>
    %80 = arith.addf %79, %78 : vector<8x128xf32>
    %81 = arith.divf %79, %80 : vector<8x128xf32>
    %82 = vector.extract_strided_slice %69 {offsets = [0, 256], sizes = [8, 128], strides = [1, 1]} : vector<8x512xf32> to vector<8x128xf32>
    %83 = math.tanh %82 : vector<8x128xf32>
    %84 = vector.extract_strided_slice %69 {offsets = [0, 384], sizes = [8, 128], strides = [1, 1]} : vector<8x512xf32> to vector<8x128xf32>
    %85 = arith.negf %84 : vector<8x128xf32>
    %86 = math.exp %85 : vector<8x128xf32>
    %cst_27 = arith.constant 1.000000e+00 : f32
    %87 = vector.broadcast %cst_27 : f32 to vector<8x128xf32>
    %88 = arith.addf %87, %86 : vector<8x128xf32>
    %89 = arith.divf %87, %88 : vector<8x128xf32>
    %90 = arith.mulf %81, %34 : vector<8x128xf32>
    %91 = arith.mulf %75, %83 : vector<8x128xf32>
    %92 = arith.addf %90, %91 : vector<8x128xf32>
    %93 = math.tanh %92 : vector<8x128xf32>
    %94 = arith.mulf %89, %93 : vector<8x128xf32>
    %cst_28 = arith.constant dense<0.000000e+00> : vector<8x512xf32>
    %95 = tpu.matmul %94, %1, %cst_28 {dimension_numbers = #tpu.dot_dimension_numbers<[1], [0], [0], [1], [0, 0, 1, 1], [], []>} : vector<8x128xf32>, vector<128x512xf32>, vector<8x512xf32> -> vector<8x512xf32>
    %cst_29 = arith.constant dense<0.000000e+00> : vector<8x512xf32>
    %96 = tpu.matmul %65, %2, %cst_29 {dimension_numbers = #tpu.dot_dimension_numbers<[1], [0], [0], [1], [0, 0, 1, 1], [], []>} : vector<8x128xf32>, vector<128x512xf32>, vector<8x512xf32> -> vector<8x512xf32>
    %97 = arith.addf %95, %96 : vector<8x512xf32>
    %98 = arith.addf %97, %3 : vector<8x512xf32>
    %99 = vector.extract_strided_slice %98 {offsets = [0, 0], sizes = [8, 128], strides = [1, 1]} : vector<8x512xf32> to vector<8x128xf32>
    %100 = arith.negf %99 : vector<8x128xf32>
    %101 = math.exp %100 : vector<8x128xf32>
    %cst_30 = arith.constant 1.000000e+00 : f32
    %102 = vector.broadcast %cst_30 : f32 to vector<8x128xf32>
    %103 = arith.addf %102, %101 : vector<8x128xf32>
    %104 = arith.divf %102, %103 : vector<8x128xf32>
    %105 = vector.extract_strided_slice %98 {offsets = [0, 128], sizes = [8, 128], strides = [1, 1]} : vector<8x512xf32> to vector<8x128xf32>
    %106 = arith.negf %105 : vector<8x128xf32>
    %107 = math.exp %106 : vector<8x128xf32>
    %cst_31 = arith.constant 1.000000e+00 : f32
    %108 = vector.broadcast %cst_31 : f32 to vector<8x128xf32>
    %109 = arith.addf %108, %107 : vector<8x128xf32>
    %110 = arith.divf %108, %109 : vector<8x128xf32>
    %111 = vector.extract_strided_slice %98 {offsets = [0, 256], sizes = [8, 128], strides = [1, 1]} : vector<8x512xf32> to vector<8x128xf32>
    %112 = math.tanh %111 : vector<8x128xf32>
    %113 = vector.extract_strided_slice %98 {offsets = [0, 384], sizes = [8, 128], strides = [1, 1]} : vector<8x512xf32> to vector<8x128xf32>
    %114 = arith.negf %113 : vector<8x128xf32>
    %115 = math.exp %114 : vector<8x128xf32>
    %cst_32 = arith.constant 1.000000e+00 : f32
    %116 = vector.broadcast %cst_32 : f32 to vector<8x128xf32>
    %117 = arith.addf %116, %115 : vector<8x128xf32>
    %118 = arith.divf %116, %117 : vector<8x128xf32>
    %119 = arith.mulf %110, %63 : vector<8x128xf32>
    %120 = arith.mulf %104, %112 : vector<8x128xf32>
    %121 = arith.addf %119, %120 : vector<8x128xf32>
    %122 = math.tanh %121 : vector<8x128xf32>
    %123 = arith.mulf %118, %122 : vector<8x128xf32>
    %c2 = arith.constant 2 : index
    %c0_33 = arith.constant 0 : index
    %c0_34 = arith.constant 0 : index
    %124 = vector.load %arg0[%c2, %c0_33, %c0_34] : memref<8x8x512xf32, #tpu.memory_space<vmem>>, vector<1x8x512xf32>
    %125 = vector.shape_cast %124 : vector<1x8x512xf32> to vector<8x512xf32>
    %cst_35 = arith.constant dense<0.000000e+00> : vector<8x512xf32>
    %126 = tpu.matmul %94, %0, %cst_35 {dimension_numbers = #tpu.dot_dimension_numbers<[1], [0], [0], [1], [0, 0, 1, 1], [], []>} : vector<8x128xf32>, vector<128x512xf32>, vector<8x512xf32> -> vector<8x512xf32>
    %127 = arith.addf %125, %126 : vector<8x512xf32>
    %128 = vector.extract_strided_slice %127 {offsets = [0, 0], sizes = [8, 128], strides = [1, 1]} : vector<8x512xf32> to vector<8x128xf32>
    %129 = arith.negf %128 : vector<8x128xf32>
    %130 = math.exp %129 : vector<8x128xf32>
    %cst_36 = arith.constant 1.000000e+00 : f32
    %131 = vector.broadcast %cst_36 : f32 to vector<8x128xf32>
    %132 = arith.addf %131, %130 : vector<8x128xf32>
    %133 = arith.divf %131, %132 : vector<8x128xf32>
    %134 = vector.extract_strided_slice %127 {offsets = [0, 128], sizes = [8, 128], strides = [1, 1]} : vector<8x512xf32> to vector<8x128xf32>
    %135 = arith.negf %134 : vector<8x128xf32>
    %136 = math.exp %135 : vector<8x128xf32>
    %cst_37 = arith.constant 1.000000e+00 : f32
    %137 = vector.broadcast %cst_37 : f32 to vector<8x128xf32>
    %138 = arith.addf %137, %136 : vector<8x128xf32>
    %139 = arith.divf %137, %138 : vector<8x128xf32>
    %140 = vector.extract_strided_slice %127 {offsets = [0, 256], sizes = [8, 128], strides = [1, 1]} : vector<8x512xf32> to vector<8x128xf32>
    %141 = math.tanh %140 : vector<8x128xf32>
    %142 = vector.extract_strided_slice %127 {offsets = [0, 384], sizes = [8, 128], strides = [1, 1]} : vector<8x512xf32> to vector<8x128xf32>
    %143 = arith.negf %142 : vector<8x128xf32>
    %144 = math.exp %143 : vector<8x128xf32>
    %cst_38 = arith.constant 1.000000e+00 : f32
    %145 = vector.broadcast %cst_38 : f32 to vector<8x128xf32>
    %146 = arith.addf %145, %144 : vector<8x128xf32>
    %147 = arith.divf %145, %146 : vector<8x128xf32>
    %148 = arith.mulf %139, %92 : vector<8x128xf32>
    %149 = arith.mulf %133, %141 : vector<8x128xf32>
    %150 = arith.addf %148, %149 : vector<8x128xf32>
    %151 = math.tanh %150 : vector<8x128xf32>
    %152 = arith.mulf %147, %151 : vector<8x128xf32>
    %cst_39 = arith.constant dense<0.000000e+00> : vector<8x512xf32>
    %153 = tpu.matmul %152, %1, %cst_39 {dimension_numbers = #tpu.dot_dimension_numbers<[1], [0], [0], [1], [0, 0, 1, 1], [], []>} : vector<8x128xf32>, vector<128x512xf32>, vector<8x512xf32> -> vector<8x512xf32>
    %cst_40 = arith.constant dense<0.000000e+00> : vector<8x512xf32>
    %154 = tpu.matmul %123, %2, %cst_40 {dimension_numbers = #tpu.dot_dimension_numbers<[1], [0], [0], [1], [0, 0, 1, 1], [], []>} : vector<8x128xf32>, vector<128x512xf32>, vector<8x512xf32> -> vector<8x512xf32>
    %155 = arith.addf %153, %154 : vector<8x512xf32>
    %156 = arith.addf %155, %3 : vector<8x512xf32>
    %157 = vector.extract_strided_slice %156 {offsets = [0, 0], sizes = [8, 128], strides = [1, 1]} : vector<8x512xf32> to vector<8x128xf32>
    %158 = arith.negf %157 : vector<8x128xf32>
    %159 = math.exp %158 : vector<8x128xf32>
    %cst_41 = arith.constant 1.000000e+00 : f32
    %160 = vector.broadcast %cst_41 : f32 to vector<8x128xf32>
    %161 = arith.addf %160, %159 : vector<8x128xf32>
    %162 = arith.divf %160, %161 : vector<8x128xf32>
    %163 = vector.extract_strided_slice %156 {offsets = [0, 128], sizes = [8, 128], strides = [1, 1]} : vector<8x512xf32> to vector<8x128xf32>
    %164 = arith.negf %163 : vector<8x128xf32>
    %165 = math.exp %164 : vector<8x128xf32>
    %cst_42 = arith.constant 1.000000e+00 : f32
    %166 = vector.broadcast %cst_42 : f32 to vector<8x128xf32>
    %167 = arith.addf %166, %165 : vector<8x128xf32>
    %168 = arith.divf %166, %167 : vector<8x128xf32>
    %169 = vector.extract_strided_slice %156 {offsets = [0, 256], sizes = [8, 128], strides = [1, 1]} : vector<8x512xf32> to vector<8x128xf32>
    %170 = math.tanh %169 : vector<8x128xf32>
    %171 = vector.extract_strided_slice %156 {offsets = [0, 384], sizes = [8, 128], strides = [1, 1]} : vector<8x512xf32> to vector<8x128xf32>
    %172 = arith.negf %171 : vector<8x128xf32>
    %173 = math.exp %172 : vector<8x128xf32>
    %cst_43 = arith.constant 1.000000e+00 : f32
    %174 = vector.broadcast %cst_43 : f32 to vector<8x128xf32>
    %175 = arith.addf %174, %173 : vector<8x128xf32>
    %176 = arith.divf %174, %175 : vector<8x128xf32>
    %177 = arith.mulf %168, %121 : vector<8x128xf32>
    %178 = arith.mulf %162, %170 : vector<8x128xf32>
    %179 = arith.addf %177, %178 : vector<8x128xf32>
    %180 = math.tanh %179 : vector<8x128xf32>
    %181 = arith.mulf %176, %180 : vector<8x128xf32>
    %c3 = arith.constant 3 : index
    %c0_44 = arith.constant 0 : index
    %c0_45 = arith.constant 0 : index
    %182 = vector.load %arg0[%c3, %c0_44, %c0_45] : memref<8x8x512xf32, #tpu.memory_space<vmem>>, vector<1x8x512xf32>
    %183 = vector.shape_cast %182 : vector<1x8x512xf32> to vector<8x512xf32>
    %cst_46 = arith.constant dense<0.000000e+00> : vector<8x512xf32>
    %184 = tpu.matmul %152, %0, %cst_46 {dimension_numbers = #tpu.dot_dimension_numbers<[1], [0], [0], [1], [0, 0, 1, 1], [], []>} : vector<8x128xf32>, vector<128x512xf32>, vector<8x512xf32> -> vector<8x512xf32>
    %185 = arith.addf %183, %184 : vector<8x512xf32>
    %186 = vector.extract_strided_slice %185 {offsets = [0, 0], sizes = [8, 128], strides = [1, 1]} : vector<8x512xf32> to vector<8x128xf32>
    %187 = arith.negf %186 : vector<8x128xf32>
    %188 = math.exp %187 : vector<8x128xf32>
    %cst_47 = arith.constant 1.000000e+00 : f32
    %189 = vector.broadcast %cst_47 : f32 to vector<8x128xf32>
    %190 = arith.addf %189, %188 : vector<8x128xf32>
    %191 = arith.divf %189, %190 : vector<8x128xf32>
    %192 = vector.extract_strided_slice %185 {offsets = [0, 128], sizes = [8, 128], strides = [1, 1]} : vector<8x512xf32> to vector<8x128xf32>
    %193 = arith.negf %192 : vector<8x128xf32>
    %194 = math.exp %193 : vector<8x128xf32>
    %cst_48 = arith.constant 1.000000e+00 : f32
    %195 = vector.broadcast %cst_48 : f32 to vector<8x128xf32>
    %196 = arith.addf %195, %194 : vector<8x128xf32>
    %197 = arith.divf %195, %196 : vector<8x128xf32>
    %198 = vector.extract_strided_slice %185 {offsets = [0, 256], sizes = [8, 128], strides = [1, 1]} : vector<8x512xf32> to vector<8x128xf32>
    %199 = math.tanh %198 : vector<8x128xf32>
    %200 = vector.extract_strided_slice %185 {offsets = [0, 384], sizes = [8, 128], strides = [1, 1]} : vector<8x512xf32> to vector<8x128xf32>
    %201 = arith.negf %200 : vector<8x128xf32>
    %202 = math.exp %201 : vector<8x128xf32>
    %cst_49 = arith.constant 1.000000e+00 : f32
    %203 = vector.broadcast %cst_49 : f32 to vector<8x128xf32>
    %204 = arith.addf %203, %202 : vector<8x128xf32>
    %205 = arith.divf %203, %204 : vector<8x128xf32>
    %206 = arith.mulf %197, %150 : vector<8x128xf32>
    %207 = arith.mulf %191, %199 : vector<8x128xf32>
    %208 = arith.addf %206, %207 : vector<8x128xf32>
    %209 = math.tanh %208 : vector<8x128xf32>
    %210 = arith.mulf %205, %209 : vector<8x128xf32>
    %cst_50 = arith.constant dense<0.000000e+00> : vector<8x512xf32>
    %211 = tpu.matmul %210, %1, %cst_50 {dimension_numbers = #tpu.dot_dimension_numbers<[1], [0], [0], [1], [0, 0, 1, 1], [], []>} : vector<8x128xf32>, vector<128x512xf32>, vector<8x512xf32> -> vector<8x512xf32>
    %cst_51 = arith.constant dense<0.000000e+00> : vector<8x512xf32>
    %212 = tpu.matmul %181, %2, %cst_51 {dimension_numbers = #tpu.dot_dimension_numbers<[1], [0], [0], [1], [0, 0, 1, 1], [], []>} : vector<8x128xf32>, vector<128x512xf32>, vector<8x512xf32> -> vector<8x512xf32>
    %213 = arith.addf %211, %212 : vector<8x512xf32>
    %214 = arith.addf %213, %3 : vector<8x512xf32>
    %215 = vector.extract_strided_slice %214 {offsets = [0, 0], sizes = [8, 128], strides = [1, 1]} : vector<8x512xf32> to vector<8x128xf32>
    %216 = arith.negf %215 : vector<8x128xf32>
    %217 = math.exp %216 : vector<8x128xf32>
    %cst_52 = arith.constant 1.000000e+00 : f32
    %218 = vector.broadcast %cst_52 : f32 to vector<8x128xf32>
    %219 = arith.addf %218, %217 : vector<8x128xf32>
    %220 = arith.divf %218, %219 : vector<8x128xf32>
    %221 = vector.extract_strided_slice %214 {offsets = [0, 128], sizes = [8, 128], strides = [1, 1]} : vector<8x512xf32> to vector<8x128xf32>
    %222 = arith.negf %221 : vector<8x128xf32>
    %223 = math.exp %222 : vector<8x128xf32>
    %cst_53 = arith.constant 1.000000e+00 : f32
    %224 = vector.broadcast %cst_53 : f32 to vector<8x128xf32>
    %225 = arith.addf %224, %223 : vector<8x128xf32>
    %226 = arith.divf %224, %225 : vector<8x128xf32>
    %227 = vector.extract_strided_slice %214 {offsets = [0, 256], sizes = [8, 128], strides = [1, 1]} : vector<8x512xf32> to vector<8x128xf32>
    %228 = math.tanh %227 : vector<8x128xf32>
    %229 = vector.extract_strided_slice %214 {offsets = [0, 384], sizes = [8, 128], strides = [1, 1]} : vector<8x512xf32> to vector<8x128xf32>
    %230 = arith.negf %229 : vector<8x128xf32>
    %231 = math.exp %230 : vector<8x128xf32>
    %cst_54 = arith.constant 1.000000e+00 : f32
    %232 = vector.broadcast %cst_54 : f32 to vector<8x128xf32>
    %233 = arith.addf %232, %231 : vector<8x128xf32>
    %234 = arith.divf %232, %233 : vector<8x128xf32>
    %235 = arith.mulf %226, %179 : vector<8x128xf32>
    %236 = arith.mulf %220, %228 : vector<8x128xf32>
    %237 = arith.addf %235, %236 : vector<8x128xf32>
    %238 = math.tanh %237 : vector<8x128xf32>
    %239 = arith.mulf %234, %238 : vector<8x128xf32>
    %c4 = arith.constant 4 : index
    %c0_55 = arith.constant 0 : index
    %c0_56 = arith.constant 0 : index
    %240 = vector.load %arg0[%c4, %c0_55, %c0_56] : memref<8x8x512xf32, #tpu.memory_space<vmem>>, vector<1x8x512xf32>
    %241 = vector.shape_cast %240 : vector<1x8x512xf32> to vector<8x512xf32>
    %cst_57 = arith.constant dense<0.000000e+00> : vector<8x512xf32>
    %242 = tpu.matmul %210, %0, %cst_57 {dimension_numbers = #tpu.dot_dimension_numbers<[1], [0], [0], [1], [0, 0, 1, 1], [], []>} : vector<8x128xf32>, vector<128x512xf32>, vector<8x512xf32> -> vector<8x512xf32>
    %243 = arith.addf %241, %242 : vector<8x512xf32>
    %244 = vector.extract_strided_slice %243 {offsets = [0, 0], sizes = [8, 128], strides = [1, 1]} : vector<8x512xf32> to vector<8x128xf32>
    %245 = arith.negf %244 : vector<8x128xf32>
    %246 = math.exp %245 : vector<8x128xf32>
    %cst_58 = arith.constant 1.000000e+00 : f32
    %247 = vector.broadcast %cst_58 : f32 to vector<8x128xf32>
    %248 = arith.addf %247, %246 : vector<8x128xf32>
    %249 = arith.divf %247, %248 : vector<8x128xf32>
    %250 = vector.extract_strided_slice %243 {offsets = [0, 128], sizes = [8, 128], strides = [1, 1]} : vector<8x512xf32> to vector<8x128xf32>
    %251 = arith.negf %250 : vector<8x128xf32>
    %252 = math.exp %251 : vector<8x128xf32>
    %cst_59 = arith.constant 1.000000e+00 : f32
    %253 = vector.broadcast %cst_59 : f32 to vector<8x128xf32>
    %254 = arith.addf %253, %252 : vector<8x128xf32>
    %255 = arith.divf %253, %254 : vector<8x128xf32>
    %256 = vector.extract_strided_slice %243 {offsets = [0, 256], sizes = [8, 128], strides = [1, 1]} : vector<8x512xf32> to vector<8x128xf32>
    %257 = math.tanh %256 : vector<8x128xf32>
    %258 = vector.extract_strided_slice %243 {offsets = [0, 384], sizes = [8, 128], strides = [1, 1]} : vector<8x512xf32> to vector<8x128xf32>
    %259 = arith.negf %258 : vector<8x128xf32>
    %260 = math.exp %259 : vector<8x128xf32>
    %cst_60 = arith.constant 1.000000e+00 : f32
    %261 = vector.broadcast %cst_60 : f32 to vector<8x128xf32>
    %262 = arith.addf %261, %260 : vector<8x128xf32>
    %263 = arith.divf %261, %262 : vector<8x128xf32>
    %264 = arith.mulf %255, %208 : vector<8x128xf32>
    %265 = arith.mulf %249, %257 : vector<8x128xf32>
    %266 = arith.addf %264, %265 : vector<8x128xf32>
    %267 = math.tanh %266 : vector<8x128xf32>
    %268 = arith.mulf %263, %267 : vector<8x128xf32>
    %cst_61 = arith.constant dense<0.000000e+00> : vector<8x512xf32>
    %269 = tpu.matmul %268, %1, %cst_61 {dimension_numbers = #tpu.dot_dimension_numbers<[1], [0], [0], [1], [0, 0, 1, 1], [], []>} : vector<8x128xf32>, vector<128x512xf32>, vector<8x512xf32> -> vector<8x512xf32>
    %cst_62 = arith.constant dense<0.000000e+00> : vector<8x512xf32>
    %270 = tpu.matmul %239, %2, %cst_62 {dimension_numbers = #tpu.dot_dimension_numbers<[1], [0], [0], [1], [0, 0, 1, 1], [], []>} : vector<8x128xf32>, vector<128x512xf32>, vector<8x512xf32> -> vector<8x512xf32>
    %271 = arith.addf %269, %270 : vector<8x512xf32>
    %272 = arith.addf %271, %3 : vector<8x512xf32>
    %273 = vector.extract_strided_slice %272 {offsets = [0, 0], sizes = [8, 128], strides = [1, 1]} : vector<8x512xf32> to vector<8x128xf32>
    %274 = arith.negf %273 : vector<8x128xf32>
    %275 = math.exp %274 : vector<8x128xf32>
    %cst_63 = arith.constant 1.000000e+00 : f32
    %276 = vector.broadcast %cst_63 : f32 to vector<8x128xf32>
    %277 = arith.addf %276, %275 : vector<8x128xf32>
    %278 = arith.divf %276, %277 : vector<8x128xf32>
    %279 = vector.extract_strided_slice %272 {offsets = [0, 128], sizes = [8, 128], strides = [1, 1]} : vector<8x512xf32> to vector<8x128xf32>
    %280 = arith.negf %279 : vector<8x128xf32>
    %281 = math.exp %280 : vector<8x128xf32>
    %cst_64 = arith.constant 1.000000e+00 : f32
    %282 = vector.broadcast %cst_64 : f32 to vector<8x128xf32>
    %283 = arith.addf %282, %281 : vector<8x128xf32>
    %284 = arith.divf %282, %283 : vector<8x128xf32>
    %285 = vector.extract_strided_slice %272 {offsets = [0, 256], sizes = [8, 128], strides = [1, 1]} : vector<8x512xf32> to vector<8x128xf32>
    %286 = math.tanh %285 : vector<8x128xf32>
    %287 = vector.extract_strided_slice %272 {offsets = [0, 384], sizes = [8, 128], strides = [1, 1]} : vector<8x512xf32> to vector<8x128xf32>
    %288 = arith.negf %287 : vector<8x128xf32>
    %289 = math.exp %288 : vector<8x128xf32>
    %cst_65 = arith.constant 1.000000e+00 : f32
    %290 = vector.broadcast %cst_65 : f32 to vector<8x128xf32>
    %291 = arith.addf %290, %289 : vector<8x128xf32>
    %292 = arith.divf %290, %291 : vector<8x128xf32>
    %293 = arith.mulf %284, %237 : vector<8x128xf32>
    %294 = arith.mulf %278, %286 : vector<8x128xf32>
    %295 = arith.addf %293, %294 : vector<8x128xf32>
    %296 = math.tanh %295 : vector<8x128xf32>
    %297 = arith.mulf %292, %296 : vector<8x128xf32>
    %c5 = arith.constant 5 : index
    %c0_66 = arith.constant 0 : index
    %c0_67 = arith.constant 0 : index
    %298 = vector.load %arg0[%c5, %c0_66, %c0_67] : memref<8x8x512xf32, #tpu.memory_space<vmem>>, vector<1x8x512xf32>
    %299 = vector.shape_cast %298 : vector<1x8x512xf32> to vector<8x512xf32>
    %cst_68 = arith.constant dense<0.000000e+00> : vector<8x512xf32>
    %300 = tpu.matmul %268, %0, %cst_68 {dimension_numbers = #tpu.dot_dimension_numbers<[1], [0], [0], [1], [0, 0, 1, 1], [], []>} : vector<8x128xf32>, vector<128x512xf32>, vector<8x512xf32> -> vector<8x512xf32>
    %301 = arith.addf %299, %300 : vector<8x512xf32>
    %302 = vector.extract_strided_slice %301 {offsets = [0, 0], sizes = [8, 128], strides = [1, 1]} : vector<8x512xf32> to vector<8x128xf32>
    %303 = arith.negf %302 : vector<8x128xf32>
    %304 = math.exp %303 : vector<8x128xf32>
    %cst_69 = arith.constant 1.000000e+00 : f32
    %305 = vector.broadcast %cst_69 : f32 to vector<8x128xf32>
    %306 = arith.addf %305, %304 : vector<8x128xf32>
    %307 = arith.divf %305, %306 : vector<8x128xf32>
    %308 = vector.extract_strided_slice %301 {offsets = [0, 128], sizes = [8, 128], strides = [1, 1]} : vector<8x512xf32> to vector<8x128xf32>
    %309 = arith.negf %308 : vector<8x128xf32>
    %310 = math.exp %309 : vector<8x128xf32>
    %cst_70 = arith.constant 1.000000e+00 : f32
    %311 = vector.broadcast %cst_70 : f32 to vector<8x128xf32>
    %312 = arith.addf %311, %310 : vector<8x128xf32>
    %313 = arith.divf %311, %312 : vector<8x128xf32>
    %314 = vector.extract_strided_slice %301 {offsets = [0, 256], sizes = [8, 128], strides = [1, 1]} : vector<8x512xf32> to vector<8x128xf32>
    %315 = math.tanh %314 : vector<8x128xf32>
    %316 = vector.extract_strided_slice %301 {offsets = [0, 384], sizes = [8, 128], strides = [1, 1]} : vector<8x512xf32> to vector<8x128xf32>
    %317 = arith.negf %316 : vector<8x128xf32>
    %318 = math.exp %317 : vector<8x128xf32>
    %cst_71 = arith.constant 1.000000e+00 : f32
    %319 = vector.broadcast %cst_71 : f32 to vector<8x128xf32>
    %320 = arith.addf %319, %318 : vector<8x128xf32>
    %321 = arith.divf %319, %320 : vector<8x128xf32>
    %322 = arith.mulf %313, %266 : vector<8x128xf32>
    %323 = arith.mulf %307, %315 : vector<8x128xf32>
    %324 = arith.addf %322, %323 : vector<8x128xf32>
    %325 = math.tanh %324 : vector<8x128xf32>
    %326 = arith.mulf %321, %325 : vector<8x128xf32>
    %cst_72 = arith.constant dense<0.000000e+00> : vector<8x512xf32>
    %327 = tpu.matmul %326, %1, %cst_72 {dimension_numbers = #tpu.dot_dimension_numbers<[1], [0], [0], [1], [0, 0, 1, 1], [], []>} : vector<8x128xf32>, vector<128x512xf32>, vector<8x512xf32> -> vector<8x512xf32>
    %cst_73 = arith.constant dense<0.000000e+00> : vector<8x512xf32>
    %328 = tpu.matmul %297, %2, %cst_73 {dimension_numbers = #tpu.dot_dimension_numbers<[1], [0], [0], [1], [0, 0, 1, 1], [], []>} : vector<8x128xf32>, vector<128x512xf32>, vector<8x512xf32> -> vector<8x512xf32>
    %329 = arith.addf %327, %328 : vector<8x512xf32>
    %330 = arith.addf %329, %3 : vector<8x512xf32>
    %331 = vector.extract_strided_slice %330 {offsets = [0, 0], sizes = [8, 128], strides = [1, 1]} : vector<8x512xf32> to vector<8x128xf32>
    %332 = arith.negf %331 : vector<8x128xf32>
    %333 = math.exp %332 : vector<8x128xf32>
    %cst_74 = arith.constant 1.000000e+00 : f32
    %334 = vector.broadcast %cst_74 : f32 to vector<8x128xf32>
    %335 = arith.addf %334, %333 : vector<8x128xf32>
    %336 = arith.divf %334, %335 : vector<8x128xf32>
    %337 = vector.extract_strided_slice %330 {offsets = [0, 128], sizes = [8, 128], strides = [1, 1]} : vector<8x512xf32> to vector<8x128xf32>
    %338 = arith.negf %337 : vector<8x128xf32>
    %339 = math.exp %338 : vector<8x128xf32>
    %cst_75 = arith.constant 1.000000e+00 : f32
    %340 = vector.broadcast %cst_75 : f32 to vector<8x128xf32>
    %341 = arith.addf %340, %339 : vector<8x128xf32>
    %342 = arith.divf %340, %341 : vector<8x128xf32>
    %343 = vector.extract_strided_slice %330 {offsets = [0, 256], sizes = [8, 128], strides = [1, 1]} : vector<8x512xf32> to vector<8x128xf32>
    %344 = math.tanh %343 : vector<8x128xf32>
    %345 = vector.extract_strided_slice %330 {offsets = [0, 384], sizes = [8, 128], strides = [1, 1]} : vector<8x512xf32> to vector<8x128xf32>
    %346 = arith.negf %345 : vector<8x128xf32>
    %347 = math.exp %346 : vector<8x128xf32>
    %cst_76 = arith.constant 1.000000e+00 : f32
    %348 = vector.broadcast %cst_76 : f32 to vector<8x128xf32>
    %349 = arith.addf %348, %347 : vector<8x128xf32>
    %350 = arith.divf %348, %349 : vector<8x128xf32>
    %351 = arith.mulf %342, %295 : vector<8x128xf32>
    %352 = arith.mulf %336, %344 : vector<8x128xf32>
    %353 = arith.addf %351, %352 : vector<8x128xf32>
    %354 = math.tanh %353 : vector<8x128xf32>
    %355 = arith.mulf %350, %354 : vector<8x128xf32>
    %c6 = arith.constant 6 : index
    %c0_77 = arith.constant 0 : index
    %c0_78 = arith.constant 0 : index
    %356 = vector.load %arg0[%c6, %c0_77, %c0_78] : memref<8x8x512xf32, #tpu.memory_space<vmem>>, vector<1x8x512xf32>
    %357 = vector.shape_cast %356 : vector<1x8x512xf32> to vector<8x512xf32>
    %cst_79 = arith.constant dense<0.000000e+00> : vector<8x512xf32>
    %358 = tpu.matmul %326, %0, %cst_79 {dimension_numbers = #tpu.dot_dimension_numbers<[1], [0], [0], [1], [0, 0, 1, 1], [], []>} : vector<8x128xf32>, vector<128x512xf32>, vector<8x512xf32> -> vector<8x512xf32>
    %359 = arith.addf %357, %358 : vector<8x512xf32>
    %360 = vector.extract_strided_slice %359 {offsets = [0, 0], sizes = [8, 128], strides = [1, 1]} : vector<8x512xf32> to vector<8x128xf32>
    %361 = arith.negf %360 : vector<8x128xf32>
    %362 = math.exp %361 : vector<8x128xf32>
    %cst_80 = arith.constant 1.000000e+00 : f32
    %363 = vector.broadcast %cst_80 : f32 to vector<8x128xf32>
    %364 = arith.addf %363, %362 : vector<8x128xf32>
    %365 = arith.divf %363, %364 : vector<8x128xf32>
    %366 = vector.extract_strided_slice %359 {offsets = [0, 128], sizes = [8, 128], strides = [1, 1]} : vector<8x512xf32> to vector<8x128xf32>
    %367 = arith.negf %366 : vector<8x128xf32>
    %368 = math.exp %367 : vector<8x128xf32>
    %cst_81 = arith.constant 1.000000e+00 : f32
    %369 = vector.broadcast %cst_81 : f32 to vector<8x128xf32>
    %370 = arith.addf %369, %368 : vector<8x128xf32>
    %371 = arith.divf %369, %370 : vector<8x128xf32>
    %372 = vector.extract_strided_slice %359 {offsets = [0, 256], sizes = [8, 128], strides = [1, 1]} : vector<8x512xf32> to vector<8x128xf32>
    %373 = math.tanh %372 : vector<8x128xf32>
    %374 = vector.extract_strided_slice %359 {offsets = [0, 384], sizes = [8, 128], strides = [1, 1]} : vector<8x512xf32> to vector<8x128xf32>
    %375 = arith.negf %374 : vector<8x128xf32>
    %376 = math.exp %375 : vector<8x128xf32>
    %cst_82 = arith.constant 1.000000e+00 : f32
    %377 = vector.broadcast %cst_82 : f32 to vector<8x128xf32>
    %378 = arith.addf %377, %376 : vector<8x128xf32>
    %379 = arith.divf %377, %378 : vector<8x128xf32>
    %380 = arith.mulf %371, %324 : vector<8x128xf32>
    %381 = arith.mulf %365, %373 : vector<8x128xf32>
    %382 = arith.addf %380, %381 : vector<8x128xf32>
    %383 = math.tanh %382 : vector<8x128xf32>
    %384 = arith.mulf %379, %383 : vector<8x128xf32>
    %cst_83 = arith.constant dense<0.000000e+00> : vector<8x512xf32>
    %385 = tpu.matmul %384, %1, %cst_83 {dimension_numbers = #tpu.dot_dimension_numbers<[1], [0], [0], [1], [0, 0, 1, 1], [], []>} : vector<8x128xf32>, vector<128x512xf32>, vector<8x512xf32> -> vector<8x512xf32>
    %cst_84 = arith.constant dense<0.000000e+00> : vector<8x512xf32>
    %386 = tpu.matmul %355, %2, %cst_84 {dimension_numbers = #tpu.dot_dimension_numbers<[1], [0], [0], [1], [0, 0, 1, 1], [], []>} : vector<8x128xf32>, vector<128x512xf32>, vector<8x512xf32> -> vector<8x512xf32>
    %387 = arith.addf %385, %386 : vector<8x512xf32>
    %388 = arith.addf %387, %3 : vector<8x512xf32>
    %389 = vector.extract_strided_slice %388 {offsets = [0, 0], sizes = [8, 128], strides = [1, 1]} : vector<8x512xf32> to vector<8x128xf32>
    %390 = arith.negf %389 : vector<8x128xf32>
    %391 = math.exp %390 : vector<8x128xf32>
    %cst_85 = arith.constant 1.000000e+00 : f32
    %392 = vector.broadcast %cst_85 : f32 to vector<8x128xf32>
    %393 = arith.addf %392, %391 : vector<8x128xf32>
    %394 = arith.divf %392, %393 : vector<8x128xf32>
    %395 = vector.extract_strided_slice %388 {offsets = [0, 128], sizes = [8, 128], strides = [1, 1]} : vector<8x512xf32> to vector<8x128xf32>
    %396 = arith.negf %395 : vector<8x128xf32>
    %397 = math.exp %396 : vector<8x128xf32>
    %cst_86 = arith.constant 1.000000e+00 : f32
    %398 = vector.broadcast %cst_86 : f32 to vector<8x128xf32>
    %399 = arith.addf %398, %397 : vector<8x128xf32>
    %400 = arith.divf %398, %399 : vector<8x128xf32>
    %401 = vector.extract_strided_slice %388 {offsets = [0, 256], sizes = [8, 128], strides = [1, 1]} : vector<8x512xf32> to vector<8x128xf32>
    %402 = math.tanh %401 : vector<8x128xf32>
    %403 = vector.extract_strided_slice %388 {offsets = [0, 384], sizes = [8, 128], strides = [1, 1]} : vector<8x512xf32> to vector<8x128xf32>
    %404 = arith.negf %403 : vector<8x128xf32>
    %405 = math.exp %404 : vector<8x128xf32>
    %cst_87 = arith.constant 1.000000e+00 : f32
    %406 = vector.broadcast %cst_87 : f32 to vector<8x128xf32>
    %407 = arith.addf %406, %405 : vector<8x128xf32>
    %408 = arith.divf %406, %407 : vector<8x128xf32>
    %409 = arith.mulf %400, %353 : vector<8x128xf32>
    %410 = arith.mulf %394, %402 : vector<8x128xf32>
    %411 = arith.addf %409, %410 : vector<8x128xf32>
    %412 = math.tanh %411 : vector<8x128xf32>
    %413 = arith.mulf %408, %412 : vector<8x128xf32>
    %c7 = arith.constant 7 : index
    %c0_88 = arith.constant 0 : index
    %c0_89 = arith.constant 0 : index
    %414 = vector.load %arg0[%c7, %c0_88, %c0_89] : memref<8x8x512xf32, #tpu.memory_space<vmem>>, vector<1x8x512xf32>
    %415 = vector.shape_cast %414 : vector<1x8x512xf32> to vector<8x512xf32>
    %cst_90 = arith.constant dense<0.000000e+00> : vector<8x512xf32>
    %416 = tpu.matmul %384, %0, %cst_90 {dimension_numbers = #tpu.dot_dimension_numbers<[1], [0], [0], [1], [0, 0, 1, 1], [], []>} : vector<8x128xf32>, vector<128x512xf32>, vector<8x512xf32> -> vector<8x512xf32>
    %417 = arith.addf %415, %416 : vector<8x512xf32>
    %418 = vector.extract_strided_slice %417 {offsets = [0, 0], sizes = [8, 128], strides = [1, 1]} : vector<8x512xf32> to vector<8x128xf32>
    %419 = arith.negf %418 : vector<8x128xf32>
    %420 = math.exp %419 : vector<8x128xf32>
    %cst_91 = arith.constant 1.000000e+00 : f32
    %421 = vector.broadcast %cst_91 : f32 to vector<8x128xf32>
    %422 = arith.addf %421, %420 : vector<8x128xf32>
    %423 = arith.divf %421, %422 : vector<8x128xf32>
    %424 = vector.extract_strided_slice %417 {offsets = [0, 128], sizes = [8, 128], strides = [1, 1]} : vector<8x512xf32> to vector<8x128xf32>
    %425 = arith.negf %424 : vector<8x128xf32>
    %426 = math.exp %425 : vector<8x128xf32>
    %cst_92 = arith.constant 1.000000e+00 : f32
    %427 = vector.broadcast %cst_92 : f32 to vector<8x128xf32>
    %428 = arith.addf %427, %426 : vector<8x128xf32>
    %429 = arith.divf %427, %428 : vector<8x128xf32>
    %430 = vector.extract_strided_slice %417 {offsets = [0, 256], sizes = [8, 128], strides = [1, 1]} : vector<8x512xf32> to vector<8x128xf32>
    %431 = math.tanh %430 : vector<8x128xf32>
    %432 = vector.extract_strided_slice %417 {offsets = [0, 384], sizes = [8, 128], strides = [1, 1]} : vector<8x512xf32> to vector<8x128xf32>
    %433 = arith.negf %432 : vector<8x128xf32>
    %434 = math.exp %433 : vector<8x128xf32>
    %cst_93 = arith.constant 1.000000e+00 : f32
    %435 = vector.broadcast %cst_93 : f32 to vector<8x128xf32>
    %436 = arith.addf %435, %434 : vector<8x128xf32>
    %437 = arith.divf %435, %436 : vector<8x128xf32>
    %438 = arith.mulf %429, %382 : vector<8x128xf32>
    %439 = arith.mulf %423, %431 : vector<8x128xf32>
    %440 = arith.addf %438, %439 : vector<8x128xf32>
    %441 = math.tanh %440 : vector<8x128xf32>
    %442 = arith.mulf %437, %441 : vector<8x128xf32>
    %cst_94 = arith.constant dense<0.000000e+00> : vector<8x512xf32>
    %443 = tpu.matmul %442, %1, %cst_94 {dimension_numbers = #tpu.dot_dimension_numbers<[1], [0], [0], [1], [0, 0, 1, 1], [], []>} : vector<8x128xf32>, vector<128x512xf32>, vector<8x512xf32> -> vector<8x512xf32>
    %cst_95 = arith.constant dense<0.000000e+00> : vector<8x512xf32>
    %444 = tpu.matmul %413, %2, %cst_95 {dimension_numbers = #tpu.dot_dimension_numbers<[1], [0], [0], [1], [0, 0, 1, 1], [], []>} : vector<8x128xf32>, vector<128x512xf32>, vector<8x512xf32> -> vector<8x512xf32>
    %445 = arith.addf %443, %444 : vector<8x512xf32>
    %446 = arith.addf %445, %3 : vector<8x512xf32>
    %447 = vector.extract_strided_slice %446 {offsets = [0, 0], sizes = [8, 128], strides = [1, 1]} : vector<8x512xf32> to vector<8x128xf32>
    %448 = arith.negf %447 : vector<8x128xf32>
    %449 = math.exp %448 : vector<8x128xf32>
    %cst_96 = arith.constant 1.000000e+00 : f32
    %450 = vector.broadcast %cst_96 : f32 to vector<8x128xf32>
    %451 = arith.addf %450, %449 : vector<8x128xf32>
    %452 = arith.divf %450, %451 : vector<8x128xf32>
    %453 = vector.extract_strided_slice %446 {offsets = [0, 128], sizes = [8, 128], strides = [1, 1]} : vector<8x512xf32> to vector<8x128xf32>
    %454 = arith.negf %453 : vector<8x128xf32>
    %455 = math.exp %454 : vector<8x128xf32>
    %cst_97 = arith.constant 1.000000e+00 : f32
    %456 = vector.broadcast %cst_97 : f32 to vector<8x128xf32>
    %457 = arith.addf %456, %455 : vector<8x128xf32>
    %458 = arith.divf %456, %457 : vector<8x128xf32>
    %459 = vector.extract_strided_slice %446 {offsets = [0, 256], sizes = [8, 128], strides = [1, 1]} : vector<8x512xf32> to vector<8x128xf32>
    %460 = math.tanh %459 : vector<8x128xf32>
    %461 = vector.extract_strided_slice %446 {offsets = [0, 384], sizes = [8, 128], strides = [1, 1]} : vector<8x512xf32> to vector<8x128xf32>
    %462 = arith.negf %461 : vector<8x128xf32>
    %463 = math.exp %462 : vector<8x128xf32>
    %cst_98 = arith.constant 1.000000e+00 : f32
    %464 = vector.broadcast %cst_98 : f32 to vector<8x128xf32>
    %465 = arith.addf %464, %463 : vector<8x128xf32>
    %466 = arith.divf %464, %465 : vector<8x128xf32>
    %467 = arith.mulf %458, %411 : vector<8x128xf32>
    %468 = arith.mulf %452, %460 : vector<8x128xf32>
    %469 = arith.addf %467, %468 : vector<8x128xf32>
    %470 = math.tanh %469 : vector<8x128xf32>
    %471 = arith.mulf %466, %470 : vector<8x128xf32>
    %c0_99 = arith.constant 0 : index
    %c0_100 = arith.constant 0 : index
    %472 = vector.load %arg5[%c0_99, %c0_100] : memref<128x128xf32, #tpu.memory_space<vmem>>, vector<128x128xf32>
    %cst_101 = arith.constant dense<0.000000e+00> : vector<8x128xf32>
    %473 = tpu.matmul %471, %472, %cst_101 {dimension_numbers = #tpu.dot_dimension_numbers<[1], [0], [0], [1], [0, 0, 1, 1], [], []>} : vector<8x128xf32>, vector<128x128xf32>, vector<8x128xf32> -> vector<8x128xf32>
    %c0_102 = arith.constant 0 : index
    %c0_103 = arith.constant 0 : index
    %474 = vector.load %arg6[%c0_102, %c0_103] : memref<8x128xf32, #tpu.memory_space<vmem>>, vector<8x128xf32>
    %475 = arith.addf %473, %474 : vector<8x128xf32>
    %c0_104 = arith.constant 0 : index
    %c0_105 = arith.constant 0 : index
    %476 = vector.load %arg7[%c0_104, %c0_105] : memref<8x128xf32, #tpu.memory_space<vmem>>, vector<8x128xf32>
    tpu.vector_store %arg7[%c0_104, %c0_105], %475 {strides = array<i32>} : memref<8x128xf32, #tpu.memory_space<vmem>>, vector<8x128xf32>,
    return
  }
}

</mosaic_0001>

<llo_original>
// kernel: lstm_model_forward.1
$region0: #{lstm_model_forward.1}
  #allocation0 [shape = 'u32[]', space=smem, size = 0x4, offset = 0x4, fixed_abs, tag = 'smem constant byte address 0x4 - core index']
  #allocation1 [shape = 'u32[72,128]{1,0:T(1,128)}', space=vmem, size = 0x9000, scoped, tag = 'internal scratch']
  %s0 = inlined_call_operand.vmem [shape: f32[8,8,512], index: 0, kind: input, shape index: {}]
  %s1 = inlined_call_operand.hbm [shape: f32[128,512], index: 1, kind: input, shape index: {}]
  %s2 = inlined_call_operand.hbm [shape: f32[128,512], index: 2, kind: input, shape index: {}]
  %s3 = inlined_call_operand.hbm [shape: f32[128,512], index: 3, kind: input, shape index: {}]
  %s4 = inlined_call_operand.vmem [shape: f32[8,512], index: 4, kind: input, shape index: {}]
  %s5 = inlined_call_operand.vmem [shape: f32[128,128], index: 5, kind: input, shape index: {}]
  %s6 = inlined_call_operand.vmem [shape: f32[8,128], index: 6, kind: input, shape index: {}]
  %s7 = inlined_call_operand.vmem [shape: f32[8,128], index: 7, kind: output, shape index: {}]
  %s8 = sld [smem:[#allocation0]]
  $region50: #{lstm_model_forward.1} parent=0
    _
  %s10 = ssub.s32 1, %s8
  %s11 = scalar_select 0, %s10, %s8
  $region1: #{lstm_model_forward.1} parent=0
    #allocation2 [shape = 'u8[262144]{0}', space=vmem, size = 0x40000, scoped, tag = 'input window, operand 1, single buffered']
    #allocation3 [shape = 's32[1]{0}', space=sflag, size = 0x4, scoped, tag = 'scoped memory for lstm_model_forward.1']
    #allocation4 [shape = 'u8[262144]{0}', space=vmem, size = 0x40000, scoped, tag = 'input window, operand 2, single buffered']
    #allocation5 [shape = 's32[1]{0}', space=sflag, size = 0x4, scoped, tag = 'scoped memory for lstm_model_forward.1']
    #allocation6 [shape = 'u8[262144]{0}', space=vmem, size = 0x40000, scoped, tag = 'input window, operand 3, single buffered']
    %12 = vsyncpa [#allocation3], 0
    %13 = vsyncpa [#allocation5], 0
    // Predicated region
    $region2: #{lstm_model_forward.1} parent=1 // pred_check
      _
    $region3: #{lstm_model_forward.1} parent=1 // pred_check_branch
      %15 = sbr.rel (0) target = $region5
    $region4: #{lstm_model_forward.1} parent=1 // pred_region
      _
    $region5: #{lstm_model_forward.1} parent=1 // pred_fallthru
      _
    // Predicated region
    $region6: #{lstm_model_forward.1} parent=1 // pred_check
      _
    $region7: #{lstm_model_forward.1} parent=1 // pred_check_branch
      %17 = sbr.rel (0) target = $region9
    $region8: #{lstm_model_forward.1} parent=1 // pred_region
      %19 = vsyncadd [#allocation3], 0
      %s20 = sshll.u32 %s1, 4
      %s21 = int_to_ptr.hbm [resolvable:$true] %s20
      %s22 = sshll.u32 [#allocation2], 4
      %s23 = int_to_ptr.vmem [resolvable:$true] %s22
      %28 = dma.hbm_to_vmem [thread:$0]  %s21, 8192, %s23, [#allocation3], 512, 512, 32
    $region9: #{lstm_model_forward.1} parent=1 // pred_fallthru
      _
    // Predicated region
    $region10: #{lstm_model_forward.1} parent=1 // pred_check
      _
    $region11: #{lstm_model_forward.1} parent=1 // pred_check_branch
      %30 = sbr.rel (0) target = $region13
    $region12: #{lstm_model_forward.1} parent=1 // pred_region
      %32 = vsyncadd [#allocation5], 0
      %s33 = sshll.u32 %s2, 4
      %s34 = int_to_ptr.hbm [resolvable:$true] %s33
      %s35 = sshll.u32 [#allocation4], 4
      %s36 = int_to_ptr.vmem [resolvable:$true] %s35
      %41 = dma.hbm_to_vmem [thread:$0]  %s34, 8192, %s36, [#allocation5], 512, 512, 32
    $region13: #{lstm_model_forward.1} parent=1 // pred_fallthru
      _
    // Predicated region
    $region14: #{lstm_model_forward.1} parent=1 // pred_check
      _
    $region15: #{lstm_model_forward.1} parent=1 // pred_check_branch
      %43 = sbr.rel (0) target = $region17
    $region16: #{lstm_model_forward.1} parent=1 // pred_region
      %45 = vsyncadd [#allocation5], 0
      %s46 = sshll.u32 %s3, 4
      %s47 = int_to_ptr.hbm [resolvable:$true] %s46
      %s48 = sshll.u32 [#allocation6], 4
      %s49 = int_to_ptr.vmem [resolvable:$true] %s48
      %54 = dma.hbm_to_vmem [thread:$0]  %s47, 8192, %s49, [#allocation5], 512, 512, 32
    $region17: #{lstm_model_forward.1} parent=1 // pred_fallthru
      _
    // Predicated region
    $region18: #{lstm_model_forward.1} parent=1 // pred_check
      _
    $region19: #{lstm_model_forward.1} parent=1 // pred_check_branch
      %56 = sbr.rel (0) target = $region21
    $region20: #{lstm_model_forward.1} parent=1 // pred_region
      _
    $region21: #{lstm_model_forward.1} parent=1 // pred_fallthru
      _
    // Predicated region
    $region22: #{lstm_model_forward.1} parent=1 // pred_check
      _
    $region23: #{lstm_model_forward.1} parent=1 // pred_check_branch
      %58 = sbr.rel (0) target = $region25
    $region24: #{lstm_model_forward.1} parent=1 // pred_region
      _
    $region25: #{lstm_model_forward.1} parent=1 // pred_fallthru
      _
    // Predicated region
    $region26: #{lstm_model_forward.1} parent=1 // pred_check
      _
    $region27: #{lstm_model_forward.1} parent=1 // pred_check_branch
      %60 = sbr.rel (0) target = $region29
    $region28: #{lstm_model_forward.1} parent=1 // pred_region
      _
    $region29: #{lstm_model_forward.1} parent=1 // pred_fallthru
      _
    // Predicated region
    $region30: #{lstm_model_forward.1} parent=1 // pred_check
      _
    $region31: #{lstm_model_forward.1} parent=1 // pred_check_branch
      %62 = sbr.rel (0) target = $region33
    $region32: #{lstm_model_forward.1} parent=1 // pred_region
      %64 = dma.done [#allocation3], 8192
    $region33: #{lstm_model_forward.1} parent=1 // pred_fallthru
      _
    // Predicated region
    $region34: #{lstm_model_forward.1} parent=1 // pred_check
      _
    $region35: #{lstm_model_forward.1} parent=1 // pred_check_branch
      %66 = sbr.rel (0) target = $region37
    $region36: #{lstm_model_forward.1} parent=1 // pred_region
      %68 = dma.done [#allocation5], 8192
    $region37: #{lstm_model_forward.1} parent=1 // pred_fallthru
      _
    // Predicated region
    $region38: #{lstm_model_forward.1} parent=1 // pred_check
      _
    $region39: #{lstm_model_forward.1} parent=1 // pred_check_branch
      %70 = sbr.rel (0) target = $region41
    $region40: #{lstm_model_forward.1} parent=1 // pred_region
      %72 = dma.done [#allocation5], 8192
    $region41: #{lstm_model_forward.1} parent=1 // pred_fallthru
      _
    %v73 = vld [vmem:[#allocation2] sm:$0xff]
    %v74 = vld [vmem:[#allocation2 + $0x8] sm:$0xff]
    %v75 = vld [vmem:[#allocation2 + $0x10] sm:$0xff]
    %v76 = vld [vmem:[#allocation2 + $0x18] sm:$0xff]
    %v77 = vld [vmem:[#allocation2 + $0x20] sm:$0xff]
    %v78 = vld [vmem:[#allocation2 + $0x28] sm:$0xff]
    %v79 = vld [vmem:[#allocation2 + $0x30] sm:$0xff]
    %v80 = vld [vmem:[#allocation2 + $0x38] sm:$0xff]
    %v81 = vld [vmem:[#allocation2 + $0x40] sm:$0xff]
    %v82 = vld [vmem:[#allocation2 + $0x48] sm:$0xff]
    %v83 = vld [vmem:[#allocation2 + $0x50] sm:$0xff]
    %v84 = vld [vmem:[#allocation2 + $0x58] sm:$0xff]
    %v85 = vld [vmem:[#allocation2 + $0x60] sm:$0xff]
    %v86 = vld [vmem:[#allocation2 + $0x68] sm:$0xff]
    %v87 = vld [vmem:[#allocation2 + $0x70] sm:$0xff]
    %v88 = vld [vmem:[#allocation2 + $0x78] sm:$0xff]
    %v89 = vld [vmem:[#allocation2 + $0x80] sm:$0xff]
    %v90 = vld [vmem:[#allocation2 + $0x88] sm:$0xff]
    %v91 = vld [vmem:[#allocation2 + $0x90] sm:$0xff]
    %v92 = vld [vmem:[#allocation2 + $0x98] sm:$0xff]
    %v93 = vld [vmem:[#allocation2 + $0xa0] sm:$0xff]
    %v94 = vld [vmem:[#allocation2 + $0xa8] sm:$0xff]
    %v95 = vld [vmem:[#allocation2 + $0xb0] sm:$0xff]
    %v96 = vld [vmem:[#allocation2 + $0xb8] sm:$0xff]
    %v97 = vld [vmem:[#allocation2 + $0xc0] sm:$0xff]
    %v98 = vld [vmem:[#allocation2 + $0xc8] sm:$0xff]
    %v99 = vld [vmem:[#allocation2 + $0xd0] sm:$0xff]
    %v100 = vld [vmem:[#allocation2 + $0xd8] sm:$0xff]
    %v101 = vld [vmem:[#allocation2 + $0xe0] sm:$0xff]
    %v102 = vld [vmem:[#allocation2 + $0xe8] sm:$0xff]
    %v103 = vld [vmem:[#allocation2 + $0xf0] sm:$0xff]
    %v104 = vld [vmem:[#allocation2 + $0xf8] sm:$0xff]
    %v105 = vld [vmem:[#allocation2 + $0x100] sm:$0xff]
    %v106 = vld [vmem:[#allocation2 + $0x108] sm:$0xff]
    %v107 = vld [vmem:[#allocation2 + $0x110] sm:$0xff]
    %v108 = vld [vmem:[#allocation2 + $0x118] sm:$0xff]
    %v109 = vld [vmem:[#allocation2 + $0x120] sm:$0xff]
    %v110 = vld [vmem:[#allocation2 + $0x128] sm:$0xff]
    %v111 = vld [vmem:[#allocation2 + $0x130] sm:$0xff]
    %v112 = vld [vmem:[#allocation2 + $0x138] sm:$0xff]
    %v113 = vld [vmem:[#allocation2 + $0x140] sm:$0xff]
    %v114 = vld [vmem:[#allocation2 + $0x148] sm:$0xff]
    %v115 = vld [vmem:[#allocation2 + $0x150] sm:$0xff]
    %v116 = vld [vmem:[#allocation2 + $0x158] sm:$0xff]
    %v117 = vld [vmem:[#allocation2 + $0x160] sm:$0xff]
    %v118 = vld [vmem:[#allocation2 + $0x168] sm:$0xff]
    %v119 = vld [vmem:[#allocation2 + $0x170] sm:$0xff]
    %v120 = vld [vmem:[#allocation2 + $0x178] sm:$0xff]
    %v121 = vld [vmem:[#allocation2 + $0x180] sm:$0xff]
    %v122 = vld [vmem:[#allocation2 + $0x188] sm:$0xff]
    %v123 = vld [vmem:[#allocation2 + $0x190] sm:$0xff]
    %v124 = vld [vmem:[#allocation2 + $0x198] sm:$0xff]
    %v125 = vld [vmem:[#allocation2 + $0x1a0] sm:$0xff]
    %v126 = vld [vmem:[#allocation2 + $0x1a8] sm:$0xff]
    %v127 = vld [vmem:[#allocation2 + $0x1b0] sm:$0xff]
    %v128 = vld [vmem:[#allocation2 + $0x1b8] sm:$0xff]
    %v129 = vld [vmem:[#allocation2 + $0x1c0] sm:$0xff]
    %v130 = vld [vmem:[#allocation2 + $0x1c8] sm:$0xff]
    %v131 = vld [vmem:[#allocation2 + $0x1d0] sm:$0xff]
    %v132 = vld [vmem:[#allocation2 + $0x1d8] sm:$0xff]
    %v133 = vld [vmem:[#allocation2 + $0x1e0] sm:$0xff]
    %v134 = vld [vmem:[#allocation2 + $0x1e8] sm:$0xff]
    %v135 = vld [vmem:[#allocation2 + $0x1f0] sm:$0xff]
    %v136 = vld [vmem:[#allocation2 + $0x1f8] sm:$0xff]
    %v137 = vld [vmem:[#allocation4] sm:$0xff]
    %v138 = vld [vmem:[#allocation4 + $0x8] sm:$0xff]
    %v139 = vld [vmem:[#allocation4 + $0x10] sm:$0xff]
    %v140 = vld [vmem:[#allocation4 + $0x18] sm:$0xff]
    %v141 = vld [vmem:[#allocation4 + $0x20] sm:$0xff]
    %v142 = vld [vmem:[#allocation4 + $0x28] sm:$0xff]
    %v143 = vld [vmem:[#allocation4 + $0x30] sm:$0xff]
    %v144 = vld [vmem:[#allocation4 + $0x38] sm:$0xff]
    %v145 = vld [vmem:[#allocation4 + $0x40] sm:$0xff]
    %v146 = vld [vmem:[#allocation4 + $0x48] sm:$0xff]
    %v147 = vld [vmem:[#allocation4 + $0x50] sm:$0xff]
    %v148 = vld [vmem:[#allocation4 + $0x58] sm:$0xff]
    %v149 = vld [vmem:[#allocation4 + $0x60] sm:$0xff]
    %v150 = vld [vmem:[#allocation4 + $0x68] sm:$0xff]
    %v151 = vld [vmem:[#allocation4 + $0x70] sm:$0xff]
    %v152 = vld [vmem:[#allocation4 + $0x78] sm:$0xff]
    %v153 = vld [vmem:[#allocation4 + $0x80] sm:$0xff]
    %v154 = vld [vmem:[#allocation4 + $0x88] sm:$0xff]
    %v155 = vld [vmem:[#allocation4 + $0x90] sm:$0xff]
    %v156 = vld [vmem:[#allocation4 + $0x98] sm:$0xff]
    %v157 = vld [vmem:[#allocation4 + $0xa0] sm:$0xff]
    %v158 = vld [vmem:[#allocation4 + $0xa8] sm:$0xff]
    %v159 = vld [vmem:[#allocation4 + $0xb0] sm:$0xff]
    %v160 = vld [vmem:[#allocation4 + $0xb8] sm:$0xff]
    %v161 = vld [vmem:[#allocation4 + $0xc0] sm:$0xff]
    %v162 = vld [vmem:[#allocation4 + $0xc8] sm:$0xff]
    %v163 = vld [vmem:[#allocation4 + $0xd0] sm:$0xff]
    %v164 = vld [vmem:[#allocation4 + $0xd8] sm:$0xff]
    %v165 = vld [vmem:[#allocation4 + $0xe0] sm:$0xff]
    %v166 = vld [vmem:[#allocation4 + $0xe8] sm:$0xff]
    %v167 = vld [vmem:[#allocation4 + $0xf0] sm:$0xff]
    %v168 = vld [vmem:[#allocation4 + $0xf8] sm:$0xff]
    %v169 = vld [vmem:[#allocation4 + $0x100] sm:$0xff]
    %v170 = vld [vmem:[#allocation4 + $0x108] sm:$0xff]
    %v171 = vld [vmem:[#allocation4 + $0x110] sm:$0xff]
    %v172 = vld [vmem:[#allocation4 + $0x118] sm:$0xff]
    %v173 = vld [vmem:[#allocation4 + $0x120] sm:$0xff]
    %v174 = vld [vmem:[#allocation4 + $0x128] sm:$0xff]
    %v175 = vld [vmem:[#allocation4 + $0x130] sm:$0xff]
    %v176 = vld [vmem:[#allocation4 + $0x138] sm:$0xff]
    %v177 = vld [vmem:[#allocation4 + $0x140] sm:$0xff]
    %v178 = vld [vmem:[#allocation4 + $0x148] sm:$0xff]
    %v179 = vld [vmem:[#allocation4 + $0x150] sm:$0xff]
    %v180 = vld [vmem:[#allocation4 + $0x158] sm:$0xff]
    %v181 = vld [vmem:[#allocation4 + $0x160] sm:$0xff]
    %v182 = vld [vmem:[#allocation4 + $0x168] sm:$0xff]
    %v183 = vld [vmem:[#allocation4 + $0x170] sm:$0xff]
    %v184 = vld [vmem:[#allocation4 + $0x178] sm:$0xff]
    %v185 = vld [vmem:[#allocation4 + $0x180] sm:$0xff]
    %v186 = vld [vmem:[#allocation4 + $0x188] sm:$0xff]
    %v187 = vld [vmem:[#allocation4 + $0x190] sm:$0xff]
    %v188 = vld [vmem:[#allocation4 + $0x198] sm:$0xff]
    %v189 = vld [vmem:[#allocation4 + $0x1a0] sm:$0xff]
    %v190 = vld [vmem:[#allocation4 + $0x1a8] sm:$0xff]
    %v191 = vld [vmem:[#allocation4 + $0x1b0] sm:$0xff]
    %v192 = vld [vmem:[#allocation4 + $0x1b8] sm:$0xff]
    %v193 = vld [vmem:[#allocation4 + $0x1c0] sm:$0xff]
    %v194 = vld [vmem:[#allocation4 + $0x1c8] sm:$0xff]
    %v195 = vld [vmem:[#allocation4 + $0x1d0] sm:$0xff]
    %v196 = vld [vmem:[#allocation4 + $0x1d8] sm:$0xff]
    %v197 = vld [vmem:[#allocation4 + $0x1e0] sm:$0xff]
    %v198 = vld [vmem:[#allocation4 + $0x1e8] sm:$0xff]
    %v199 = vld [vmem:[#allocation4 + $0x1f0] sm:$0xff]
    %v200 = vld [vmem:[#allocation4 + $0x1f8] sm:$0xff]
    %v201 = vld [vmem:[#allocation6] sm:$0xff]
    %v202 = vld [vmem:[#allocation6 + $0x8] sm:$0xff]
    %v203 = vld [vmem:[#allocation6 + $0x10] sm:$0xff]
    %v204 = vld [vmem:[#allocation6 + $0x18] sm:$0xff]
    %v205 = vld [vmem:[#allocation6 + $0x20] sm:$0xff]
    %v206 = vld [vmem:[#allocation6 + $0x28] sm:$0xff]
    %v207 = vld [vmem:[#allocation6 + $0x30] sm:$0xff]
    %v208 = vld [vmem:[#allocation6 + $0x38] sm:$0xff]
    %v209 = vld [vmem:[#allocation6 + $0x40] sm:$0xff]
    %v210 = vld [vmem:[#allocation6 + $0x48] sm:$0xff]
    %v211 = vld [vmem:[#allocation6 + $0x50] sm:$0xff]
    %v212 = vld [vmem:[#allocation6 + $0x58] sm:$0xff]
    %v213 = vld [vmem:[#allocation6 + $0x60] sm:$0xff]
    %v214 = vld [vmem:[#allocation6 + $0x68] sm:$0xff]
    %v215 = vld [vmem:[#allocation6 + $0x70] sm:$0xff]
    %v216 = vld [vmem:[#allocation6 + $0x78] sm:$0xff]
    %v217 = vld [vmem:[#allocation6 + $0x80] sm:$0xff]
    %v218 = vld [vmem:[#allocation6 + $0x88] sm:$0xff]
    %v219 = vld [vmem:[#allocation6 + $0x90] sm:$0xff]
    %v220 = vld [vmem:[#allocation6 + $0x98] sm:$0xff]
    %v221 = vld [vmem:[#allocation6 + $0xa0] sm:$0xff]
    %v222 = vld [vmem:[#allocation6 + $0xa8] sm:$0xff]
    %v223 = vld [vmem:[#allocation6 + $0xb0] sm:$0xff]
    %v224 = vld [vmem:[#allocation6 + $0xb8] sm:$0xff]
    %v225 = vld [vmem:[#allocation6 + $0xc0] sm:$0xff]
    %v226 = vld [vmem:[#allocation6 + $0xc8] sm:$0xff]
    %v227 = vld [vmem:[#allocation6 + $0xd0] sm:$0xff]
    %v228 = vld [vmem:[#allocation6 + $0xd8] sm:$0xff]
    %v229 = vld [vmem:[#allocation6 + $0xe0] sm:$0xff]
    %v230 = vld [vmem:[#allocation6 + $0xe8] sm:$0xff]
    %v231 = vld [vmem:[#allocation6 + $0xf0] sm:$0xff]
    %v232 = vld [vmem:[#allocation6 + $0xf8] sm:$0xff]
    %v233 = vld [vmem:[#allocation6 + $0x100] sm:$0xff]
    %v234 = vld [vmem:[#allocation6 + $0x108] sm:$0xff]
    %v235 = vld [vmem:[#allocation6 + $0x110] sm:$0xff]
    %v236 = vld [vmem:[#allocation6 + $0x118] sm:$0xff]
    %v237 = vld [vmem:[#allocation6 + $0x120] sm:$0xff]
    %v238 = vld [vmem:[#allocation6 + $0x128] sm:$0xff]
    %v239 = vld [vmem:[#allocation6 + $0x130] sm:$0xff]
    %v240 = vld [vmem:[#allocation6 + $0x138] sm:$0xff]
    %v241 = vld [vmem:[#allocation6 + $0x140] sm:$0xff]
    %v242 = vld [vmem:[#allocation6 + $0x148] sm:$0xff]
    %v243 = vld [vmem:[#allocation6 + $0x150] sm:$0xff]
    %v244 = vld [vmem:[#allocation6 + $0x158] sm:$0xff]
    %v245 = vld [vmem:[#allocation6 + $0x160] sm:$0xff]
    %v246 = vld [vmem:[#allocation6 + $0x168] sm:$0xff]
    %v247 = vld [vmem:[#allocation6 + $0x170] sm:$0xff]
    %v248 = vld [vmem:[#allocation6 + $0x178] sm:$0xff]
    %v249 = vld [vmem:[#allocation6 + $0x180] sm:$0xff]
    %v250 = vld [vmem:[#allocation6 + $0x188] sm:$0xff]
    %v251 = vld [vmem:[#allocation6 + $0x190] sm:$0xff]
    %v252 = vld [vmem:[#allocation6 + $0x198] sm:$0xff]
    %v253 = vld [vmem:[#allocation6 + $0x1a0] sm:$0xff]
    %v254 = vld [vmem:[#allocation6 + $0x1a8] sm:$0xff]
    %v255 = vld [vmem:[#allocation6 + $0x1b0] sm:$0xff]
    %v256 = vld [vmem:[#allocation6 + $0x1b8] sm:$0xff]
    %v257 = vld [vmem:[#allocation6 + $0x1c0] sm:$0xff]
    %v258 = vld [vmem:[#allocation6 + $0x1c8] sm:$0xff]
    %v259 = vld [vmem:[#allocation6 + $0x1d0] sm:$0xff]
    %v260 = vld [vmem:[#allocation6 + $0x1d8] sm:$0xff]
    %v261 = vld [vmem:[#allocation6 + $0x1e0] sm:$0xff]
    %v262 = vld [vmem:[#allocation6 + $0x1e8] sm:$0xff]
    %v263 = vld [vmem:[#allocation6 + $0x1f0] sm:$0xff]
    %v264 = vld [vmem:[#allocation6 + $0x1f8] sm:$0xff]
    %v265 = vld [vmem:[%s4] sm:$0xff]
    %v266 = vld [vmem:[%s4 + $0x8] sm:$0xff]
    %v267 = vld [vmem:[%s4 + $0x10] sm:$0xff]
    %v268 = vld [vmem:[%s4 + $0x18] sm:$0xff]
    %v269 = vld [vmem:[%s0] sm:$0xff]
    %v270 = vld [vmem:[%s0 + $0x8] sm:$0xff]
    %v271 = vld [vmem:[%s0 + $0x10] sm:$0xff]
    %v272 = vld [vmem:[%s0 + $0x18] sm:$0xff]
    %273 = vmatpush.msra.mxu0 %v133
    %274 = vmatpush.msra.mxu0 %v129
    %275 = vmatpush.msra.mxu0 %v125
    %276 = vmatpush.msra.mxu0 %v121
    %277 = vmatpush.msra.mxu0 %v117
    %278 = vmatpush.msra.mxu0 %v113
    %279 = vmatpush.msra.mxu0 %v109
    %280 = vmatpush.msra.mxu0 %v105
    %281 = vmatpush.msra.mxu0 %v101
    %282 = vmatpush.msra.mxu0 %v97
    %283 = vmatpush.msra.mxu0 %v93
    %284 = vmatpush.msra.mxu0 %v89
    %285 = vmatpush.msra.mxu0 %v85
    %286 = vmatpush.msra.mxu0 %v81
    %287 = vmatpush.msra.mxu0 %v77
    %288 = vmatpush.msra.mxu0 %v73
    %289 = vmatmul.f32.gmra.mxu0 0.0
    %v290 = vpop.f32.mrf.mxu0
    %v291 = vadd.f32 0.0, %v290
    %292 = vdwg.mxu0
    %293 = vmatpush.msra.mxu0 %v134
    %294 = vmatpush.msra.mxu0 %v130
    %295 = vmatpush.msra.mxu0 %v126
    %296 = vmatpush.msra.mxu0 %v122
    %297 = vmatpush.msra.mxu0 %v118
    %298 = vmatpush.msra.mxu0 %v114
    %299 = vmatpush.msra.mxu0 %v110
    %300 = vmatpush.msra.mxu0 %v106
    %301 = vmatpush.msra.mxu0 %v102
    %302 = vmatpush.msra.mxu0 %v98
    %303 = vmatpush.msra.mxu0 %v94
    %304 = vmatpush.msra.mxu0 %v90
    %305 = vmatpush.msra.mxu0 %v86
    %306 = vmatpush.msra.mxu0 %v82
    %307 = vmatpush.msra.mxu0 %v78
    %308 = vmatpush.msra.mxu0 %v74
    %309 = vmatmul.f32.gmra.mxu0 0.0
    %v310 = vpop.f32.mrf.mxu0
    %v311 = vadd.f32 0.0, %v310
    %312 = vdwg.mxu0
    %313 = vmatpush.msra.mxu0 %v135
    %314 = vmatpush.msra.mxu0 %v131
    %315 = vmatpush.msra.mxu0 %v127
    %316 = vmatpush.msra.mxu0 %v123
    %317 = vmatpush.msra.mxu0 %v119
    %318 = vmatpush.msra.mxu0 %v115
    %319 = vmatpush.msra.mxu0 %v111
    %320 = vmatpush.msra.mxu0 %v107
    %321 = vmatpush.msra.mxu0 %v103
    %322 = vmatpush.msra.mxu0 %v99
    %323 = vmatpush.msra.mxu0 %v95
    %324 = vmatpush.msra.mxu0 %v91
    %325 = vmatpush.msra.mxu0 %v87
    %326 = vmatpush.msra.mxu0 %v83
    %327 = vmatpush.msra.mxu0 %v79
    %328 = vmatpush.msra.mxu0 %v75
    %329 = vmatmul.f32.gmra.mxu0 0.0
    %v330 = vpop.f32.mrf.mxu0
    %v331 = vadd.f32 0.0, %v330
    %332 = vdwg.mxu0
    %333 = vmatpush.msra.mxu0 %v136
    %334 = vmatpush.msra.mxu0 %v132
    %335 = vmatpush.msra.mxu0 %v128
    %336 = vmatpush.msra.mxu0 %v124
    %337 = vmatpush.msra.mxu0 %v120
    %338 = vmatpush.msra.mxu0 %v116
    %339 = vmatpush.msra.mxu0 %v112
    %340 = vmatpush.msra.mxu0 %v108
    %341 = vmatpush.msra.mxu0 %v104
    %342 = vmatpush.msra.mxu0 %v100
    %343 = vmatpush.msra.mxu0 %v96
    %344 = vmatpush.msra.mxu0 %v92
    %345 = vmatpush.msra.mxu0 %v88
    %346 = vmatpush.msra.mxu0 %v84
    %347 = vmatpush.msra.mxu0 %v80
    %348 = vmatpush.msra.mxu0 %v76
    %349 = vmatmul.f32.gmra.mxu0 0.0
    %v350 = vpop.f32.mrf.mxu0
    %v351 = vadd.f32 0.0, %v350
    %352 = vdwg.mxu0
    %v353 = vadd.f32 %v269, %v291
    %v354 = vadd.f32 %v270, %v311
    %v355 = vadd.f32 %v271, %v331
    %v356 = vadd.f32 %v272, %v351
    %v357 = vxor.u32 %v353, 2147483648
    %v358 = vmul.f32 %v357, 1.442695
    %v359 = vpow.pop %v358
    %v360 = vadd.f32 %v359, 1.0
    %v361 = vrcp.pop %v360
    %v362 = vmul.f32 %v360, %v361
    %v363 = vsub.f32 1.0, %v362
    %v364 = vmul.f32 %v361, %v363
    %v365 = vadd.f32 %v361, %v364
    %vm366 = vweird.f32 %v360
    %vm367 = vweird.f32 %v361
    %vm368 = vmor %vm366, %vm367
    %v369 = vsel %vm368, %v361, %v365
    %v370 = vand.u32 2147483647, %v360
    %vm371 = vcmp.eq.f32.partialorder %v370, 8.507059e+37
    %v372 = vand.u32 %v360, 2147483648
    %v373 = vor.u32 1.1754944e-38, %v372
    %v374 = vsel %vm371, %v373, %v369
    %v375 = vmul.f32 1.0, %v374
    %v376 = vxor.u32 %v354, 2147483648
    %v377 = vmul.f32 %v376, 1.442695
    %v378 = vpow.pop %v377
    %v379 = vadd.f32 %v378, 1.0
    %v380 = vrcp.pop %v379
    %v381 = vmul.f32 %v379, %v380
    %v382 = vsub.f32 1.0, %v381
    %v383 = vmul.f32 %v380, %v382
    %v384 = vadd.f32 %v380, %v383
    %vm385 = vweird.f32 %v379
    %vm386 = vweird.f32 %v380
    %vm387 = vmor %vm385, %vm386
    %v388 = vsel %vm387, %v380, %v384
    %v389 = vand.u32 2147483647, %v379
    %vm390 = vcmp.eq.f32.partialorder %v389, 8.507059e+37
    %v391 = vand.u32 %v379, 2147483648
    %v392 = vor.u32 1.1754944e-38, %v391
    %v393 = vsel %vm390, %v392, %v388
    %v394 = vmul.f32 1.0, %v393
    %v395 = vtanh.pop %v355
    %v396 = vxor.u32 %v356, 2147483648
    %v397 = vmul.f32 %v396, 1.442695
    %v398 = vpow.pop %v397
    %v399 = vadd.f32 %v398, 1.0
    %v400 = vrcp.pop %v399
    %v401 = vmul.f32 %v399, %v400
    %v402 = vsub.f32 1.0, %v401
    %v403 = vmul.f32 %v400, %v402
    %v404 = vadd.f32 %v400, %v403
    %vm405 = vweird.f32 %v399
    %vm406 = vweird.f32 %v400
    %vm407 = vmor %vm405, %vm406
    %v408 = vsel %vm407, %v400, %v404
    %v409 = vand.u32 2147483647, %v399
    %vm410 = vcmp.eq.f32.partialorder %v409, 8.507059e+37
    %v411 = vand.u32 %v399, 2147483648
    %v412 = vor.u32 1.1754944e-38, %v411
    %v413 = vsel %vm410, %v412, %v408
    %v414 = vmul.f32 1.0, %v413
    %v415 = vmul.f32 %v394, 0.0
    %v416 = vmul.f32 %v375, %v395
    %v417 = vadd.f32 %v415, %v416
    %v418 = vtanh.pop %v417
    %v419 = vmul.f32 %v414, %v418
    %420 = vmatpush.msra.mxu0 %v261
    %421 = vmatpush.msra.mxu0 %v257
    %422 = vmatpush.msra.mxu0 %v253
    %423 = vmatpush.msra.mxu0 %v249
    %424 = vmatpush.msra.mxu0 %v245
    %425 = vmatpush.msra.mxu0 %v241
    %426 = vmatpush.msra.mxu0 %v237
    %427 = vmatpush.msra.mxu0 %v233
    %428 = vmatpush.msra.mxu0 %v229
    %429 = vmatpush.msra.mxu0 %v225
    %430 = vmatpush.msra.mxu0 %v221
    %431 = vmatpush.msra.mxu0 %v217
    %432 = vmatpush.msra.mxu0 %v213
    %433 = vmatpush.msra.mxu0 %v209
    %434 = vmatpush.msra.mxu0 %v205
    %435 = vmatpush.msra.mxu0 %v201
    %436 = vmatmul.f32.gmra.mxu0 0.0
    %v437 = vpop.f32.mrf.mxu0
    %v438 = vadd.f32 0.0, %v437
    %439 = vdwg.mxu0
    %440 = vmatpush.msra.mxu0 %v262
    %441 = vmatpush.msra.mxu0 %v258
    %442 = vmatpush.msra.mxu0 %v254
    %443 = vmatpush.msra.mxu0 %v250
    %444 = vmatpush.msra.mxu0 %v246
    %445 = vmatpush.msra.mxu0 %v242
    %446 = vmatpush.msra.mxu0 %v238
    %447 = vmatpush.msra.mxu0 %v234
    %448 = vmatpush.msra.mxu0 %v230
    %449 = vmatpush.msra.mxu0 %v226
    %450 = vmatpush.msra.mxu0 %v222
    %451 = vmatpush.msra.mxu0 %v218
    %452 = vmatpush.msra.mxu0 %v214
    %453 = vmatpush.msra.mxu0 %v210
    %454 = vmatpush.msra.mxu0 %v206
    %455 = vmatpush.msra.mxu0 %v202
    %456 = vmatmul.f32.gmra.mxu0 0.0
    %v457 = vpop.f32.mrf.mxu0
    %v458 = vadd.f32 0.0, %v457
    %459 = vdwg.mxu0
    %460 = vmatpush.msra.mxu0 %v263
    %461 = vmatpush.msra.mxu0 %v259
    %462 = vmatpush.msra.mxu0 %v255
    %463 = vmatpush.msra.mxu0 %v251
    %464 = vmatpush.msra.mxu0 %v247
    %465 = vmatpush.msra.mxu0 %v243
    %466 = vmatpush.msra.mxu0 %v239
    %467 = vmatpush.msra.mxu0 %v235
    %468 = vmatpush.msra.mxu0 %v231
    %469 = vmatpush.msra.mxu0 %v227
    %470 = vmatpush.msra.mxu0 %v223
    %471 = vmatpush.msra.mxu0 %v219
    %472 = vmatpush.msra.mxu0 %v215
    %473 = vmatpush.msra.mxu0 %v211
    %474 = vmatpush.msra.mxu0 %v207
    %475 = vmatpush.msra.mxu0 %v203
    %476 = vmatmul.f32.gmra.mxu0 0.0
    %v477 = vpop.f32.mrf.mxu0
    %v478 = vadd.f32 0.0, %v477
    %479 = vdwg.mxu0
    %480 = vmatpush.msra.mxu0 %v264
    %481 = vmatpush.msra.mxu0 %v260
    %482 = vmatpush.msra.mxu0 %v256
    %483 = vmatpush.msra.mxu0 %v252
    %484 = vmatpush.msra.mxu0 %v248
    %485 = vmatpush.msra.mxu0 %v244
    %486 = vmatpush.msra.mxu0 %v240
    %487 = vmatpush.msra.mxu0 %v236
    %488 = vmatpush.msra.mxu0 %v232
    %489 = vmatpush.msra.mxu0 %v228
    %490 = vmatpush.msra.mxu0 %v224
    %491 = vmatpush.msra.mxu0 %v220
    %492 = vmatpush.msra.mxu0 %v216
    %493 = vmatpush.msra.mxu0 %v212
    %494 = vmatpush.msra.mxu0 %v208
    %495 = vmatpush.msra.mxu0 %v204
    %496 = vmatmul.f32.gmra.mxu0 0.0
    %v497 = vpop.f32.mrf.mxu0
    %v498 = vadd.f32 0.0, %v497
    %499 = vdwg.mxu0
    %500 = vmatpush.msra.mxu0 %v197
    %501 = vmatpush.msra.mxu0 %v193
    %502 = vmatpush.msra.mxu0 %v189
    %503 = vmatpush.msra.mxu0 %v185
    %504 = vmatpush.msra.mxu0 %v181
    %505 = vmatpush.msra.mxu0 %v177
    %506 = vmatpush.msra.mxu0 %v173
    %507 = vmatpush.msra.mxu0 %v169
    %508 = vmatpush.msra.mxu0 %v165
    %509 = vmatpush.msra.mxu0 %v161
    %510 = vmatpush.msra.mxu0 %v157
    %511 = vmatpush.msra.mxu0 %v153
    %512 = vmatpush.msra.mxu0 %v149
    %513 = vmatpush.msra.mxu0 %v145
    %514 = vmatpush.msra.mxu0 %v141
    %515 = vmatpush.msra.mxu0 %v137
    %516 = vmatmul.f32.gmra.mxu0 %v419
    %v517 = vpop.f32.mrf.mxu0
    %v518 = vadd.f32 %v438, %v517
    %519 = vdwg.mxu0
    %520 = vmatpush.msra.mxu0 %v198
    %521 = vmatpush.msra.mxu0 %v194
    %522 = vmatpush.msra.mxu0 %v190
    %523 = vmatpush.msra.mxu0 %v186
    %524 = vmatpush.msra.mxu0 %v182
    %525 = vmatpush.msra.mxu0 %v178
    %526 = vmatpush.msra.mxu0 %v174
    %527 = vmatpush.msra.mxu0 %v170
    %528 = vmatpush.msra.mxu0 %v166
    %529 = vmatpush.msra.mxu0 %v162
    %530 = vmatpush.msra.mxu0 %v158
    %531 = vmatpush.msra.mxu0 %v154
    %532 = vmatpush.msra.mxu0 %v150
    %533 = vmatpush.msra.mxu0 %v146
    %534 = vmatpush.msra.mxu0 %v142
    %535 = vmatpush.msra.mxu0 %v138
    %536 = vmatmul.f32.gmra.mxu0 %v419
    %v537 = vpop.f32.mrf.mxu0
    %v538 = vadd.f32 %v458, %v537
    %539 = vdwg.mxu0
    %540 = vmatpush.msra.mxu0 %v199
    %541 = vmatpush.msra.mxu0 %v195
    %542 = vmatpush.msra.mxu0 %v191
    %543 = vmatpush.msra.mxu0 %v187
    %544 = vmatpush.msra.mxu0 %v183
    %545 = vmatpush.msra.mxu0 %v179
    %546 = vmatpush.msra.mxu0 %v175
    %547 = vmatpush.msra.mxu0 %v171
    %548 = vmatpush.msra.mxu0 %v167
    %549 = vmatpush.msra.mxu0 %v163
    %550 = vmatpush.msra.mxu0 %v159
    %551 = vmatpush.msra.mxu0 %v155
    %552 = vmatpush.msra.mxu0 %v151
    %553 = vmatpush.msra.mxu0 %v147
    %554 = vmatpush.msra.mxu0 %v143
    %555 = vmatpush.msra.mxu0 %v139
    %556 = vmatmul.f32.gmra.mxu0 %v419
    %v557 = vpop.f32.mrf.mxu0
    %v558 = vadd.f32 %v478, %v557
    %559 = vdwg.mxu0
    %560 = vmatpush.msra.mxu0 %v200
    %561 = vmatpush.msra.mxu0 %v196
    %562 = vmatpush.msra.mxu0 %v192
    %563 = vmatpush.msra.mxu0 %v188
    %564 = vmatpush.msra.mxu0 %v184
    %565 = vmatpush.msra.mxu0 %v180
    %566 = vmatpush.msra.mxu0 %v176
    %567 = vmatpush.msra.mxu0 %v172
    %568 = vmatpush.msra.mxu0 %v168
    %569 = vmatpush.msra.mxu0 %v164
    %570 = vmatpush.msra.mxu0 %v160
    %571 = vmatpush.msra.mxu0 %v156
    %572 = vmatpush.msra.mxu0 %v152
    %573 = vmatpush.msra.mxu0 %v148
    %574 = vmatpush.msra.mxu0 %v144
    %575 = vmatpush.msra.mxu0 %v140
    %576 = vmatmul.f32.gmra.mxu0 %v419
    %v577 = vpop.f32.mrf.mxu0
    %v578 = vadd.f32 %v498, %v577
    %579 = vdwg.mxu0
    %v580 = vadd.f32 %v518, %v265
    %v581 = vadd.f32 %v538, %v266
    %v582 = vadd.f32 %v558, %v267
    %v583 = vadd.f32 %v578, %v268
    %v584 = vxor.u32 %v580, 2147483648
    %v585 = vmul.f32 %v584, 1.442695
    %v586 = vpow.pop %v585
    %v587 = vadd.f32 %v586, 1.0
    %v588 = vrcp.pop %v587
    %v589 = vmul.f32 %v587, %v588
    %v590 = vsub.f32 1.0, %v589
    %v591 = vmul.f32 %v588, %v590
    %v592 = vadd.f32 %v588, %v591
    %vm593 = vweird.f32 %v587
    %vm594 = vweird.f32 %v588
    %vm595 = vmor %vm593, %vm594
    %v596 = vsel %vm595, %v588, %v592
    %v597 = vand.u32 2147483647, %v587
    %vm598 = vcmp.eq.f32.partialorder %v597, 8.507059e+37
    %v599 = vand.u32 %v587, 2147483648
    %v600 = vor.u32 1.1754944e-38, %v599
    %v601 = vsel %vm598, %v600, %v596
    %v602 = vmul.f32 1.0, %v601
    %v603 = vxor.u32 %v581, 2147483648
    %v604 = vmul.f32 %v603, 1.442695
    %v605 = vpow.pop %v604
    %v606 = vadd.f32 %v605, 1.0
    %v607 = vrcp.pop %v606
    %v608 = vmul.f32 %v606, %v607
    %v609 = vsub.f32 1.0, %v608
    %v610 = vmul.f32 %v607, %v609
    %v611 = vadd.f32 %v607, %v610
    %vm612 = vweird.f32 %v606
    %vm613 = vweird.f32 %v607
    %vm614 = vmor %vm612, %vm613
    %v615 = vsel %vm614, %v607, %v611
    %v616 = vand.u32 2147483647, %v606
    %vm617 = vcmp.eq.f32.partialorder %v616, 8.507059e+37
    %v618 = vand.u32 %v606, 2147483648
    %v619 = vor.u32 1.1754944e-38, %v618
    %v620 = vsel %vm617, %v619, %v615
    %v621 = vmul.f32 1.0, %v620
    %v622 = vtanh.pop %v582
    %v623 = vxor.u32 %v583, 2147483648
    %v624 = vmul.f32 %v623, 1.442695
    %v625 = vpow.pop %v624
    %v626 = vadd.f32 %v625, 1.0
    %v627 = vrcp.pop %v626
    %v628 = vmul.f32 %v626, %v627
    %v629 = vsub.f32 1.0, %v628
    %v630 = vmul.f32 %v627, %v629
    %v631 = vadd.f32 %v627, %v630
    %vm632 = vweird.f32 %v626
    %vm633 = vweird.f32 %v627
    %vm634 = vmor %vm632, %vm633
    %v635 = vsel %vm634, %v627, %v631
    %v636 = vand.u32 2147483647, %v626
    %vm637 = vcmp.eq.f32.partialorder %v636, 8.507059e+37
    %v638 = vand.u32 %v626, 2147483648
    %v639 = vor.u32 1.1754944e-38, %v638
    %v640 = vsel %vm637, %v639, %v635
    %v641 = vmul.f32 1.0, %v640
    %v642 = vmul.f32 %v621, 0.0
    %v643 = vmul.f32 %v602, %v622
    %v644 = vadd.f32 %v642, %v643
    %v645 = vtanh.pop %v644
    %v646 = vmul.f32 %v641, %v645
    %s647 = scalar_lea.vmem %s0, 32
    %v648 = vld [vmem:[%s647] sm:$0xff]
    %v649 = vld [vmem:[%s647 + $0x8] sm:$0xff]
    %v650 = vld [vmem:[%s647 + $0x10] sm:$0xff]
    %v651 = vld [vmem:[%s647 + $0x18] sm:$0xff]
    %652 = vmatpush.msra.mxu0 %v133
    %653 = vmatpush.msra.mxu0 %v129
    %654 = vmatpush.msra.mxu0 %v125
    %655 = vmatpush.msra.mxu0 %v121
    %656 = vmatpush.msra.mxu0 %v117
    %657 = vmatpush.msra.mxu0 %v113
    %658 = vmatpush.msra.mxu0 %v109
    %659 = vmatpush.msra.mxu0 %v105
    %660 = vmatpush.msra.mxu0 %v101
    %661 = vmatpush.msra.mxu0 %v97
    %662 = vmatpush.msra.mxu0 %v93
    %663 = vmatpush.msra.mxu0 %v89
    %664 = vmatpush.msra.mxu0 %v85
    %665 = vmatpush.msra.mxu0 %v81
    %666 = vmatpush.msra.mxu0 %v77
    %667 = vmatpush.msra.mxu0 %v73
    %668 = vmatmul.f32.gmra.mxu0 %v419
    %v669 = vpop.f32.mrf.mxu0
    %v670 = vadd.f32 0.0, %v669
    %671 = vdwg.mxu0
    %672 = vmatpush.msra.mxu0 %v134
    %673 = vmatpush.msra.mxu0 %v130
    %674 = vmatpush.msra.mxu0 %v126
    %675 = vmatpush.msra.mxu0 %v122
    %676 = vmatpush.msra.mxu0 %v118
    %677 = vmatpush.msra.mxu0 %v114
    %678 = vmatpush.msra.mxu0 %v110
    %679 = vmatpush.msra.mxu0 %v106
    %680 = vmatpush.msra.mxu0 %v102
    %681 = vmatpush.msra.mxu0 %v98
    %682 = vmatpush.msra.mxu0 %v94
    %683 = vmatpush.msra.mxu0 %v90
    %684 = vmatpush.msra.mxu0 %v86
    %685 = vmatpush.msra.mxu0 %v82
    %686 = vmatpush.msra.mxu0 %v78
    %687 = vmatpush.msra.mxu0 %v74
    %688 = vmatmul.f32.gmra.mxu0 %v419
    %v689 = vpop.f32.mrf.mxu0
    %v690 = vadd.f32 0.0, %v689
    %691 = vdwg.mxu0
    %692 = vmatpush.msra.mxu0 %v135
    %693 = vmatpush.msra.mxu0 %v131
    %694 = vmatpush.msra.mxu0 %v127
    %695 = vmatpush.msra.mxu0 %v123
    %696 = vmatpush.msra.mxu0 %v119
    %697 = vmatpush.msra.mxu0 %v115
    %698 = vmatpush.msra.mxu0 %v111
    %699 = vmatpush.msra.mxu0 %v107
    %700 = vmatpush.msra.mxu0 %v103
    %701 = vmatpush.msra.mxu0 %v99
    %702 = vmatpush.msra.mxu0 %v95
    %703 = vmatpush.msra.mxu0 %v91
    %704 = vmatpush.msra.mxu0 %v87
    %705 = vmatpush.msra.mxu0 %v83
    %706 = vmatpush.msra.mxu0 %v79
    %707 = vmatpush.msra.mxu0 %v75
    %708 = vmatmul.f32.gmra.mxu0 %v419
    %v709 = vpop.f32.mrf.mxu0
    %v710 = vadd.f32 0.0, %v709
    %711 = vdwg.mxu0
    %712 = vmatpush.msra.mxu0 %v136
    %713 = vmatpush.msra.mxu0 %v132
    %714 = vmatpush.msra.mxu0 %v128
    %715 = vmatpush.msra.mxu0 %v124
    %716 = vmatpush.msra.mxu0 %v120
    %717 = vmatpush.msra.mxu0 %v116
    %718 = vmatpush.msra.mxu0 %v112
    %719 = vmatpush.msra.mxu0 %v108
    %720 = vmatpush.msra.mxu0 %v104
    %721 = vmatpush.msra.mxu0 %v100
    %722 = vmatpush.msra.mxu0 %v96
    %723 = vmatpush.msra.mxu0 %v92
    %724 = vmatpush.msra.mxu0 %v88
    %725 = vmatpush.msra.mxu0 %v84
    %726 = vmatpush.msra.mxu0 %v80
    %727 = vmatpush.msra.mxu0 %v76
    %728 = vmatmul.f32.gmra.mxu0 %v419
    %v729 = vpop.f32.mrf.mxu0
    %v730 = vadd.f32 0.0, %v729
    %731 = vdwg.mxu0
    %v732 = vadd.f32 %v648, %v670
    %v733 = vadd.f32 %v649, %v690
    %v734 = vadd.f32 %v650, %v710
    %v735 = vadd.f32 %v651, %v730
    %v736 = vxor.u32 %v732, 2147483648
    %v737 = vmul.f32 %v736, 1.442695
    %v738 = vpow.pop %v737
    %v739 = vadd.f32 %v738, 1.0
    %v740 = vrcp.pop %v739
    %v741 = vmul.f32 %v739, %v740
    %v742 = vsub.f32 1.0, %v741
    %v743 = vmul.f32 %v740, %v742
    %v744 = vadd.f32 %v740, %v743
    %vm745 = vweird.f32 %v739
    %vm746 = vweird.f32 %v740
    %vm747 = vmor %vm745, %vm746
    %v748 = vsel %vm747, %v740, %v744
    %v749 = vand.u32 2147483647, %v739
    %vm750 = vcmp.eq.f32.partialorder %v749, 8.507059e+37
    %v751 = vand.u32 %v739, 2147483648
    %v752 = vor.u32 1.1754944e-38, %v751
    %v753 = vsel %vm750, %v752, %v748
    %v754 = vmul.f32 1.0, %v753
    %v755 = vxor.u32 %v733, 2147483648
    %v756 = vmul.f32 %v755, 1.442695
    %v757 = vpow.pop %v756
    %v758 = vadd.f32 %v757, 1.0
    %v759 = vrcp.pop %v758
    %v760 = vmul.f32 %v758, %v759
    %v761 = vsub.f32 1.0, %v760
    %v762 = vmul.f32 %v759, %v761
    %v763 = vadd.f32 %v759, %v762
    %vm764 = vweird.f32 %v758
    %vm765 = vweird.f32 %v759
    %vm766 = vmor %vm764, %vm765
    %v767 = vsel %vm766, %v759, %v763
    %v768 = vand.u32 2147483647, %v758
    %vm769 = vcmp.eq.f32.partialorder %v768, 8.507059e+37
    %v770 = vand.u32 %v758, 2147483648
    %v771 = vor.u32 1.1754944e-38, %v770
    %v772 = vsel %vm769, %v771, %v767
    %v773 = vmul.f32 1.0, %v772
    %v774 = vtanh.pop %v734
    %v775 = vxor.u32 %v735, 2147483648
    %v776 = vmul.f32 %v775, 1.442695
    %v777 = vpow.pop %v776
    %v778 = vadd.f32 %v777, 1.0
    %v779 = vrcp.pop %v778
    %v780 = vmul.f32 %v778, %v779
    %v781 = vsub.f32 1.0, %v780
    %v782 = vmul.f32 %v779, %v781
    %v783 = vadd.f32 %v779, %v782
    %vm784 = vweird.f32 %v778
    %vm785 = vweird.f32 %v779
    %vm786 = vmor %vm784, %vm785
    %v787 = vsel %vm786, %v779, %v783
    %v788 = vand.u32 2147483647, %v778
    %vm789 = vcmp.eq.f32.partialorder %v788, 8.507059e+37
    %v790 = vand.u32 %v778, 2147483648
    %v791 = vor.u32 1.1754944e-38, %v790
    %v792 = vsel %vm789, %v791, %v787
    %v793 = vmul.f32 1.0, %v792
    %v794 = vmul.f32 %v773, %v417
    %v795 = vmul.f32 %v754, %v774
    %v796 = vadd.f32 %v794, %v795
    %v797 = vtanh.pop %v796
    %v798 = vmul.f32 %v793, %v797
    %799 = vmatpush.msra.mxu0 %v261
    %800 = vmatpush.msra.mxu0 %v257
    %801 = vmatpush.msra.mxu0 %v253
    %802 = vmatpush.msra.mxu0 %v249
    %803 = vmatpush.msra.mxu0 %v245
    %804 = vmatpush.msra.mxu0 %v241
    %805 = vmatpush.msra.mxu0 %v237
    %806 = vmatpush.msra.mxu0 %v233
    %807 = vmatpush.msra.mxu0 %v229
    %808 = vmatpush.msra.mxu0 %v225
    %809 = vmatpush.msra.mxu0 %v221
    %810 = vmatpush.msra.mxu0 %v217
    %811 = vmatpush.msra.mxu0 %v213
    %812 = vmatpush.msra.mxu0 %v209
    %813 = vmatpush.msra.mxu0 %v205
    %814 = vmatpush.msra.mxu0 %v201
    %815 = vmatmul.f32.gmra.mxu0 %v646
    %v816 = vpop.f32.mrf.mxu0
    %v817 = vadd.f32 0.0, %v816
    %818 = vdwg.mxu0
    %819 = vmatpush.msra.mxu0 %v262
    %820 = vmatpush.msra.mxu0 %v258
    %821 = vmatpush.msra.mxu0 %v254
    %822 = vmatpush.msra.mxu0 %v250
    %823 = vmatpush.msra.mxu0 %v246
    %824 = vmatpush.msra.mxu0 %v242
    %825 = vmatpush.msra.mxu0 %v238
    %826 = vmatpush.msra.mxu0 %v234
    %827 = vmatpush.msra.mxu0 %v230
    %828 = vmatpush.msra.mxu0 %v226
    %829 = vmatpush.msra.mxu0 %v222
    %830 = vmatpush.msra.mxu0 %v218
    %831 = vmatpush.msra.mxu0 %v214
    %832 = vmatpush.msra.mxu0 %v210
    %833 = vmatpush.msra.mxu0 %v206
    %834 = vmatpush.msra.mxu0 %v202
    %835 = vmatmul.f32.gmra.mxu0 %v646
    %v836 = vpop.f32.mrf.mxu0
    %v837 = vadd.f32 0.0, %v836
    %838 = vdwg.mxu0
    %839 = vmatpush.msra.mxu0 %v263
    %840 = vmatpush.msra.mxu0 %v259
    %841 = vmatpush.msra.mxu0 %v255
    %842 = vmatpush.msra.mxu0 %v251
    %843 = vmatpush.msra.mxu0 %v247
    %844 = vmatpush.msra.mxu0 %v243
    %845 = vmatpush.msra.mxu0 %v239
    %846 = vmatpush.msra.mxu0 %v235
    %847 = vmatpush.msra.mxu0 %v231
    %848 = vmatpush.msra.mxu0 %v227
    %849 = vmatpush.msra.mxu0 %v223
    %850 = vmatpush.msra.mxu0 %v219
    %851 = vmatpush.msra.mxu0 %v215
    %852 = vmatpush.msra.mxu0 %v211
    %853 = vmatpush.msra.mxu0 %v207
    %854 = vmatpush.msra.mxu0 %v203
    %855 = vmatmul.f32.gmra.mxu0 %v646
    %v856 = vpop.f32.mrf.mxu0
    %v857 = vadd.f32 0.0, %v856
    %858 = vdwg.mxu0
    %859 = vmatpush.msra.mxu0 %v264
    %860 = vmatpush.msra.mxu0 %v260
    %861 = vmatpush.msra.mxu0 %v256
    %862 = vmatpush.msra.mxu0 %v252
    %863 = vmatpush.msra.mxu0 %v248
    %864 = vmatpush.msra.mxu0 %v244
    %865 = vmatpush.msra.mxu0 %v240
    %866 = vmatpush.msra.mxu0 %v236
    %867 = vmatpush.msra.mxu0 %v232
    %868 = vmatpush.msra.mxu0 %v228
    %869 = vmatpush.msra.mxu0 %v224
    %870 = vmatpush.msra.mxu0 %v220
    %871 = vmatpush.msra.mxu0 %v216
    %872 = vmatpush.msra.mxu0 %v212
    %873 = vmatpush.msra.mxu0 %v208
    %874 = vmatpush.msra.mxu0 %v204
    %875 = vmatmul.f32.gmra.mxu0 %v646
    %v876 = vpop.f32.mrf.mxu0
    %v877 = vadd.f32 0.0, %v876
    %878 = vdwg.mxu0
    %879 = vmatpush.msra.mxu0 %v197
    %880 = vmatpush.msra.mxu0 %v193
    %881 = vmatpush.msra.mxu0 %v189
    %882 = vmatpush.msra.mxu0 %v185
    %883 = vmatpush.msra.mxu0 %v181
    %884 = vmatpush.msra.mxu0 %v177
    %885 = vmatpush.msra.mxu0 %v173
    %886 = vmatpush.msra.mxu0 %v169
    %887 = vmatpush.msra.mxu0 %v165
    %888 = vmatpush.msra.mxu0 %v161
    %889 = vmatpush.msra.mxu0 %v157
    %890 = vmatpush.msra.mxu0 %v153
    %891 = vmatpush.msra.mxu0 %v149
    %892 = vmatpush.msra.mxu0 %v145
    %893 = vmatpush.msra.mxu0 %v141
    %894 = vmatpush.msra.mxu0 %v137
    %895 = vmatmul.f32.gmra.mxu0 %v798
    %v896 = vpop.f32.mrf.mxu0
    %v897 = vadd.f32 %v817, %v896
    %898 = vdwg.mxu0
    %899 = vmatpush.msra.mxu0 %v198
    %900 = vmatpush.msra.mxu0 %v194
    %901 = vmatpush.msra.mxu0 %v190
    %902 = vmatpush.msra.mxu0 %v186
    %903 = vmatpush.msra.mxu0 %v182
    %904 = vmatpush.msra.mxu0 %v178
    %905 = vmatpush.msra.mxu0 %v174
    %906 = vmatpush.msra.mxu0 %v170
    %907 = vmatpush.msra.mxu0 %v166
    %908 = vmatpush.msra.mxu0 %v162
    %909 = vmatpush.msra.mxu0 %v158
    %910 = vmatpush.msra.mxu0 %v154
    %911 = vmatpush.msra.mxu0 %v150
    %912 = vmatpush.msra.mxu0 %v146
    %913 = vmatpush.msra.mxu0 %v142
    %914 = vmatpush.msra.mxu0 %v138
    %915 = vmatmul.f32.gmra.mxu0 %v798
    %v916 = vpop.f32.mrf.mxu0
    %v917 = vadd.f32 %v837, %v916
    %918 = vdwg.mxu0
    %919 = vmatpush.msra.mxu0 %v199
    %920 = vmatpush.msra.mxu0 %v195
    %921 = vmatpush.msra.mxu0 %v191
    %922 = vmatpush.msra.mxu0 %v187
    %923 = vmatpush.msra.mxu0 %v183
    %924 = vmatpush.msra.mxu0 %v179
    %925 = vmatpush.msra.mxu0 %v175
    %926 = vmatpush.msra.mxu0 %v171
    %927 = vmatpush.msra.mxu0 %v167
    %928 = vmatpush.msra.mxu0 %v163
    %929 = vmatpush.msra.mxu0 %v159
    %930 = vmatpush.msra.mxu0 %v155
    %931 = vmatpush.msra.mxu0 %v151
    %932 = vmatpush.msra.mxu0 %v147
    %933 = vmatpush.msra.mxu0 %v143
    %934 = vmatpush.msra.mxu0 %v139
    %935 = vmatmul.f32.gmra.mxu0 %v798
    %v936 = vpop.f32.mrf.mxu0
    %v937 = vadd.f32 %v857, %v936
    %938 = vdwg.mxu0
    %939 = vmatpush.msra.mxu0 %v200
    %940 = vmatpush.msra.mxu0 %v196
    %941 = vmatpush.msra.mxu0 %v192
    %942 = vmatpush.msra.mxu0 %v188
    %943 = vmatpush.msra.mxu0 %v184
    %944 = vmatpush.msra.mxu0 %v180
    %945 = vmatpush.msra.mxu0 %v176
    %946 = vmatpush.msra.mxu0 %v172
    %947 = vmatpush.msra.mxu0 %v168
    %948 = vmatpush.msra.mxu0 %v164
    %949 = vmatpush.msra.mxu0 %v160
    %950 = vmatpush.msra.mxu0 %v156
    %951 = vmatpush.msra.mxu0 %v152
    %952 = vmatpush.msra.mxu0 %v148
    %953 = vmatpush.msra.mxu0 %v144
    %954 = vmatpush.msra.mxu0 %v140
    %955 = vmatmul.f32.gmra.mxu0 %v798
    %v956 = vpop.f32.mrf.mxu0
    %v957 = vadd.f32 %v877, %v956
    %958 = vdwg.mxu0
    %v959 = vadd.f32 %v897, %v265
    %v960 = vadd.f32 %v917, %v266
    %v961 = vadd.f32 %v937, %v267
    %v962 = vadd.f32 %v957, %v268
    %v963 = vxor.u32 %v959, 2147483648
    %v964 = vmul.f32 %v963, 1.442695
    %v965 = vpow.pop %v964
    %v966 = vadd.f32 %v965, 1.0
    %v967 = vrcp.pop %v966
    %v968 = vmul.f32 %v966, %v967
    %v969 = vsub.f32 1.0, %v968
    %v970 = vmul.f32 %v967, %v969
    %v971 = vadd.f32 %v967, %v970
    %vm972 = vweird.f32 %v966
    %vm973 = vweird.f32 %v967
    %vm974 = vmor %vm972, %vm973
    %v975 = vsel %vm974, %v967, %v971
    %v976 = vand.u32 2147483647, %v966
    %vm977 = vcmp.eq.f32.partialorder %v976, 8.507059e+37
    %v978 = vand.u32 %v966, 2147483648
    %v979 = vor.u32 1.1754944e-38, %v978
    %v980 = vsel %vm977, %v979, %v975
    %v981 = vmul.f32 1.0, %v980
    %v982 = vxor.u32 %v960, 2147483648
    %v983 = vmul.f32 %v982, 1.442695
    %v984 = vpow.pop %v983
    %v985 = vadd.f32 %v984, 1.0
    %v986 = vrcp.pop %v985
    %v987 = vmul.f32 %v985, %v986
    %v988 = vsub.f32 1.0, %v987
    %v989 = vmul.f32 %v986, %v988
    %v990 = vadd.f32 %v986, %v989
    %vm991 = vweird.f32 %v985
    %vm992 = vweird.f32 %v986
    %vm993 = vmor %vm991, %vm992
    %v994 = vsel %vm993, %v986, %v990
    %v995 = vand.u32 2147483647, %v985
    %vm996 = vcmp.eq.f32.partialorder %v995, 8.507059e+37
    %v997 = vand.u32 %v985, 2147483648
    %v998 = vor.u32 1.1754944e-38, %v997
    %v999 = vsel %vm996, %v998, %v994
    %v1000 = vmul.f32 1.0, %v999
    %v1001 = vtanh.pop %v961
    %v1002 = vxor.u32 %v962, 2147483648
    %v1003 = vmul.f32 %v1002, 1.442695
    %v1004 = vpow.pop %v1003
    %v1005 = vadd.f32 %v1004, 1.0
    %v1006 = vrcp.pop %v1005
    %v1007 = vmul.f32 %v1005, %v1006
    %v1008 = vsub.f32 1.0, %v1007
    %v1009 = vmul.f32 %v1006, %v1008
    %v1010 = vadd.f32 %v1006, %v1009
    %vm1011 = vweird.f32 %v1005
    %vm1012 = vweird.f32 %v1006
    %vm1013 = vmor %vm1011, %vm1012
    %v1014 = vsel %vm1013, %v1006, %v1010
    %v1015 = vand.u32 2147483647, %v1005
    %vm1016 = vcmp.eq.f32.partialorder %v1015, 8.507059e+37
    %v1017 = vand.u32 %v1005, 2147483648
    %v1018 = vor.u32 1.1754944e-38, %v1017
    %v1019 = vsel %vm1016, %v1018, %v1014
    %v1020 = vmul.f32 1.0, %v1019
    %v1021 = vmul.f32 %v1000, %v644
    %v1022 = vmul.f32 %v981, %v1001
    %v1023 = vadd.f32 %v1021, %v1022
    %v1024 = vtanh.pop %v1023
    %v1025 = vmul.f32 %v1020, %v1024
    %s1026 = scalar_lea.vmem %s0, 64
    %v1027 = vld [vmem:[%s1026] sm:$0xff]
    %v1028 = vld [vmem:[%s1026 + $0x8] sm:$0xff]
    %v1029 = vld [vmem:[%s1026 + $0x10] sm:$0xff]
    %v1030 = vld [vmem:[%s1026 + $0x18] sm:$0xff]
    %1031 = vmatpush.msra.mxu0 %v133
    %1032 = vmatpush.msra.mxu0 %v129
    %1033 = vmatpush.msra.mxu0 %v125
    %1034 = vmatpush.msra.mxu0 %v121
    %1035 = vmatpush.msra.mxu0 %v117
    %1036 = vmatpush.msra.mxu0 %v113
    %1037 = vmatpush.msra.mxu0 %v109
    %1038 = vmatpush.msra.mxu0 %v105
    %1039 = vmatpush.msra.mxu0 %v101
    %1040 = vmatpush.msra.mxu0 %v97
    %1041 = vmatpush.msra.mxu0 %v93
    %1042 = vmatpush.msra.mxu0 %v89
    %1043 = vmatpush.msra.mxu0 %v85
    %1044 = vmatpush.msra.mxu0 %v81
    %1045 = vmatpush.msra.mxu0 %v77
    %1046 = vmatpush.msra.mxu0 %v73
    %1047 = vmatmul.f32.gmra.mxu0 %v798
    %v1048 = vpop.f32.mrf.mxu0
    %v1049 = vadd.f32 0.0, %v1048
    %1050 = vdwg.mxu0
    %1051 = vmatpush.msra.mxu0 %v134
    %1052 = vmatpush.msra.mxu0 %v130
    %1053 = vmatpush.msra.mxu0 %v126
    %1054 = vmatpush.msra.mxu0 %v122
    %1055 = vmatpush.msra.mxu0 %v118
    %1056 = vmatpush.msra.mxu0 %v114
    %1057 = vmatpush.msra.mxu0 %v110
    %1058 = vmatpush.msra.mxu0 %v106
    %1059 = vmatpush.msra.mxu0 %v102
    %1060 = vmatpush.msra.mxu0 %v98
    %1061 = vmatpush.msra.mxu0 %v94
    %1062 = vmatpush.msra.mxu0 %v90
    %1063 = vmatpush.msra.mxu0 %v86
    %1064 = vmatpush.msra.mxu0 %v82
    %1065 = vmatpush.msra.mxu0 %v78
    %1066 = vmatpush.msra.mxu0 %v74
    %1067 = vmatmul.f32.gmra.mxu0 %v798
    %v1068 = vpop.f32.mrf.mxu0
    %v1069 = vadd.f32 0.0, %v1068
    %1070 = vdwg.mxu0
    %1071 = vmatpush.msra.mxu0 %v135
    %1072 = vmatpush.msra.mxu0 %v131
    %1073 = vmatpush.msra.mxu0 %v127
    %1074 = vmatpush.msra.mxu0 %v123
    %1075 = vmatpush.msra.mxu0 %v119
    %1076 = vmatpush.msra.mxu0 %v115
    %1077 = vmatpush.msra.mxu0 %v111
    %1078 = vmatpush.msra.mxu0 %v107
    %1079 = vmatpush.msra.mxu0 %v103
    %1080 = vmatpush.msra.mxu0 %v99
    %1081 = vmatpush.msra.mxu0 %v95
    %1082 = vmatpush.msra.mxu0 %v91
    %1083 = vmatpush.msra.mxu0 %v87
    %1084 = vmatpush.msra.mxu0 %v83
    %1085 = vmatpush.msra.mxu0 %v79
    %1086 = vmatpush.msra.mxu0 %v75
    %1087 = vmatmul.f32.gmra.mxu0 %v798
    %v1088 = vpop.f32.mrf.mxu0
    %v1089 = vadd.f32 0.0, %v1088
    %1090 = vdwg.mxu0
    %1091 = vmatpush.msra.mxu0 %v136
    %1092 = vmatpush.msra.mxu0 %v132
    %1093 = vmatpush.msra.mxu0 %v128
    %1094 = vmatpush.msra.mxu0 %v124
    %1095 = vmatpush.msra.mxu0 %v120
    %1096 = vmatpush.msra.mxu0 %v116
    %1097 = vmatpush.msra.mxu0 %v112
    %1098 = vmatpush.msra.mxu0 %v108
    %1099 = vmatpush.msra.mxu0 %v104
    %1100 = vmatpush.msra.mxu0 %v100
    %1101 = vmatpush.msra.mxu0 %v96
    %1102 = vmatpush.msra.mxu0 %v92
    %1103 = vmatpush.msra.mxu0 %v88
    %1104 = vmatpush.msra.mxu0 %v84
    %1105 = vmatpush.msra.mxu0 %v80
    %1106 = vmatpush.msra.mxu0 %v76
    %1107 = vmatmul.f32.gmra.mxu0 %v798
    %v1108 = vpop.f32.mrf.mxu0
    %v1109 = vadd.f32 0.0, %v1108
    %1110 = vdwg.mxu0
    %v1111 = vadd.f32 %v1027, %v1049
    %v1112 = vadd.f32 %v1028, %v1069
    %v1113 = vadd.f32 %v1029, %v1089
    %v1114 = vadd.f32 %v1030, %v1109
    %v1115 = vxor.u32 %v1111, 2147483648
    %v1116 = vmul.f32 %v1115, 1.442695
    %v1117 = vpow.pop %v1116
    %v1118 = vadd.f32 %v1117, 1.0
    %v1119 = vrcp.pop %v1118
    %v1120 = vmul.f32 %v1118, %v1119
    %v1121 = vsub.f32 1.0, %v1120
    %v1122 = vmul.f32 %v1119, %v1121
    %v1123 = vadd.f32 %v1119, %v1122
    %vm1124 = vweird.f32 %v1118
    %vm1125 = vweird.f32 %v1119
    %vm1126 = vmor %vm1124, %vm1125
    %v1127 = vsel %vm1126, %v1119, %v1123
    %v1128 = vand.u32 2147483647, %v1118
    %vm1129 = vcmp.eq.f32.partialorder %v1128, 8.507059e+37
    %v1130 = vand.u32 %v1118, 2147483648
    %v1131 = vor.u32 1.1754944e-38, %v1130
    %v1132 = vsel %vm1129, %v1131, %v1127
    %v1133 = vmul.f32 1.0, %v1132
    %v1134 = vxor.u32 %v1112, 2147483648
    %v1135 = vmul.f32 %v1134, 1.442695
    %v1136 = vpow.pop %v1135
    %v1137 = vadd.f32 %v1136, 1.0
    %v1138 = vrcp.pop %v1137
    %v1139 = vmul.f32 %v1137, %v1138
    %v1140 = vsub.f32 1.0, %v1139
    %v1141 = vmul.f32 %v1138, %v1140
    %v1142 = vadd.f32 %v1138, %v1141
    %vm1143 = vweird.f32 %v1137
    %vm1144 = vweird.f32 %v1138
    %vm1145 = vmor %vm1143, %vm1144
    %v1146 = vsel %vm1145, %v1138, %v1142
    %v1147 = vand.u32 2147483647, %v1137
    %vm1148 = vcmp.eq.f32.partialorder %v1147, 8.507059e+37
    %v1149 = vand.u32 %v1137, 2147483648
    %v1150 = vor.u32 1.1754944e-38, %v1149
    %v1151 = vsel %vm1148, %v1150, %v1146
    %v1152 = vmul.f32 1.0, %v1151
    %v1153 = vtanh.pop %v1113
    %v1154 = vxor.u32 %v1114, 2147483648
    %v1155 = vmul.f32 %v1154, 1.442695
    %v1156 = vpow.pop %v1155
    %v1157 = vadd.f32 %v1156, 1.0
    %v1158 = vrcp.pop %v1157
    %v1159 = vmul.f32 %v1157, %v1158
    %v1160 = vsub.f32 1.0, %v1159
    %v1161 = vmul.f32 %v1158, %v1160
    %v1162 = vadd.f32 %v1158, %v1161
    %vm1163 = vweird.f32 %v1157
    %vm1164 = vweird.f32 %v1158
    %vm1165 = vmor %vm1163, %vm1164
    %v1166 = vsel %vm1165, %v1158, %v1162
    %v1167 = vand.u32 2147483647, %v1157
    %vm1168 = vcmp.eq.f32.partialorder %v1167, 8.507059e+37
    %v1169 = vand.u32 %v1157, 2147483648
    %v1170 = vor.u32 1.1754944e-38, %v1169
    %v1171 = vsel %vm1168, %v1170, %v1166
    %v1172 = vmul.f32 1.0, %v1171
    %v1173 = vmul.f32 %v1152, %v796
    %v1174 = vmul.f32 %v1133, %v1153
    %v1175 = vadd.f32 %v1173, %v1174
    %v1176 = vtanh.pop %v1175
    %v1177 = vmul.f32 %v1172, %v1176
    %1178 = vmatpush.msra.mxu0 %v261
    %1179 = vmatpush.msra.mxu0 %v257
    %1180 = vmatpush.msra.mxu0 %v253
    %1181 = vmatpush.msra.mxu0 %v249
    %1182 = vmatpush.msra.mxu0 %v245
    %1183 = vmatpush.msra.mxu0 %v241
    %1184 = vmatpush.msra.mxu0 %v237
    %1185 = vmatpush.msra.mxu0 %v233
    %1186 = vmatpush.msra.mxu0 %v229
    %1187 = vmatpush.msra.mxu0 %v225
    %1188 = vmatpush.msra.mxu0 %v221
    %1189 = vmatpush.msra.mxu0 %v217
    %1190 = vmatpush.msra.mxu0 %v213
    %1191 = vmatpush.msra.mxu0 %v209
    %1192 = vmatpush.msra.mxu0 %v205
    %1193 = vmatpush.msra.mxu0 %v201
    %1194 = vmatmul.f32.gmra.mxu0 %v1025
    %v1195 = vpop.f32.mrf.mxu0
    %v1196 = vadd.f32 0.0, %v1195
    %1197 = vdwg.mxu0
    %1198 = vmatpush.msra.mxu0 %v262
    %1199 = vmatpush.msra.mxu0 %v258
    %1200 = vmatpush.msra.mxu0 %v254
    %1201 = vmatpush.msra.mxu0 %v250
    %1202 = vmatpush.msra.mxu0 %v246
    %1203 = vmatpush.msra.mxu0 %v242
    %1204 = vmatpush.msra.mxu0 %v238
    %1205 = vmatpush.msra.mxu0 %v234
    %1206 = vmatpush.msra.mxu0 %v230
    %1207 = vmatpush.msra.mxu0 %v226
    %1208 = vmatpush.msra.mxu0 %v222
    %1209 = vmatpush.msra.mxu0 %v218
    %1210 = vmatpush.msra.mxu0 %v214
    %1211 = vmatpush.msra.mxu0 %v210
    %1212 = vmatpush.msra.mxu0 %v206
    %1213 = vmatpush.msra.mxu0 %v202
    %1214 = vmatmul.f32.gmra.mxu0 %v1025
    %v1215 = vpop.f32.mrf.mxu0
    %v1216 = vadd.f32 0.0, %v1215
    %1217 = vdwg.mxu0
    %1218 = vmatpush.msra.mxu0 %v263
    %1219 = vmatpush.msra.mxu0 %v259
    %1220 = vmatpush.msra.mxu0 %v255
    %1221 = vmatpush.msra.mxu0 %v251
    %1222 = vmatpush.msra.mxu0 %v247
    %1223 = vmatpush.msra.mxu0 %v243
    %1224 = vmatpush.msra.mxu0 %v239
    %1225 = vmatpush.msra.mxu0 %v235
    %1226 = vmatpush.msra.mxu0 %v231
    %1227 = vmatpush.msra.mxu0 %v227
    %1228 = vmatpush.msra.mxu0 %v223
    %1229 = vmatpush.msra.mxu0 %v219
    %1230 = vmatpush.msra.mxu0 %v215
    %1231 = vmatpush.msra.mxu0 %v211
    %1232 = vmatpush.msra.mxu0 %v207
    %1233 = vmatpush.msra.mxu0 %v203
    %1234 = vmatmul.f32.gmra.mxu0 %v1025
    %v1235 = vpop.f32.mrf.mxu0
    %v1236 = vadd.f32 0.0, %v1235
    %1237 = vdwg.mxu0
    %1238 = vmatpush.msra.mxu0 %v264
    %1239 = vmatpush.msra.mxu0 %v260
    %1240 = vmatpush.msra.mxu0 %v256
    %1241 = vmatpush.msra.mxu0 %v252
    %1242 = vmatpush.msra.mxu0 %v248
    %1243 = vmatpush.msra.mxu0 %v244
    %1244 = vmatpush.msra.mxu0 %v240
    %1245 = vmatpush.msra.mxu0 %v236
    %1246 = vmatpush.msra.mxu0 %v232
    %1247 = vmatpush.msra.mxu0 %v228
    %1248 = vmatpush.msra.mxu0 %v224
    %1249 = vmatpush.msra.mxu0 %v220
    %1250 = vmatpush.msra.mxu0 %v216
    %1251 = vmatpush.msra.mxu0 %v212
    %1252 = vmatpush.msra.mxu0 %v208
    %1253 = vmatpush.msra.mxu0 %v204
    %1254 = vmatmul.f32.gmra.mxu0 %v1025
    %v1255 = vpop.f32.mrf.mxu0
    %v1256 = vadd.f32 0.0, %v1255
    %1257 = vdwg.mxu0
    %1258 = vmatpush.msra.mxu0 %v197
    %1259 = vmatpush.msra.mxu0 %v193
    %1260 = vmatpush.msra.mxu0 %v189
    %1261 = vmatpush.msra.mxu0 %v185
    %1262 = vmatpush.msra.mxu0 %v181
    %1263 = vmatpush.msra.mxu0 %v177
    %1264 = vmatpush.msra.mxu0 %v173
    %1265 = vmatpush.msra.mxu0 %v169
    %1266 = vmatpush.msra.mxu0 %v165
    %1267 = vmatpush.msra.mxu0 %v161
    %1268 = vmatpush.msra.mxu0 %v157
    %1269 = vmatpush.msra.mxu0 %v153
    %1270 = vmatpush.msra.mxu0 %v149
    %1271 = vmatpush.msra.mxu0 %v145
    %1272 = vmatpush.msra.mxu0 %v141
    %1273 = vmatpush.msra.mxu0 %v137
    %1274 = vmatmul.f32.gmra.mxu0 %v1177
    %v1275 = vpop.f32.mrf.mxu0
    %v1276 = vadd.f32 %v1196, %v1275
    %1277 = vdwg.mxu0
    %1278 = vmatpush.msra.mxu0 %v198
    %1279 = vmatpush.msra.mxu0 %v194
    %1280 = vmatpush.msra.mxu0 %v190
    %1281 = vmatpush.msra.mxu0 %v186
    %1282 = vmatpush.msra.mxu0 %v182
    %1283 = vmatpush.msra.mxu0 %v178
    %1284 = vmatpush.msra.mxu0 %v174
    %1285 = vmatpush.msra.mxu0 %v170
    %1286 = vmatpush.msra.mxu0 %v166
    %1287 = vmatpush.msra.mxu0 %v162
    %1288 = vmatpush.msra.mxu0 %v158
    %1289 = vmatpush.msra.mxu0 %v154
    %1290 = vmatpush.msra.mxu0 %v150
    %1291 = vmatpush.msra.mxu0 %v146
    %1292 = vmatpush.msra.mxu0 %v142
    %1293 = vmatpush.msra.mxu0 %v138
    %1294 = vmatmul.f32.gmra.mxu0 %v1177
    %v1295 = vpop.f32.mrf.mxu0
    %v1296 = vadd.f32 %v1216, %v1295
    %1297 = vdwg.mxu0
    %1298 = vmatpush.msra.mxu0 %v199
    %1299 = vmatpush.msra.mxu0 %v195
    %1300 = vmatpush.msra.mxu0 %v191
    %1301 = vmatpush.msra.mxu0 %v187
    %1302 = vmatpush.msra.mxu0 %v183
    %1303 = vmatpush.msra.mxu0 %v179
    %1304 = vmatpush.msra.mxu0 %v175
    %1305 = vmatpush.msra.mxu0 %v171
    %1306 = vmatpush.msra.mxu0 %v167
    %1307 = vmatpush.msra.mxu0 %v163
    %1308 = vmatpush.msra.mxu0 %v159
    %1309 = vmatpush.msra.mxu0 %v155
    %1310 = vmatpush.msra.mxu0 %v151
    %1311 = vmatpush.msra.mxu0 %v147
    %1312 = vmatpush.msra.mxu0 %v143
    %1313 = vmatpush.msra.mxu0 %v139
    %1314 = vmatmul.f32.gmra.mxu0 %v1177
    %v1315 = vpop.f32.mrf.mxu0
    %v1316 = vadd.f32 %v1236, %v1315
    %1317 = vdwg.mxu0
    %1318 = vmatpush.msra.mxu0 %v200
    %1319 = vmatpush.msra.mxu0 %v196
    %1320 = vmatpush.msra.mxu0 %v192
    %1321 = vmatpush.msra.mxu0 %v188
    %1322 = vmatpush.msra.mxu0 %v184
    %1323 = vmatpush.msra.mxu0 %v180
    %1324 = vmatpush.msra.mxu0 %v176
    %1325 = vmatpush.msra.mxu0 %v172
    %1326 = vmatpush.msra.mxu0 %v168
    %1327 = vmatpush.msra.mxu0 %v164
    %1328 = vmatpush.msra.mxu0 %v160
    %1329 = vmatpush.msra.mxu0 %v156
    %1330 = vmatpush.msra.mxu0 %v152
    %1331 = vmatpush.msra.mxu0 %v148
    %1332 = vmatpush.msra.mxu0 %v144
    %1333 = vmatpush.msra.mxu0 %v140
    %1334 = vmatmul.f32.gmra.mxu0 %v1177
    %v1335 = vpop.f32.mrf.mxu0
    %v1336 = vadd.f32 %v1256, %v1335
    %1337 = vdwg.mxu0
    %v1338 = vadd.f32 %v1276, %v265
    %v1339 = vadd.f32 %v1296, %v266
    %v1340 = vadd.f32 %v1316, %v267
    %v1341 = vadd.f32 %v1336, %v268
    %v1342 = vxor.u32 %v1338, 2147483648
    %v1343 = vmul.f32 %v1342, 1.442695
    %v1344 = vpow.pop %v1343
    %v1345 = vadd.f32 %v1344, 1.0
    %v1346 = vrcp.pop %v1345
    %v1347 = vmul.f32 %v1345, %v1346
    %v1348 = vsub.f32 1.0, %v1347
    %v1349 = vmul.f32 %v1346, %v1348
    %v1350 = vadd.f32 %v1346, %v1349
    %vm1351 = vweird.f32 %v1345
    %vm1352 = vweird.f32 %v1346
    %vm1353 = vmor %vm1351, %vm1352
    %v1354 = vsel %vm1353, %v1346, %v1350
    %v1355 = vand.u32 2147483647, %v1345
    %vm1356 = vcmp.eq.f32.partialorder %v1355, 8.507059e+37
    %v1357 = vand.u32 %v1345, 2147483648
    %v1358 = vor.u32 1.1754944e-38, %v1357
    %v1359 = vsel %vm1356, %v1358, %v1354
    %v1360 = vmul.f32 1.0, %v1359
    %v1361 = vxor.u32 %v1339, 2147483648
    %v1362 = vmul.f32 %v1361, 1.442695
    %v1363 = vpow.pop %v1362
    %v1364 = vadd.f32 %v1363, 1.0
    %v1365 = vrcp.pop %v1364
    %v1366 = vmul.f32 %v1364, %v1365
    %v1367 = vsub.f32 1.0, %v1366
    %v1368 = vmul.f32 %v1365, %v1367
    %v1369 = vadd.f32 %v1365, %v1368
    %vm1370 = vweird.f32 %v1364
    %vm1371 = vweird.f32 %v1365
    %vm1372 = vmor %vm1370, %vm1371
    %v1373 = vsel %vm1372, %v1365, %v1369
    %v1374 = vand.u32 2147483647, %v1364
    %vm1375 = vcmp.eq.f32.partialorder %v1374, 8.507059e+37
    %v1376 = vand.u32 %v1364, 2147483648
    %v1377 = vor.u32 1.1754944e-38, %v1376
    %v1378 = vsel %vm1375, %v1377, %v1373
    %v1379 = vmul.f32 1.0, %v1378
    %v1380 = vtanh.pop %v1340
    %v1381 = vxor.u32 %v1341, 2147483648
    %v1382 = vmul.f32 %v1381, 1.442695
    %v1383 = vpow.pop %v1382
    %v1384 = vadd.f32 %v1383, 1.0
    %v1385 = vrcp.pop %v1384
    %v1386 = vmul.f32 %v1384, %v1385
    %v1387 = vsub.f32 1.0, %v1386
    %v1388 = vmul.f32 %v1385, %v1387
    %v1389 = vadd.f32 %v1385, %v1388
    %vm1390 = vweird.f32 %v1384
    %vm1391 = vweird.f32 %v1385
    %vm1392 = vmor %vm1390, %vm1391
    %v1393 = vsel %vm1392, %v1385, %v1389
    %v1394 = vand.u32 2147483647, %v1384
    %vm1395 = vcmp.eq.f32.partialorder %v1394, 8.507059e+37
    %v1396 = vand.u32 %v1384, 2147483648
    %v1397 = vor.u32 1.1754944e-38, %v1396
    %v1398 = vsel %vm1395, %v1397, %v1393
    %v1399 = vmul.f32 1.0, %v1398
    %v1400 = vmul.f32 %v1379, %v1023
    %v1401 = vmul.f32 %v1360, %v1380
    %v1402 = vadd.f32 %v1400, %v1401
    %v1403 = vtanh.pop %v1402
    %v1404 = vmul.f32 %v1399, %v1403
    %s1405 = scalar_lea.vmem %s0, 96
    %v1406 = vld [vmem:[%s1405] sm:$0xff]
    %v1407 = vld [vmem:[%s1405 + $0x8] sm:$0xff]
    %v1408 = vld [vmem:[%s1405 + $0x10] sm:$0xff]
    %v1409 = vld [vmem:[%s1405 + $0x18] sm:$0xff]
    %1410 = vmatpush.msra.mxu0 %v133
    %1411 = vmatpush.msra.mxu0 %v129
    %1412 = vmatpush.msra.mxu0 %v125
    %1413 = vmatpush.msra.mxu0 %v121
    %1414 = vmatpush.msra.mxu0 %v117
    %1415 = vmatpush.msra.mxu0 %v113
    %1416 = vmatpush.msra.mxu0 %v109
    %1417 = vmatpush.msra.mxu0 %v105
    %1418 = vmatpush.msra.mxu0 %v101
    %1419 = vmatpush.msra.mxu0 %v97
    %1420 = vmatpush.msra.mxu0 %v93
    %1421 = vmatpush.msra.mxu0 %v89
    %1422 = vmatpush.msra.mxu0 %v85
    %1423 = vmatpush.msra.mxu0 %v81
    %1424 = vmatpush.msra.mxu0 %v77
    %1425 = vmatpush.msra.mxu0 %v73
    %1426 = vmatmul.f32.gmra.mxu0 %v1177
    %v1427 = vpop.f32.mrf.mxu0
    %v1428 = vadd.f32 0.0, %v1427
    %1429 = vdwg.mxu0
    %1430 = vmatpush.msra.mxu0 %v134
    %1431 = vmatpush.msra.mxu0 %v130
    %1432 = vmatpush.msra.mxu0 %v126
    %1433 = vmatpush.msra.mxu0 %v122
    %1434 = vmatpush.msra.mxu0 %v118
    %1435 = vmatpush.msra.mxu0 %v114
    %1436 = vmatpush.msra.mxu0 %v110
    %1437 = vmatpush.msra.mxu0 %v106
    %1438 = vmatpush.msra.mxu0 %v102
    %1439 = vmatpush.msra.mxu0 %v98
    %1440 = vmatpush.msra.mxu0 %v94
    %1441 = vmatpush.msra.mxu0 %v90
    %1442 = vmatpush.msra.mxu0 %v86
    %1443 = vmatpush.msra.mxu0 %v82
    %1444 = vmatpush.msra.mxu0 %v78
    %1445 = vmatpush.msra.mxu0 %v74
    %1446 = vmatmul.f32.gmra.mxu0 %v1177
    %v1447 = vpop.f32.mrf.mxu0
    %v1448 = vadd.f32 0.0, %v1447
    %1449 = vdwg.mxu0
    %1450 = vmatpush.msra.mxu0 %v135
    %1451 = vmatpush.msra.mxu0 %v131
    %1452 = vmatpush.msra.mxu0 %v127
    %1453 = vmatpush.msra.mxu0 %v123
    %1454 = vmatpush.msra.mxu0 %v119
    %1455 = vmatpush.msra.mxu0 %v115
    %1456 = vmatpush.msra.mxu0 %v111
    %1457 = vmatpush.msra.mxu0 %v107
    %1458 = vmatpush.msra.mxu0 %v103
    %1459 = vmatpush.msra.mxu0 %v99
    %1460 = vmatpush.msra.mxu0 %v95
    %1461 = vmatpush.msra.mxu0 %v91
    %1462 = vmatpush.msra.mxu0 %v87
    %1463 = vmatpush.msra.mxu0 %v83
    %1464 = vmatpush.msra.mxu0 %v79
    %1465 = vmatpush.msra.mxu0 %v75
    %1466 = vmatmul.f32.gmra.mxu0 %v1177
    %v1467 = vpop.f32.mrf.mxu0
    %v1468 = vadd.f32 0.0, %v1467
    %1469 = vdwg.mxu0
    %1470 = vmatpush.msra.mxu0 %v136
    %1471 = vmatpush.msra.mxu0 %v132
    %1472 = vmatpush.msra.mxu0 %v128
    %1473 = vmatpush.msra.mxu0 %v124
    %1474 = vmatpush.msra.mxu0 %v120
    %1475 = vmatpush.msra.mxu0 %v116
    %1476 = vmatpush.msra.mxu0 %v112
    %1477 = vmatpush.msra.mxu0 %v108
    %1478 = vmatpush.msra.mxu0 %v104
    %1479 = vmatpush.msra.mxu0 %v100
    %1480 = vmatpush.msra.mxu0 %v96
    %1481 = vmatpush.msra.mxu0 %v92
    %1482 = vmatpush.msra.mxu0 %v88
    %1483 = vmatpush.msra.mxu0 %v84
    %1484 = vmatpush.msra.mxu0 %v80
    %1485 = vmatpush.msra.mxu0 %v76
    %1486 = vmatmul.f32.gmra.mxu0 %v1177
    %v1487 = vpop.f32.mrf.mxu0
    %v1488 = vadd.f32 0.0, %v1487
    %1489 = vdwg.mxu0
    %v1490 = vadd.f32 %v1406, %v1428
    %v1491 = vadd.f32 %v1407, %v1448
    %v1492 = vadd.f32 %v1408, %v1468
    %v1493 = vadd.f32 %v1409, %v1488
    %v1494 = vxor.u32 %v1490, 2147483648
    %v1495 = vmul.f32 %v1494, 1.442695
    %v1496 = vpow.pop %v1495
    %v1497 = vadd.f32 %v1496, 1.0
    %v1498 = vrcp.pop %v1497
    %v1499 = vmul.f32 %v1497, %v1498
    %v1500 = vsub.f32 1.0, %v1499
    %v1501 = vmul.f32 %v1498, %v1500
    %v1502 = vadd.f32 %v1498, %v1501
    %vm1503 = vweird.f32 %v1497
    %vm1504 = vweird.f32 %v1498
    %vm1505 = vmor %vm1503, %vm1504
    %v1506 = vsel %vm1505, %v1498, %v1502
    %v1507 = vand.u32 2147483647, %v1497
    %vm1508 = vcmp.eq.f32.partialorder %v1507, 8.507059e+37
    %v1509 = vand.u32 %v1497, 2147483648
    %v1510 = vor.u32 1.1754944e-38, %v1509
    %v1511 = vsel %vm1508, %v1510, %v1506
    %v1512 = vmul.f32 1.0, %v1511
    %v1513 = vxor.u32 %v1491, 2147483648
    %v1514 = vmul.f32 %v1513, 1.442695
    %v1515 = vpow.pop %v1514
    %v1516 = vadd.f32 %v1515, 1.0
    %v1517 = vrcp.pop %v1516
    %v1518 = vmul.f32 %v1516, %v1517
    %v1519 = vsub.f32 1.0, %v1518
    %v1520 = vmul.f32 %v1517, %v1519
    %v1521 = vadd.f32 %v1517, %v1520
    %vm1522 = vweird.f32 %v1516
    %vm1523 = vweird.f32 %v1517
    %vm1524 = vmor %vm1522, %vm1523
    %v1525 = vsel %vm1524, %v1517, %v1521
    %v1526 = vand.u32 2147483647, %v1516
    %vm1527 = vcmp.eq.f32.partialorder %v1526, 8.507059e+37
    %v1528 = vand.u32 %v1516, 2147483648
    %v1529 = vor.u32 1.1754944e-38, %v1528
    %v1530 = vsel %vm1527, %v1529, %v1525
    %v1531 = vmul.f32 1.0, %v1530
    %v1532 = vtanh.pop %v1492
    %v1533 = vxor.u32 %v1493, 2147483648
    %v1534 = vmul.f32 %v1533, 1.442695
    %v1535 = vpow.pop %v1534
    %v1536 = vadd.f32 %v1535, 1.0
    %v1537 = vrcp.pop %v1536
    %v1538 = vmul.f32 %v1536, %v1537
    %v1539 = vsub.f32 1.0, %v1538
    %v1540 = vmul.f32 %v1537, %v1539
    %v1541 = vadd.f32 %v1537, %v1540
    %vm1542 = vweird.f32 %v1536
    %vm1543 = vweird.f32 %v1537
    %vm1544 = vmor %vm1542, %vm1543
    %v1545 = vsel %vm1544, %v1537, %v1541
    %v1546 = vand.u32 2147483647, %v1536
    %vm1547 = vcmp.eq.f32.partialorder %v1546, 8.507059e+37
    %v1548 = vand.u32 %v1536, 2147483648
    %v1549 = vor.u32 1.1754944e-38, %v1548
    %v1550 = vsel %vm1547, %v1549, %v1545
    %v1551 = vmul.f32 1.0, %v1550
    %v1552 = vmul.f32 %v1531, %v1175
    %v1553 = vmul.f32 %v1512, %v1532
    %v1554 = vadd.f32 %v1552, %v1553
    %v1555 = vtanh.pop %v1554
    %v1556 = vmul.f32 %v1551, %v1555
    %1557 = vmatpush.msra.mxu0 %v261
    %1558 = vmatpush.msra.mxu0 %v257
    %1559 = vmatpush.msra.mxu0 %v253
    %1560 = vmatpush.msra.mxu0 %v249
    %1561 = vmatpush.msra.mxu0 %v245
    %1562 = vmatpush.msra.mxu0 %v241
    %1563 = vmatpush.msra.mxu0 %v237
    %1564 = vmatpush.msra.mxu0 %v233
    %1565 = vmatpush.msra.mxu0 %v229
    %1566 = vmatpush.msra.mxu0 %v225
    %1567 = vmatpush.msra.mxu0 %v221
    %1568 = vmatpush.msra.mxu0 %v217
    %1569 = vmatpush.msra.mxu0 %v213
    %1570 = vmatpush.msra.mxu0 %v209
    %1571 = vmatpush.msra.mxu0 %v205
    %1572 = vmatpush.msra.mxu0 %v201
    %1573 = vmatmul.f32.gmra.mxu0 %v1404
    %v1574 = vpop.f32.mrf.mxu0
    %v1575 = vadd.f32 0.0, %v1574
    %1576 = vdwg.mxu0
    %1577 = vmatpush.msra.mxu0 %v262
    %1578 = vmatpush.msra.mxu0 %v258
    %1579 = vmatpush.msra.mxu0 %v254
    %1580 = vmatpush.msra.mxu0 %v250
    %1581 = vmatpush.msra.mxu0 %v246
    %1582 = vmatpush.msra.mxu0 %v242
    %1583 = vmatpush.msra.mxu0 %v238
    %1584 = vmatpush.msra.mxu0 %v234
    %1585 = vmatpush.msra.mxu0 %v230
    %1586 = vmatpush.msra.mxu0 %v226
    %1587 = vmatpush.msra.mxu0 %v222
    %1588 = vmatpush.msra.mxu0 %v218
    %1589 = vmatpush.msra.mxu0 %v214
    %1590 = vmatpush.msra.mxu0 %v210
    %1591 = vmatpush.msra.mxu0 %v206
    %1592 = vmatpush.msra.mxu0 %v202
    %1593 = vmatmul.f32.gmra.mxu0 %v1404
    %v1594 = vpop.f32.mrf.mxu0
    %v1595 = vadd.f32 0.0, %v1594
    %1596 = vdwg.mxu0
    %1597 = vmatpush.msra.mxu0 %v263
    %1598 = vmatpush.msra.mxu0 %v259
    %1599 = vmatpush.msra.mxu0 %v255
    %1600 = vmatpush.msra.mxu0 %v251
    %1601 = vmatpush.msra.mxu0 %v247
    %1602 = vmatpush.msra.mxu0 %v243
    %1603 = vmatpush.msra.mxu0 %v239
    %1604 = vmatpush.msra.mxu0 %v235
    %1605 = vmatpush.msra.mxu0 %v231
    %1606 = vmatpush.msra.mxu0 %v227
    %1607 = vmatpush.msra.mxu0 %v223
    %1608 = vmatpush.msra.mxu0 %v219
    %1609 = vmatpush.msra.mxu0 %v215
    %1610 = vmatpush.msra.mxu0 %v211
    %1611 = vmatpush.msra.mxu0 %v207
    %1612 = vmatpush.msra.mxu0 %v203
    %1613 = vmatmul.f32.gmra.mxu0 %v1404
    %v1614 = vpop.f32.mrf.mxu0
    %v1615 = vadd.f32 0.0, %v1614
    %1616 = vdwg.mxu0
    %1617 = vmatpush.msra.mxu0 %v264
    %1618 = vmatpush.msra.mxu0 %v260
    %1619 = vmatpush.msra.mxu0 %v256
    %1620 = vmatpush.msra.mxu0 %v252
    %1621 = vmatpush.msra.mxu0 %v248
    %1622 = vmatpush.msra.mxu0 %v244
    %1623 = vmatpush.msra.mxu0 %v240
    %1624 = vmatpush.msra.mxu0 %v236
    %1625 = vmatpush.msra.mxu0 %v232
    %1626 = vmatpush.msra.mxu0 %v228
    %1627 = vmatpush.msra.mxu0 %v224
    %1628 = vmatpush.msra.mxu0 %v220
    %1629 = vmatpush.msra.mxu0 %v216
    %1630 = vmatpush.msra.mxu0 %v212
    %1631 = vmatpush.msra.mxu0 %v208
    %1632 = vmatpush.msra.mxu0 %v204
    %1633 = vmatmul.f32.gmra.mxu0 %v1404
    %v1634 = vpop.f32.mrf.mxu0
    %v1635 = vadd.f32 0.0, %v1634
    %1636 = vdwg.mxu0
    %1637 = vmatpush.msra.mxu0 %v197
    %1638 = vmatpush.msra.mxu0 %v193
    %1639 = vmatpush.msra.mxu0 %v189
    %1640 = vmatpush.msra.mxu0 %v185
    %1641 = vmatpush.msra.mxu0 %v181
    %1642 = vmatpush.msra.mxu0 %v177
    %1643 = vmatpush.msra.mxu0 %v173
    %1644 = vmatpush.msra.mxu0 %v169
    %1645 = vmatpush.msra.mxu0 %v165
    %1646 = vmatpush.msra.mxu0 %v161
    %1647 = vmatpush.msra.mxu0 %v157
    %1648 = vmatpush.msra.mxu0 %v153
    %1649 = vmatpush.msra.mxu0 %v149
    %1650 = vmatpush.msra.mxu0 %v145
    %1651 = vmatpush.msra.mxu0 %v141
    %1652 = vmatpush.msra.mxu0 %v137
    %1653 = vmatmul.f32.gmra.mxu0 %v1556
    %v1654 = vpop.f32.mrf.mxu0
    %v1655 = vadd.f32 %v1575, %v1654
    %1656 = vdwg.mxu0
    %1657 = vmatpush.msra.mxu0 %v198
    %1658 = vmatpush.msra.mxu0 %v194
    %1659 = vmatpush.msra.mxu0 %v190
    %1660 = vmatpush.msra.mxu0 %v186
    %1661 = vmatpush.msra.mxu0 %v182
    %1662 = vmatpush.msra.mxu0 %v178
    %1663 = vmatpush.msra.mxu0 %v174
    %1664 = vmatpush.msra.mxu0 %v170
    %1665 = vmatpush.msra.mxu0 %v166
    %1666 = vmatpush.msra.mxu0 %v162
    %1667 = vmatpush.msra.mxu0 %v158
    %1668 = vmatpush.msra.mxu0 %v154
    %1669 = vmatpush.msra.mxu0 %v150
    %1670 = vmatpush.msra.mxu0 %v146
    %1671 = vmatpush.msra.mxu0 %v142
    %1672 = vmatpush.msra.mxu0 %v138
    %1673 = vmatmul.f32.gmra.mxu0 %v1556
    %v1674 = vpop.f32.mrf.mxu0
    %v1675 = vadd.f32 %v1595, %v1674
    %1676 = vdwg.mxu0
    %1677 = vmatpush.msra.mxu0 %v199
    %1678 = vmatpush.msra.mxu0 %v195
    %1679 = vmatpush.msra.mxu0 %v191
    %1680 = vmatpush.msra.mxu0 %v187
    %1681 = vmatpush.msra.mxu0 %v183
    %1682 = vmatpush.msra.mxu0 %v179
    %1683 = vmatpush.msra.mxu0 %v175
    %1684 = vmatpush.msra.mxu0 %v171
    %1685 = vmatpush.msra.mxu0 %v167
    %1686 = vmatpush.msra.mxu0 %v163
    %1687 = vmatpush.msra.mxu0 %v159
    %1688 = vmatpush.msra.mxu0 %v155
    %1689 = vmatpush.msra.mxu0 %v151
    %1690 = vmatpush.msra.mxu0 %v147
    %1691 = vmatpush.msra.mxu0 %v143
    %1692 = vmatpush.msra.mxu0 %v139
    %1693 = vmatmul.f32.gmra.mxu0 %v1556
    %v1694 = vpop.f32.mrf.mxu0
    %v1695 = vadd.f32 %v1615, %v1694
    %1696 = vdwg.mxu0
    %1697 = vmatpush.msra.mxu0 %v200
    %1698 = vmatpush.msra.mxu0 %v196
    %1699 = vmatpush.msra.mxu0 %v192
    %1700 = vmatpush.msra.mxu0 %v188
    %1701 = vmatpush.msra.mxu0 %v184
    %1702 = vmatpush.msra.mxu0 %v180
    %1703 = vmatpush.msra.mxu0 %v176
    %1704 = vmatpush.msra.mxu0 %v172
    %1705 = vmatpush.msra.mxu0 %v168
    %1706 = vmatpush.msra.mxu0 %v164
    %1707 = vmatpush.msra.mxu0 %v160
    %1708 = vmatpush.msra.mxu0 %v156
    %1709 = vmatpush.msra.mxu0 %v152
    %1710 = vmatpush.msra.mxu0 %v148
    %1711 = vmatpush.msra.mxu0 %v144
    %1712 = vmatpush.msra.mxu0 %v140
    %1713 = vmatmul.f32.gmra.mxu0 %v1556
    %v1714 = vpop.f32.mrf.mxu0
    %v1715 = vadd.f32 %v1635, %v1714
    %1716 = vdwg.mxu0
    %v1717 = vadd.f32 %v1655, %v265
    %v1718 = vadd.f32 %v1675, %v266
    %v1719 = vadd.f32 %v1695, %v267
    %v1720 = vadd.f32 %v1715, %v268
    %v1721 = vxor.u32 %v1717, 2147483648
    %v1722 = vmul.f32 %v1721, 1.442695
    %v1723 = vpow.pop %v1722
    %v1724 = vadd.f32 %v1723, 1.0
    %v1725 = vrcp.pop %v1724
    %v1726 = vmul.f32 %v1724, %v1725
    %v1727 = vsub.f32 1.0, %v1726
    %v1728 = vmul.f32 %v1725, %v1727
    %v1729 = vadd.f32 %v1725, %v1728
    %vm1730 = vweird.f32 %v1724
    %vm1731 = vweird.f32 %v1725
    %vm1732 = vmor %vm1730, %vm1731
    %v1733 = vsel %vm1732, %v1725, %v1729
    %v1734 = vand.u32 2147483647, %v1724
    %vm1735 = vcmp.eq.f32.partialorder %v1734, 8.507059e+37
    %v1736 = vand.u32 %v1724, 2147483648
    %v1737 = vor.u32 1.1754944e-38, %v1736
    %v1738 = vsel %vm1735, %v1737, %v1733
    %v1739 = vmul.f32 1.0, %v1738
    %v1740 = vxor.u32 %v1718, 2147483648
    %v1741 = vmul.f32 %v1740, 1.442695
    %v1742 = vpow.pop %v1741
    %v1743 = vadd.f32 %v1742, 1.0
    %v1744 = vrcp.pop %v1743
    %v1745 = vmul.f32 %v1743, %v1744
    %v1746 = vsub.f32 1.0, %v1745
    %v1747 = vmul.f32 %v1744, %v1746
    %v1748 = vadd.f32 %v1744, %v1747
    %vm1749 = vweird.f32 %v1743
    %vm1750 = vweird.f32 %v1744
    %vm1751 = vmor %vm1749, %vm1750
    %v1752 = vsel %vm1751, %v1744, %v1748
    %v1753 = vand.u32 2147483647, %v1743
    %vm1754 = vcmp.eq.f32.partialorder %v1753, 8.507059e+37
    %v1755 = vand.u32 %v1743, 2147483648
    %v1756 = vor.u32 1.1754944e-38, %v1755
    %v1757 = vsel %vm1754, %v1756, %v1752
    %v1758 = vmul.f32 1.0, %v1757
    %v1759 = vtanh.pop %v1719
    %v1760 = vxor.u32 %v1720, 2147483648
    %v1761 = vmul.f32 %v1760, 1.442695
    %v1762 = vpow.pop %v1761
    %v1763 = vadd.f32 %v1762, 1.0
    %v1764 = vrcp.pop %v1763
    %v1765 = vmul.f32 %v1763, %v1764
    %v1766 = vsub.f32 1.0, %v1765
    %v1767 = vmul.f32 %v1764, %v1766
    %v1768 = vadd.f32 %v1764, %v1767
    %vm1769 = vweird.f32 %v1763
    %vm1770 = vweird.f32 %v1764
    %vm1771 = vmor %vm1769, %vm1770
    %v1772 = vsel %vm1771, %v1764, %v1768
    %v1773 = vand.u32 2147483647, %v1763
    %vm1774 = vcmp.eq.f32.partialorder %v1773, 8.507059e+37
    %v1775 = vand.u32 %v1763, 2147483648
    %v1776 = vor.u32 1.1754944e-38, %v1775
    %v1777 = vsel %vm1774, %v1776, %v1772
    %v1778 = vmul.f32 1.0, %v1777
    %v1779 = vmul.f32 %v1758, %v1402
    %v1780 = vmul.f32 %v1739, %v1759
    %v1781 = vadd.f32 %v1779, %v1780
    %v1782 = vtanh.pop %v1781
    %v1783 = vmul.f32 %v1778, %v1782
    %s1784 = scalar_lea.vmem %s0, 128
    %v1785 = vld [vmem:[%s1784] sm:$0xff]
    %v1786 = vld [vmem:[%s1784 + $0x8] sm:$0xff]
    %v1787 = vld [vmem:[%s1784 + $0x10] sm:$0xff]
    %v1788 = vld [vmem:[%s1784 + $0x18] sm:$0xff]
    %1789 = vmatpush.msra.mxu0 %v133
    %1790 = vmatpush.msra.mxu0 %v129
    %1791 = vmatpush.msra.mxu0 %v125
    %1792 = vmatpush.msra.mxu0 %v121
    %1793 = vmatpush.msra.mxu0 %v117
    %1794 = vmatpush.msra.mxu0 %v113
    %1795 = vmatpush.msra.mxu0 %v109
    %1796 = vmatpush.msra.mxu0 %v105
    %1797 = vmatpush.msra.mxu0 %v101
    %1798 = vmatpush.msra.mxu0 %v97
    %1799 = vmatpush.msra.mxu0 %v93
    %1800 = vmatpush.msra.mxu0 %v89
    %1801 = vmatpush.msra.mxu0 %v85
    %1802 = vmatpush.msra.mxu0 %v81
    %1803 = vmatpush.msra.mxu0 %v77
    %1804 = vmatpush.msra.mxu0 %v73
    %1805 = vmatmul.f32.gmra.mxu0 %v1556
    %v1806 = vpop.f32.mrf.mxu0
    %v1807 = vadd.f32 0.0, %v1806
    %1808 = vdwg.mxu0
    %1809 = vmatpush.msra.mxu0 %v134
    %1810 = vmatpush.msra.mxu0 %v130
    %1811 = vmatpush.msra.mxu0 %v126
    %1812 = vmatpush.msra.mxu0 %v122
    %1813 = vmatpush.msra.mxu0 %v118
    %1814 = vmatpush.msra.mxu0 %v114
    %1815 = vmatpush.msra.mxu0 %v110
    %1816 = vmatpush.msra.mxu0 %v106
    %1817 = vmatpush.msra.mxu0 %v102
    %1818 = vmatpush.msra.mxu0 %v98
    %1819 = vmatpush.msra.mxu0 %v94
    %1820 = vmatpush.msra.mxu0 %v90
    %1821 = vmatpush.msra.mxu0 %v86
    %1822 = vmatpush.msra.mxu0 %v82
    %1823 = vmatpush.msra.mxu0 %v78
    %1824 = vmatpush.msra.mxu0 %v74
    %1825 = vmatmul.f32.gmra.mxu0 %v1556
    %v1826 = vpop.f32.mrf.mxu0
    %v1827 = vadd.f32 0.0, %v1826
    %1828 = vdwg.mxu0
    %1829 = vmatpush.msra.mxu0 %v135
    %1830 = vmatpush.msra.mxu0 %v131
    %1831 = vmatpush.msra.mxu0 %v127
    %1832 = vmatpush.msra.mxu0 %v123
    %1833 = vmatpush.msra.mxu0 %v119
    %1834 = vmatpush.msra.mxu0 %v115
    %1835 = vmatpush.msra.mxu0 %v111
    %1836 = vmatpush.msra.mxu0 %v107
    %1837 = vmatpush.msra.mxu0 %v103
    %1838 = vmatpush.msra.mxu0 %v99
    %1839 = vmatpush.msra.mxu0 %v95
    %1840 = vmatpush.msra.mxu0 %v91
    %1841 = vmatpush.msra.mxu0 %v87
    %1842 = vmatpush.msra.mxu0 %v83
    %1843 = vmatpush.msra.mxu0 %v79
    %1844 = vmatpush.msra.mxu0 %v75
    %1845 = vmatmul.f32.gmra.mxu0 %v1556
    %v1846 = vpop.f32.mrf.mxu0
    %v1847 = vadd.f32 0.0, %v1846
    %1848 = vdwg.mxu0
    %1849 = vmatpush.msra.mxu0 %v136
    %1850 = vmatpush.msra.mxu0 %v132
    %1851 = vmatpush.msra.mxu0 %v128
    %1852 = vmatpush.msra.mxu0 %v124
    %1853 = vmatpush.msra.mxu0 %v120
    %1854 = vmatpush.msra.mxu0 %v116
    %1855 = vmatpush.msra.mxu0 %v112
    %1856 = vmatpush.msra.mxu0 %v108
    %1857 = vmatpush.msra.mxu0 %v104
    %1858 = vmatpush.msra.mxu0 %v100
    %1859 = vmatpush.msra.mxu0 %v96
    %1860 = vmatpush.msra.mxu0 %v92
    %1861 = vmatpush.msra.mxu0 %v88
    %1862 = vmatpush.msra.mxu0 %v84
    %1863 = vmatpush.msra.mxu0 %v80
    %1864 = vmatpush.msra.mxu0 %v76
    %1865 = vmatmul.f32.gmra.mxu0 %v1556
    %v1866 = vpop.f32.mrf.mxu0
    %v1867 = vadd.f32 0.0, %v1866
    %1868 = vdwg.mxu0
    %v1869 = vadd.f32 %v1785, %v1807
    %v1870 = vadd.f32 %v1786, %v1827
    %v1871 = vadd.f32 %v1787, %v1847
    %v1872 = vadd.f32 %v1788, %v1867
    %v1873 = vxor.u32 %v1869, 2147483648
    %v1874 = vmul.f32 %v1873, 1.442695
    %v1875 = vpow.pop %v1874
    %v1876 = vadd.f32 %v1875, 1.0
    %v1877 = vrcp.pop %v1876
    %v1878 = vmul.f32 %v1876, %v1877
    %v1879 = vsub.f32 1.0, %v1878
    %v1880 = vmul.f32 %v1877, %v1879
    %v1881 = vadd.f32 %v1877, %v1880
    %vm1882 = vweird.f32 %v1876
    %vm1883 = vweird.f32 %v1877
    %vm1884 = vmor %vm1882, %vm1883
    %v1885 = vsel %vm1884, %v1877, %v1881
    %v1886 = vand.u32 2147483647, %v1876
    %vm1887 = vcmp.eq.f32.partialorder %v1886, 8.507059e+37
    %v1888 = vand.u32 %v1876, 2147483648
    %v1889 = vor.u32 1.1754944e-38, %v1888
    %v1890 = vsel %vm1887, %v1889, %v1885
    %v1891 = vmul.f32 1.0, %v1890
    %v1892 = vxor.u32 %v1870, 2147483648
    %v1893 = vmul.f32 %v1892, 1.442695
    %v1894 = vpow.pop %v1893
    %v1895 = vadd.f32 %v1894, 1.0
    %v1896 = vrcp.pop %v1895
    %v1897 = vmul.f32 %v1895, %v1896
    %v1898 = vsub.f32 1.0, %v1897
    %v1899 = vmul.f32 %v1896, %v1898
    %v1900 = vadd.f32 %v1896, %v1899
    %vm1901 = vweird.f32 %v1895
    %vm1902 = vweird.f32 %v1896
    %vm1903 = vmor %vm1901, %vm1902
    %v1904 = vsel %vm1903, %v1896, %v1900
    %v1905 = vand.u32 2147483647, %v1895
    %vm1906 = vcmp.eq.f32.partialorder %v1905, 8.507059e+37
    %v1907 = vand.u32 %v1895, 2147483648
    %v1908 = vor.u32 1.1754944e-38, %v1907
    %v1909 = vsel %vm1906, %v1908, %v1904
    %v1910 = vmul.f32 1.0, %v1909
    %v1911 = vtanh.pop %v1871
    %v1912 = vxor.u32 %v1872, 2147483648
    %v1913 = vmul.f32 %v1912, 1.442695
    %v1914 = vpow.pop %v1913
    %v1915 = vadd.f32 %v1914, 1.0
    %v1916 = vrcp.pop %v1915
    %v1917 = vmul.f32 %v1915, %v1916
    %v1918 = vsub.f32 1.0, %v1917
    %v1919 = vmul.f32 %v1916, %v1918
    %v1920 = vadd.f32 %v1916, %v1919
    %vm1921 = vweird.f32 %v1915
    %vm1922 = vweird.f32 %v1916
    %vm1923 = vmor %vm1921, %vm1922
    %v1924 = vsel %vm1923, %v1916, %v1920
    %v1925 = vand.u32 2147483647, %v1915
    %vm1926 = vcmp.eq.f32.partialorder %v1925, 8.507059e+37
    %v1927 = vand.u32 %v1915, 2147483648
    %v1928 = vor.u32 1.1754944e-38, %v1927
    %v1929 = vsel %vm1926, %v1928, %v1924
    %v1930 = vmul.f32 1.0, %v1929
    %v1931 = vmul.f32 %v1910, %v1554
    %v1932 = vmul.f32 %v1891, %v1911
    %v1933 = vadd.f32 %v1931, %v1932
    %v1934 = vtanh.pop %v1933
    %v1935 = vmul.f32 %v1930, %v1934
    %1936 = vmatpush.msra.mxu0 %v261
    %1937 = vmatpush.msra.mxu0 %v257
    %1938 = vmatpush.msra.mxu0 %v253
    %1939 = vmatpush.msra.mxu0 %v249
    %1940 = vmatpush.msra.mxu0 %v245
    %1941 = vmatpush.msra.mxu0 %v241
    %1942 = vmatpush.msra.mxu0 %v237
    %1943 = vmatpush.msra.mxu0 %v233
    %1944 = vmatpush.msra.mxu0 %v229
    %1945 = vmatpush.msra.mxu0 %v225
    %1946 = vmatpush.msra.mxu0 %v221
    %1947 = vmatpush.msra.mxu0 %v217
    %1948 = vmatpush.msra.mxu0 %v213
    %1949 = vmatpush.msra.mxu0 %v209
    %1950 = vmatpush.msra.mxu0 %v205
    %1951 = vmatpush.msra.mxu0 %v201
    %1952 = vmatmul.f32.gmra.mxu0 %v1783
    %v1953 = vpop.f32.mrf.mxu0
    %v1954 = vadd.f32 0.0, %v1953
    %1955 = vdwg.mxu0
    %1956 = vmatpush.msra.mxu0 %v262
    %1957 = vmatpush.msra.mxu0 %v258
    %1958 = vmatpush.msra.mxu0 %v254
    %1959 = vmatpush.msra.mxu0 %v250
    %1960 = vmatpush.msra.mxu0 %v246
    %1961 = vmatpush.msra.mxu0 %v242
    %1962 = vmatpush.msra.mxu0 %v238
    %1963 = vmatpush.msra.mxu0 %v234
    %1964 = vmatpush.msra.mxu0 %v230
    %1965 = vmatpush.msra.mxu0 %v226
    %1966 = vmatpush.msra.mxu0 %v222
    %1967 = vmatpush.msra.mxu0 %v218
    %1968 = vmatpush.msra.mxu0 %v214
    %1969 = vmatpush.msra.mxu0 %v210
    %1970 = vmatpush.msra.mxu0 %v206
    %1971 = vmatpush.msra.mxu0 %v202
    %1972 = vmatmul.f32.gmra.mxu0 %v1783
    %v1973 = vpop.f32.mrf.mxu0
    %v1974 = vadd.f32 0.0, %v1973
    %1975 = vdwg.mxu0
    %1976 = vmatpush.msra.mxu0 %v263
    %1977 = vmatpush.msra.mxu0 %v259
    %1978 = vmatpush.msra.mxu0 %v255
    %1979 = vmatpush.msra.mxu0 %v251
    %1980 = vmatpush.msra.mxu0 %v247
    %1981 = vmatpush.msra.mxu0 %v243
    %1982 = vmatpush.msra.mxu0 %v239
    %1983 = vmatpush.msra.mxu0 %v235
    %1984 = vmatpush.msra.mxu0 %v231
    %1985 = vmatpush.msra.mxu0 %v227
    %1986 = vmatpush.msra.mxu0 %v223
    %1987 = vmatpush.msra.mxu0 %v219
    %1988 = vmatpush.msra.mxu0 %v215
    %1989 = vmatpush.msra.mxu0 %v211
    %1990 = vmatpush.msra.mxu0 %v207
    %1991 = vmatpush.msra.mxu0 %v203
    %1992 = vmatmul.f32.gmra.mxu0 %v1783
    %v1993 = vpop.f32.mrf.mxu0
    %v1994 = vadd.f32 0.0, %v1993
    %1995 = vdwg.mxu0
    %1996 = vmatpush.msra.mxu0 %v264
    %1997 = vmatpush.msra.mxu0 %v260
    %1998 = vmatpush.msra.mxu0 %v256
    %1999 = vmatpush.msra.mxu0 %v252
    %2000 = vmatpush.msra.mxu0 %v248
    %2001 = vmatpush.msra.mxu0 %v244
    %2002 = vmatpush.msra.mxu0 %v240
    %2003 = vmatpush.msra.mxu0 %v236
    %2004 = vmatpush.msra.mxu0 %v232
    %2005 = vmatpush.msra.mxu0 %v228
    %2006 = vmatpush.msra.mxu0 %v224
    %2007 = vmatpush.msra.mxu0 %v220
    %2008 = vmatpush.msra.mxu0 %v216
    %2009 = vmatpush.msra.mxu0 %v212
    %2010 = vmatpush.msra.mxu0 %v208
    %2011 = vmatpush.msra.mxu0 %v204
    %2012 = vmatmul.f32.gmra.mxu0 %v1783
    %v2013 = vpop.f32.mrf.mxu0
    %v2014 = vadd.f32 0.0, %v2013
    %2015 = vdwg.mxu0
    %2016 = vmatpush.msra.mxu0 %v197
    %2017 = vmatpush.msra.mxu0 %v193
    %2018 = vmatpush.msra.mxu0 %v189
    %2019 = vmatpush.msra.mxu0 %v185
    %2020 = vmatpush.msra.mxu0 %v181
    %2021 = vmatpush.msra.mxu0 %v177
    %2022 = vmatpush.msra.mxu0 %v173
    %2023 = vmatpush.msra.mxu0 %v169
    %2024 = vmatpush.msra.mxu0 %v165
    %2025 = vmatpush.msra.mxu0 %v161
    %2026 = vmatpush.msra.mxu0 %v157
    %2027 = vmatpush.msra.mxu0 %v153
    %2028 = vmatpush.msra.mxu0 %v149
    %2029 = vmatpush.msra.mxu0 %v145
    %2030 = vmatpush.msra.mxu0 %v141
    %2031 = vmatpush.msra.mxu0 %v137
    %2032 = vmatmul.f32.gmra.mxu0 %v1935
    %v2033 = vpop.f32.mrf.mxu0
    %v2034 = vadd.f32 %v1954, %v2033
    %2035 = vdwg.mxu0
    %2036 = vmatpush.msra.mxu0 %v198
    %2037 = vmatpush.msra.mxu0 %v194
    %2038 = vmatpush.msra.mxu0 %v190
    %2039 = vmatpush.msra.mxu0 %v186
    %2040 = vmatpush.msra.mxu0 %v182
    %2041 = vmatpush.msra.mxu0 %v178
    %2042 = vmatpush.msra.mxu0 %v174
    %2043 = vmatpush.msra.mxu0 %v170
    %2044 = vmatpush.msra.mxu0 %v166
    %2045 = vmatpush.msra.mxu0 %v162
    %2046 = vmatpush.msra.mxu0 %v158
    %2047 = vmatpush.msra.mxu0 %v154
    %2048 = vmatpush.msra.mxu0 %v150
    %2049 = vmatpush.msra.mxu0 %v146
    %2050 = vmatpush.msra.mxu0 %v142
    %2051 = vmatpush.msra.mxu0 %v138
    %2052 = vmatmul.f32.gmra.mxu0 %v1935
    %v2053 = vpop.f32.mrf.mxu0
    %v2054 = vadd.f32 %v1974, %v2053
    %2055 = vdwg.mxu0
    %2056 = vmatpush.msra.mxu0 %v199
    %2057 = vmatpush.msra.mxu0 %v195
    %2058 = vmatpush.msra.mxu0 %v191
    %2059 = vmatpush.msra.mxu0 %v187
    %2060 = vmatpush.msra.mxu0 %v183
    %2061 = vmatpush.msra.mxu0 %v179
    %2062 = vmatpush.msra.mxu0 %v175
    %2063 = vmatpush.msra.mxu0 %v171
    %2064 = vmatpush.msra.mxu0 %v167
    %2065 = vmatpush.msra.mxu0 %v163
    %2066 = vmatpush.msra.mxu0 %v159
    %2067 = vmatpush.msra.mxu0 %v155
    %2068 = vmatpush.msra.mxu0 %v151
    %2069 = vmatpush.msra.mxu0 %v147
    %2070 = vmatpush.msra.mxu0 %v143
    %2071 = vmatpush.msra.mxu0 %v139
    %2072 = vmatmul.f32.gmra.mxu0 %v1935
    %v2073 = vpop.f32.mrf.mxu0
    %v2074 = vadd.f32 %v1994, %v2073
    %2075 = vdwg.mxu0
    %2076 = vmatpush.msra.mxu0 %v200
    %2077 = vmatpush.msra.mxu0 %v196
    %2078 = vmatpush.msra.mxu0 %v192
    %2079 = vmatpush.msra.mxu0 %v188
    %2080 = vmatpush.msra.mxu0 %v184
    %2081 = vmatpush.msra.mxu0 %v180
    %2082 = vmatpush.msra.mxu0 %v176
    %2083 = vmatpush.msra.mxu0 %v172
    %2084 = vmatpush.msra.mxu0 %v168
    %2085 = vmatpush.msra.mxu0 %v164
    %2086 = vmatpush.msra.mxu0 %v160
    %2087 = vmatpush.msra.mxu0 %v156
    %2088 = vmatpush.msra.mxu0 %v152
    %2089 = vmatpush.msra.mxu0 %v148
    %2090 = vmatpush.msra.mxu0 %v144
    %2091 = vmatpush.msra.mxu0 %v140
    %2092 = vmatmul.f32.gmra.mxu0 %v1935
    %v2093 = vpop.f32.mrf.mxu0
    %v2094 = vadd.f32 %v2014, %v2093
    %2095 = vdwg.mxu0
    %v2096 = vadd.f32 %v2034, %v265
    %v2097 = vadd.f32 %v2054, %v266
    %v2098 = vadd.f32 %v2074, %v267
    %v2099 = vadd.f32 %v2094, %v268
    %v2100 = vxor.u32 %v2096, 2147483648
    %v2101 = vmul.f32 %v2100, 1.442695
    %v2102 = vpow.pop %v2101
    %v2103 = vadd.f32 %v2102, 1.0
    %v2104 = vrcp.pop %v2103
    %v2105 = vmul.f32 %v2103, %v2104
    %v2106 = vsub.f32 1.0, %v2105
    %v2107 = vmul.f32 %v2104, %v2106
    %v2108 = vadd.f32 %v2104, %v2107
    %vm2109 = vweird.f32 %v2103
    %vm2110 = vweird.f32 %v2104
    %vm2111 = vmor %vm2109, %vm2110
    %v2112 = vsel %vm2111, %v2104, %v2108
    %v2113 = vand.u32 2147483647, %v2103
    %vm2114 = vcmp.eq.f32.partialorder %v2113, 8.507059e+37
    %v2115 = vand.u32 %v2103, 2147483648
    %v2116 = vor.u32 1.1754944e-38, %v2115
    %v2117 = vsel %vm2114, %v2116, %v2112
    %v2118 = vmul.f32 1.0, %v2117
    %v2119 = vxor.u32 %v2097, 2147483648
    %v2120 = vmul.f32 %v2119, 1.442695
    %v2121 = vpow.pop %v2120
    %v2122 = vadd.f32 %v2121, 1.0
    %v2123 = vrcp.pop %v2122
    %v2124 = vmul.f32 %v2122, %v2123
    %v2125 = vsub.f32 1.0, %v2124
    %v2126 = vmul.f32 %v2123, %v2125
    %v2127 = vadd.f32 %v2123, %v2126
    %vm2128 = vweird.f32 %v2122
    %vm2129 = vweird.f32 %v2123
    %vm2130 = vmor %vm2128, %vm2129
    %v2131 = vsel %vm2130, %v2123, %v2127
    %v2132 = vand.u32 2147483647, %v2122
    %vm2133 = vcmp.eq.f32.partialorder %v2132, 8.507059e+37
    %v2134 = vand.u32 %v2122, 2147483648
    %v2135 = vor.u32 1.1754944e-38, %v2134
    %v2136 = vsel %vm2133, %v2135, %v2131
    %v2137 = vmul.f32 1.0, %v2136
    %v2138 = vtanh.pop %v2098
    %v2139 = vxor.u32 %v2099, 2147483648
    %v2140 = vmul.f32 %v2139, 1.442695
    %v2141 = vpow.pop %v2140
    %v2142 = vadd.f32 %v2141, 1.0
    %v2143 = vrcp.pop %v2142
    %v2144 = vmul.f32 %v2142, %v2143
    %v2145 = vsub.f32 1.0, %v2144
    %v2146 = vmul.f32 %v2143, %v2145
    %v2147 = vadd.f32 %v2143, %v2146
    %vm2148 = vweird.f32 %v2142
    %vm2149 = vweird.f32 %v2143
    %vm2150 = vmor %vm2148, %vm2149
    %v2151 = vsel %vm2150, %v2143, %v2147
    %v2152 = vand.u32 2147483647, %v2142
    %vm2153 = vcmp.eq.f32.partialorder %v2152, 8.507059e+37
    %v2154 = vand.u32 %v2142, 2147483648
    %v2155 = vor.u32 1.1754944e-38, %v2154
    %v2156 = vsel %vm2153, %v2155, %v2151
    %v2157 = vmul.f32 1.0, %v2156
    %v2158 = vmul.f32 %v2137, %v1781
    %v2159 = vmul.f32 %v2118, %v2138
    %v2160 = vadd.f32 %v2158, %v2159
    %v2161 = vtanh.pop %v2160
    %v2162 = vmul.f32 %v2157, %v2161
    %s2163 = scalar_lea.vmem %s0, 160
    %v2164 = vld [vmem:[%s2163] sm:$0xff]
    %v2165 = vld [vmem:[%s2163 + $0x8] sm:$0xff]
    %v2166 = vld [vmem:[%s2163 + $0x10] sm:$0xff]
    %v2167 = vld [vmem:[%s2163 + $0x18] sm:$0xff]
    %2168 = vmatpush.msra.mxu0 %v133
    %2169 = vmatpush.msra.mxu0 %v129
    %2170 = vmatpush.msra.mxu0 %v125
    %2171 = vmatpush.msra.mxu0 %v121
    %2172 = vmatpush.msra.mxu0 %v117
    %2173 = vmatpush.msra.mxu0 %v113
    %2174 = vmatpush.msra.mxu0 %v109
    %2175 = vmatpush.msra.mxu0 %v105
    %2176 = vmatpush.msra.mxu0 %v101
    %2177 = vmatpush.msra.mxu0 %v97
    %2178 = vmatpush.msra.mxu0 %v93
    %2179 = vmatpush.msra.mxu0 %v89
    %2180 = vmatpush.msra.mxu0 %v85
    %2181 = vmatpush.msra.mxu0 %v81
    %2182 = vmatpush.msra.mxu0 %v77
    %2183 = vmatpush.msra.mxu0 %v73
    %2184 = vmatmul.f32.gmra.mxu0 %v1935
    %v2185 = vpop.f32.mrf.mxu0
    %v2186 = vadd.f32 0.0, %v2185
    %2187 = vdwg.mxu0
    %2188 = vmatpush.msra.mxu0 %v134
    %2189 = vmatpush.msra.mxu0 %v130
    %2190 = vmatpush.msra.mxu0 %v126
    %2191 = vmatpush.msra.mxu0 %v122
    %2192 = vmatpush.msra.mxu0 %v118
    %2193 = vmatpush.msra.mxu0 %v114
    %2194 = vmatpush.msra.mxu0 %v110
    %2195 = vmatpush.msra.mxu0 %v106
    %2196 = vmatpush.msra.mxu0 %v102
    %2197 = vmatpush.msra.mxu0 %v98
    %2198 = vmatpush.msra.mxu0 %v94
    %2199 = vmatpush.msra.mxu0 %v90
    %2200 = vmatpush.msra.mxu0 %v86
    %2201 = vmatpush.msra.mxu0 %v82
    %2202 = vmatpush.msra.mxu0 %v78
    %2203 = vmatpush.msra.mxu0 %v74
    %2204 = vmatmul.f32.gmra.mxu0 %v1935
    %v2205 = vpop.f32.mrf.mxu0
    %v2206 = vadd.f32 0.0, %v2205
    %2207 = vdwg.mxu0
    %2208 = vmatpush.msra.mxu0 %v135
    %2209 = vmatpush.msra.mxu0 %v131
    %2210 = vmatpush.msra.mxu0 %v127
    %2211 = vmatpush.msra.mxu0 %v123
    %2212 = vmatpush.msra.mxu0 %v119
    %2213 = vmatpush.msra.mxu0 %v115
    %2214 = vmatpush.msra.mxu0 %v111
    %2215 = vmatpush.msra.mxu0 %v107
    %2216 = vmatpush.msra.mxu0 %v103
    %2217 = vmatpush.msra.mxu0 %v99
    %2218 = vmatpush.msra.mxu0 %v95
    %2219 = vmatpush.msra.mxu0 %v91
    %2220 = vmatpush.msra.mxu0 %v87
    %2221 = vmatpush.msra.mxu0 %v83
    %2222 = vmatpush.msra.mxu0 %v79
    %2223 = vmatpush.msra.mxu0 %v75
    %2224 = vmatmul.f32.gmra.mxu0 %v1935
    %v2225 = vpop.f32.mrf.mxu0
    %v2226 = vadd.f32 0.0, %v2225
    %2227 = vdwg.mxu0
    %2228 = vmatpush.msra.mxu0 %v136
    %2229 = vmatpush.msra.mxu0 %v132
    %2230 = vmatpush.msra.mxu0 %v128
    %2231 = vmatpush.msra.mxu0 %v124
    %2232 = vmatpush.msra.mxu0 %v120
    %2233 = vmatpush.msra.mxu0 %v116
    %2234 = vmatpush.msra.mxu0 %v112
    %2235 = vmatpush.msra.mxu0 %v108
    %2236 = vmatpush.msra.mxu0 %v104
    %2237 = vmatpush.msra.mxu0 %v100
    %2238 = vmatpush.msra.mxu0 %v96
    %2239 = vmatpush.msra.mxu0 %v92
    %2240 = vmatpush.msra.mxu0 %v88
    %2241 = vmatpush.msra.mxu0 %v84
    %2242 = vmatpush.msra.mxu0 %v80
    %2243 = vmatpush.msra.mxu0 %v76
    %2244 = vmatmul.f32.gmra.mxu0 %v1935
    %v2245 = vpop.f32.mrf.mxu0
    %v2246 = vadd.f32 0.0, %v2245
    %2247 = vdwg.mxu0
    %v2248 = vadd.f32 %v2164, %v2186
    %v2249 = vadd.f32 %v2165, %v2206
    %v2250 = vadd.f32 %v2166, %v2226
    %v2251 = vadd.f32 %v2167, %v2246
    %v2252 = vxor.u32 %v2248, 2147483648
    %v2253 = vmul.f32 %v2252, 1.442695
    %v2254 = vpow.pop %v2253
    %v2255 = vadd.f32 %v2254, 1.0
    %v2256 = vrcp.pop %v2255
    %v2257 = vmul.f32 %v2255, %v2256
    %v2258 = vsub.f32 1.0, %v2257
    %v2259 = vmul.f32 %v2256, %v2258
    %v2260 = vadd.f32 %v2256, %v2259
    %vm2261 = vweird.f32 %v2255
    %vm2262 = vweird.f32 %v2256
    %vm2263 = vmor %vm2261, %vm2262
    %v2264 = vsel %vm2263, %v2256, %v2260
    %v2265 = vand.u32 2147483647, %v2255
    %vm2266 = vcmp.eq.f32.partialorder %v2265, 8.507059e+37
    %v2267 = vand.u32 %v2255, 2147483648
    %v2268 = vor.u32 1.1754944e-38, %v2267
    %v2269 = vsel %vm2266, %v2268, %v2264
    %v2270 = vmul.f32 1.0, %v2269
    %v2271 = vxor.u32 %v2249, 2147483648
    %v2272 = vmul.f32 %v2271, 1.442695
    %v2273 = vpow.pop %v2272
    %v2274 = vadd.f32 %v2273, 1.0
    %v2275 = vrcp.pop %v2274
    %v2276 = vmul.f32 %v2274, %v2275
    %v2277 = vsub.f32 1.0, %v2276
    %v2278 = vmul.f32 %v2275, %v2277
    %v2279 = vadd.f32 %v2275, %v2278
    %vm2280 = vweird.f32 %v2274
    %vm2281 = vweird.f32 %v2275
    %vm2282 = vmor %vm2280, %vm2281
    %v2283 = vsel %vm2282, %v2275, %v2279
    %v2284 = vand.u32 2147483647, %v2274
    %vm2285 = vcmp.eq.f32.partialorder %v2284, 8.507059e+37
    %v2286 = vand.u32 %v2274, 2147483648
    %v2287 = vor.u32 1.1754944e-38, %v2286
    %v2288 = vsel %vm2285, %v2287, %v2283
    %v2289 = vmul.f32 1.0, %v2288
    %v2290 = vtanh.pop %v2250
    %v2291 = vxor.u32 %v2251, 2147483648
    %v2292 = vmul.f32 %v2291, 1.442695
    %v2293 = vpow.pop %v2292
    %v2294 = vadd.f32 %v2293, 1.0
    %v2295 = vrcp.pop %v2294
    %v2296 = vmul.f32 %v2294, %v2295
    %v2297 = vsub.f32 1.0, %v2296
    %v2298 = vmul.f32 %v2295, %v2297
    %v2299 = vadd.f32 %v2295, %v2298
    %vm2300 = vweird.f32 %v2294
    %vm2301 = vweird.f32 %v2295
    %vm2302 = vmor %vm2300, %vm2301
    %v2303 = vsel %vm2302, %v2295, %v2299
    %v2304 = vand.u32 2147483647, %v2294
    %vm2305 = vcmp.eq.f32.partialorder %v2304, 8.507059e+37
    %v2306 = vand.u32 %v2294, 2147483648
    %v2307 = vor.u32 1.1754944e-38, %v2306
    %v2308 = vsel %vm2305, %v2307, %v2303
    %v2309 = vmul.f32 1.0, %v2308
    %v2310 = vmul.f32 %v2289, %v1933
    %v2311 = vmul.f32 %v2270, %v2290
    %v2312 = vadd.f32 %v2310, %v2311
    %v2313 = vtanh.pop %v2312
    %v2314 = vmul.f32 %v2309, %v2313
    %2315 = vmatpush.msra.mxu0 %v261
    %2316 = vmatpush.msra.mxu0 %v257
    %2317 = vmatpush.msra.mxu0 %v253
    %2318 = vmatpush.msra.mxu0 %v249
    %2319 = vmatpush.msra.mxu0 %v245
    %2320 = vmatpush.msra.mxu0 %v241
    %2321 = vmatpush.msra.mxu0 %v237
    %2322 = vmatpush.msra.mxu0 %v233
    %2323 = vmatpush.msra.mxu0 %v229
    %2324 = vmatpush.msra.mxu0 %v225
    %2325 = vmatpush.msra.mxu0 %v221
    %2326 = vmatpush.msra.mxu0 %v217
    %2327 = vmatpush.msra.mxu0 %v213
    %2328 = vmatpush.msra.mxu0 %v209
    %2329 = vmatpush.msra.mxu0 %v205
    %2330 = vmatpush.msra.mxu0 %v201
    %2331 = vmatmul.f32.gmra.mxu0 %v2162
    %v2332 = vpop.f32.mrf.mxu0
    %v2333 = vadd.f32 0.0, %v2332
    %2334 = vdwg.mxu0
    %2335 = vmatpush.msra.mxu0 %v262
    %2336 = vmatpush.msra.mxu0 %v258
    %2337 = vmatpush.msra.mxu0 %v254
    %2338 = vmatpush.msra.mxu0 %v250
    %2339 = vmatpush.msra.mxu0 %v246
    %2340 = vmatpush.msra.mxu0 %v242
    %2341 = vmatpush.msra.mxu0 %v238
    %2342 = vmatpush.msra.mxu0 %v234
    %2343 = vmatpush.msra.mxu0 %v230
    %2344 = vmatpush.msra.mxu0 %v226
    %2345 = vmatpush.msra.mxu0 %v222
    %2346 = vmatpush.msra.mxu0 %v218
    %2347 = vmatpush.msra.mxu0 %v214
    %2348 = vmatpush.msra.mxu0 %v210
    %2349 = vmatpush.msra.mxu0 %v206
    %2350 = vmatpush.msra.mxu0 %v202
    %2351 = vmatmul.f32.gmra.mxu0 %v2162
    %v2352 = vpop.f32.mrf.mxu0
    %v2353 = vadd.f32 0.0, %v2352
    %2354 = vdwg.mxu0
    %2355 = vmatpush.msra.mxu0 %v263
    %2356 = vmatpush.msra.mxu0 %v259
    %2357 = vmatpush.msra.mxu0 %v255
    %2358 = vmatpush.msra.mxu0 %v251
    %2359 = vmatpush.msra.mxu0 %v247
    %2360 = vmatpush.msra.mxu0 %v243
    %2361 = vmatpush.msra.mxu0 %v239
    %2362 = vmatpush.msra.mxu0 %v235
    %2363 = vmatpush.msra.mxu0 %v231
    %2364 = vmatpush.msra.mxu0 %v227
    %2365 = vmatpush.msra.mxu0 %v223
    %2366 = vmatpush.msra.mxu0 %v219
    %2367 = vmatpush.msra.mxu0 %v215
    %2368 = vmatpush.msra.mxu0 %v211
    %2369 = vmatpush.msra.mxu0 %v207
    %2370 = vmatpush.msra.mxu0 %v203
    %2371 = vmatmul.f32.gmra.mxu0 %v2162
    %v2372 = vpop.f32.mrf.mxu0
    %v2373 = vadd.f32 0.0, %v2372
    %2374 = vdwg.mxu0
    %2375 = vmatpush.msra.mxu0 %v264
    %2376 = vmatpush.msra.mxu0 %v260
    %2377 = vmatpush.msra.mxu0 %v256
    %2378 = vmatpush.msra.mxu0 %v252
    %2379 = vmatpush.msra.mxu0 %v248
    %2380 = vmatpush.msra.mxu0 %v244
    %2381 = vmatpush.msra.mxu0 %v240
    %2382 = vmatpush.msra.mxu0 %v236
    %2383 = vmatpush.msra.mxu0 %v232
    %2384 = vmatpush.msra.mxu0 %v228
    %2385 = vmatpush.msra.mxu0 %v224
    %2386 = vmatpush.msra.mxu0 %v220
    %2387 = vmatpush.msra.mxu0 %v216
    %2388 = vmatpush.msra.mxu0 %v212
    %2389 = vmatpush.msra.mxu0 %v208
    %2390 = vmatpush.msra.mxu0 %v204
    %2391 = vmatmul.f32.gmra.mxu0 %v2162
    %v2392 = vpop.f32.mrf.mxu0
    %v2393 = vadd.f32 0.0, %v2392
    %2394 = vdwg.mxu0
    %2395 = vmatpush.msra.mxu0 %v197
    %2396 = vmatpush.msra.mxu0 %v193
    %2397 = vmatpush.msra.mxu0 %v189
    %2398 = vmatpush.msra.mxu0 %v185
    %2399 = vmatpush.msra.mxu0 %v181
    %2400 = vmatpush.msra.mxu0 %v177
    %2401 = vmatpush.msra.mxu0 %v173
    %2402 = vmatpush.msra.mxu0 %v169
    %2403 = vmatpush.msra.mxu0 %v165
    %2404 = vmatpush.msra.mxu0 %v161
    %2405 = vmatpush.msra.mxu0 %v157
    %2406 = vmatpush.msra.mxu0 %v153
    %2407 = vmatpush.msra.mxu0 %v149
    %2408 = vmatpush.msra.mxu0 %v145
    %2409 = vmatpush.msra.mxu0 %v141
    %2410 = vmatpush.msra.mxu0 %v137
    %2411 = vmatmul.f32.gmra.mxu0 %v2314
    %v2412 = vpop.f32.mrf.mxu0
    %v2413 = vadd.f32 %v2333, %v2412
    %2414 = vdwg.mxu0
    %2415 = vmatpush.msra.mxu0 %v198
    %2416 = vmatpush.msra.mxu0 %v194
    %2417 = vmatpush.msra.mxu0 %v190
    %2418 = vmatpush.msra.mxu0 %v186
    %2419 = vmatpush.msra.mxu0 %v182
    %2420 = vmatpush.msra.mxu0 %v178
    %2421 = vmatpush.msra.mxu0 %v174
    %2422 = vmatpush.msra.mxu0 %v170
    %2423 = vmatpush.msra.mxu0 %v166
    %2424 = vmatpush.msra.mxu0 %v162
    %2425 = vmatpush.msra.mxu0 %v158
    %2426 = vmatpush.msra.mxu0 %v154
    %2427 = vmatpush.msra.mxu0 %v150
    %2428 = vmatpush.msra.mxu0 %v146
    %2429 = vmatpush.msra.mxu0 %v142
    %2430 = vmatpush.msra.mxu0 %v138
    %2431 = vmatmul.f32.gmra.mxu0 %v2314
    %v2432 = vpop.f32.mrf.mxu0
    %v2433 = vadd.f32 %v2353, %v2432
    %2434 = vdwg.mxu0
    %2435 = vmatpush.msra.mxu0 %v199
    %2436 = vmatpush.msra.mxu0 %v195
    %2437 = vmatpush.msra.mxu0 %v191
    %2438 = vmatpush.msra.mxu0 %v187
    %2439 = vmatpush.msra.mxu0 %v183
    %2440 = vmatpush.msra.mxu0 %v179
    %2441 = vmatpush.msra.mxu0 %v175
    %2442 = vmatpush.msra.mxu0 %v171
    %2443 = vmatpush.msra.mxu0 %v167
    %2444 = vmatpush.msra.mxu0 %v163
    %2445 = vmatpush.msra.mxu0 %v159
    %2446 = vmatpush.msra.mxu0 %v155
    %2447 = vmatpush.msra.mxu0 %v151
    %2448 = vmatpush.msra.mxu0 %v147
    %2449 = vmatpush.msra.mxu0 %v143
    %2450 = vmatpush.msra.mxu0 %v139
    %2451 = vmatmul.f32.gmra.mxu0 %v2314
    %v2452 = vpop.f32.mrf.mxu0
    %v2453 = vadd.f32 %v2373, %v2452
    %2454 = vdwg.mxu0
    %2455 = vmatpush.msra.mxu0 %v200
    %2456 = vmatpush.msra.mxu0 %v196
    %2457 = vmatpush.msra.mxu0 %v192
    %2458 = vmatpush.msra.mxu0 %v188
    %2459 = vmatpush.msra.mxu0 %v184
    %2460 = vmatpush.msra.mxu0 %v180
    %2461 = vmatpush.msra.mxu0 %v176
    %2462 = vmatpush.msra.mxu0 %v172
    %2463 = vmatpush.msra.mxu0 %v168
    %2464 = vmatpush.msra.mxu0 %v164
    %2465 = vmatpush.msra.mxu0 %v160
    %2466 = vmatpush.msra.mxu0 %v156
    %2467 = vmatpush.msra.mxu0 %v152
    %2468 = vmatpush.msra.mxu0 %v148
    %2469 = vmatpush.msra.mxu0 %v144
    %2470 = vmatpush.msra.mxu0 %v140
    %2471 = vmatmul.f32.gmra.mxu0 %v2314
    %v2472 = vpop.f32.mrf.mxu0
    %v2473 = vadd.f32 %v2393, %v2472
    %2474 = vdwg.mxu0
    %v2475 = vadd.f32 %v2413, %v265
    %v2476 = vadd.f32 %v2433, %v266
    %v2477 = vadd.f32 %v2453, %v267
    %v2478 = vadd.f32 %v2473, %v268
    %v2479 = vxor.u32 %v2475, 2147483648
    %v2480 = vmul.f32 %v2479, 1.442695
    %v2481 = vpow.pop %v2480
    %v2482 = vadd.f32 %v2481, 1.0
    %v2483 = vrcp.pop %v2482
    %v2484 = vmul.f32 %v2482, %v2483
    %v2485 = vsub.f32 1.0, %v2484
    %v2486 = vmul.f32 %v2483, %v2485
    %v2487 = vadd.f32 %v2483, %v2486
    %vm2488 = vweird.f32 %v2482
    %vm2489 = vweird.f32 %v2483
    %vm2490 = vmor %vm2488, %vm2489
    %v2491 = vsel %vm2490, %v2483, %v2487
    %v2492 = vand.u32 2147483647, %v2482
    %vm2493 = vcmp.eq.f32.partialorder %v2492, 8.507059e+37
    %v2494 = vand.u32 %v2482, 2147483648
    %v2495 = vor.u32 1.1754944e-38, %v2494
    %v2496 = vsel %vm2493, %v2495, %v2491
    %v2497 = vmul.f32 1.0, %v2496
    %v2498 = vxor.u32 %v2476, 2147483648
    %v2499 = vmul.f32 %v2498, 1.442695
    %v2500 = vpow.pop %v2499
    %v2501 = vadd.f32 %v2500, 1.0
    %v2502 = vrcp.pop %v2501
    %v2503 = vmul.f32 %v2501, %v2502
    %v2504 = vsub.f32 1.0, %v2503
    %v2505 = vmul.f32 %v2502, %v2504
    %v2506 = vadd.f32 %v2502, %v2505
    %vm2507 = vweird.f32 %v2501
    %vm2508 = vweird.f32 %v2502
    %vm2509 = vmor %vm2507, %vm2508
    %v2510 = vsel %vm2509, %v2502, %v2506
    %v2511 = vand.u32 2147483647, %v2501
    %vm2512 = vcmp.eq.f32.partialorder %v2511, 8.507059e+37
    %v2513 = vand.u32 %v2501, 2147483648
    %v2514 = vor.u32 1.1754944e-38, %v2513
    %v2515 = vsel %vm2512, %v2514, %v2510
    %v2516 = vmul.f32 1.0, %v2515
    %v2517 = vtanh.pop %v2477
    %v2518 = vxor.u32 %v2478, 2147483648
    %v2519 = vmul.f32 %v2518, 1.442695
    %v2520 = vpow.pop %v2519
    %v2521 = vadd.f32 %v2520, 1.0
    %v2522 = vrcp.pop %v2521
    %v2523 = vmul.f32 %v2521, %v2522
    %v2524 = vsub.f32 1.0, %v2523
    %v2525 = vmul.f32 %v2522, %v2524
    %v2526 = vadd.f32 %v2522, %v2525
    %vm2527 = vweird.f32 %v2521
    %vm2528 = vweird.f32 %v2522
    %vm2529 = vmor %vm2527, %vm2528
    %v2530 = vsel %vm2529, %v2522, %v2526
    %v2531 = vand.u32 2147483647, %v2521
    %vm2532 = vcmp.eq.f32.partialorder %v2531, 8.507059e+37
    %v2533 = vand.u32 %v2521, 2147483648
    %v2534 = vor.u32 1.1754944e-38, %v2533
    %v2535 = vsel %vm2532, %v2534, %v2530
    %v2536 = vmul.f32 1.0, %v2535
    %v2537 = vmul.f32 %v2516, %v2160
    %v2538 = vmul.f32 %v2497, %v2517
    %v2539 = vadd.f32 %v2537, %v2538
    %v2540 = vtanh.pop %v2539
    %v2541 = vmul.f32 %v2536, %v2540
    %s2542 = scalar_lea.vmem %s0, 192
    %v2543 = vld [vmem:[%s2542] sm:$0xff]
    %v2544 = vld [vmem:[%s2542 + $0x8] sm:$0xff]
    %v2545 = vld [vmem:[%s2542 + $0x10] sm:$0xff]
    %v2546 = vld [vmem:[%s2542 + $0x18] sm:$0xff]
    %2547 = vmatpush.msra.mxu0 %v133
    %2548 = vmatpush.msra.mxu0 %v129
    %2549 = vmatpush.msra.mxu0 %v125
    %2550 = vmatpush.msra.mxu0 %v121
    %2551 = vmatpush.msra.mxu0 %v117
    %2552 = vmatpush.msra.mxu0 %v113
    %2553 = vmatpush.msra.mxu0 %v109
    %2554 = vmatpush.msra.mxu0 %v105
    %2555 = vmatpush.msra.mxu0 %v101
    %2556 = vmatpush.msra.mxu0 %v97
    %2557 = vmatpush.msra.mxu0 %v93
    %2558 = vmatpush.msra.mxu0 %v89
    %2559 = vmatpush.msra.mxu0 %v85
    %2560 = vmatpush.msra.mxu0 %v81
    %2561 = vmatpush.msra.mxu0 %v77
    %2562 = vmatpush.msra.mxu0 %v73
    %2563 = vmatmul.f32.gmra.mxu0 %v2314
    %v2564 = vpop.f32.mrf.mxu0
    %v2565 = vadd.f32 0.0, %v2564
    %2566 = vdwg.mxu0
    %2567 = vmatpush.msra.mxu0 %v134
    %2568 = vmatpush.msra.mxu0 %v130
    %2569 = vmatpush.msra.mxu0 %v126
    %2570 = vmatpush.msra.mxu0 %v122
    %2571 = vmatpush.msra.mxu0 %v118
    %2572 = vmatpush.msra.mxu0 %v114
    %2573 = vmatpush.msra.mxu0 %v110
    %2574 = vmatpush.msra.mxu0 %v106
    %2575 = vmatpush.msra.mxu0 %v102
    %2576 = vmatpush.msra.mxu0 %v98
    %2577 = vmatpush.msra.mxu0 %v94
    %2578 = vmatpush.msra.mxu0 %v90
    %2579 = vmatpush.msra.mxu0 %v86
    %2580 = vmatpush.msra.mxu0 %v82
    %2581 = vmatpush.msra.mxu0 %v78
    %2582 = vmatpush.msra.mxu0 %v74
    %2583 = vmatmul.f32.gmra.mxu0 %v2314
    %v2584 = vpop.f32.mrf.mxu0
    %v2585 = vadd.f32 0.0, %v2584
    %2586 = vdwg.mxu0
    %2587 = vmatpush.msra.mxu0 %v135
    %2588 = vmatpush.msra.mxu0 %v131
    %2589 = vmatpush.msra.mxu0 %v127
    %2590 = vmatpush.msra.mxu0 %v123
    %2591 = vmatpush.msra.mxu0 %v119
    %2592 = vmatpush.msra.mxu0 %v115
    %2593 = vmatpush.msra.mxu0 %v111
    %2594 = vmatpush.msra.mxu0 %v107
    %2595 = vmatpush.msra.mxu0 %v103
    %2596 = vmatpush.msra.mxu0 %v99
    %2597 = vmatpush.msra.mxu0 %v95
    %2598 = vmatpush.msra.mxu0 %v91
    %2599 = vmatpush.msra.mxu0 %v87
    %2600 = vmatpush.msra.mxu0 %v83
    %2601 = vmatpush.msra.mxu0 %v79
    %2602 = vmatpush.msra.mxu0 %v75
    %2603 = vmatmul.f32.gmra.mxu0 %v2314
    %v2604 = vpop.f32.mrf.mxu0
    %v2605 = vadd.f32 0.0, %v2604
    %2606 = vdwg.mxu0
    %2607 = vmatpush.msra.mxu0 %v136
    %2608 = vmatpush.msra.mxu0 %v132
    %2609 = vmatpush.msra.mxu0 %v128
    %2610 = vmatpush.msra.mxu0 %v124
    %2611 = vmatpush.msra.mxu0 %v120
    %2612 = vmatpush.msra.mxu0 %v116
    %2613 = vmatpush.msra.mxu0 %v112
    %2614 = vmatpush.msra.mxu0 %v108
    %2615 = vmatpush.msra.mxu0 %v104
    %2616 = vmatpush.msra.mxu0 %v100
    %2617 = vmatpush.msra.mxu0 %v96
    %2618 = vmatpush.msra.mxu0 %v92
    %2619 = vmatpush.msra.mxu0 %v88
    %2620 = vmatpush.msra.mxu0 %v84
    %2621 = vmatpush.msra.mxu0 %v80
    %2622 = vmatpush.msra.mxu0 %v76
    %2623 = vmatmul.f32.gmra.mxu0 %v2314
    %v2624 = vpop.f32.mrf.mxu0
    %v2625 = vadd.f32 0.0, %v2624
    %2626 = vdwg.mxu0
    %v2627 = vadd.f32 %v2543, %v2565
    %v2628 = vadd.f32 %v2544, %v2585
    %v2629 = vadd.f32 %v2545, %v2605
    %v2630 = vadd.f32 %v2546, %v2625
    %v2631 = vxor.u32 %v2627, 2147483648
    %v2632 = vmul.f32 %v2631, 1.442695
    %v2633 = vpow.pop %v2632
    %v2634 = vadd.f32 %v2633, 1.0
    %v2635 = vrcp.pop %v2634
    %v2636 = vmul.f32 %v2634, %v2635
    %v2637 = vsub.f32 1.0, %v2636
    %v2638 = vmul.f32 %v2635, %v2637
    %v2639 = vadd.f32 %v2635, %v2638
    %vm2640 = vweird.f32 %v2634
    %vm2641 = vweird.f32 %v2635
    %vm2642 = vmor %vm2640, %vm2641
    %v2643 = vsel %vm2642, %v2635, %v2639
    %v2644 = vand.u32 2147483647, %v2634
    %vm2645 = vcmp.eq.f32.partialorder %v2644, 8.507059e+37
    %v2646 = vand.u32 %v2634, 2147483648
    %v2647 = vor.u32 1.1754944e-38, %v2646
    %v2648 = vsel %vm2645, %v2647, %v2643
    %v2649 = vmul.f32 1.0, %v2648
    %v2650 = vxor.u32 %v2628, 2147483648
    %v2651 = vmul.f32 %v2650, 1.442695
    %v2652 = vpow.pop %v2651
    %v2653 = vadd.f32 %v2652, 1.0
    %v2654 = vrcp.pop %v2653
    %v2655 = vmul.f32 %v2653, %v2654
    %v2656 = vsub.f32 1.0, %v2655
    %v2657 = vmul.f32 %v2654, %v2656
    %v2658 = vadd.f32 %v2654, %v2657
    %vm2659 = vweird.f32 %v2653
    %vm2660 = vweird.f32 %v2654
    %vm2661 = vmor %vm2659, %vm2660
    %v2662 = vsel %vm2661, %v2654, %v2658
    %v2663 = vand.u32 2147483647, %v2653
    %vm2664 = vcmp.eq.f32.partialorder %v2663, 8.507059e+37
    %v2665 = vand.u32 %v2653, 2147483648
    %v2666 = vor.u32 1.1754944e-38, %v2665
    %v2667 = vsel %vm2664, %v2666, %v2662
    %v2668 = vmul.f32 1.0, %v2667
    %v2669 = vtanh.pop %v2629
    %v2670 = vxor.u32 %v2630, 2147483648
    %v2671 = vmul.f32 %v2670, 1.442695
    %v2672 = vpow.pop %v2671
    %v2673 = vadd.f32 %v2672, 1.0
    %v2674 = vrcp.pop %v2673
    %v2675 = vmul.f32 %v2673, %v2674
    %v2676 = vsub.f32 1.0, %v2675
    %v2677 = vmul.f32 %v2674, %v2676
    %v2678 = vadd.f32 %v2674, %v2677
    %vm2679 = vweird.f32 %v2673
    %vm2680 = vweird.f32 %v2674
    %vm2681 = vmor %vm2679, %vm2680
    %v2682 = vsel %vm2681, %v2674, %v2678
    %v2683 = vand.u32 2147483647, %v2673
    %vm2684 = vcmp.eq.f32.partialorder %v2683, 8.507059e+37
    %v2685 = vand.u32 %v2673, 2147483648
    %v2686 = vor.u32 1.1754944e-38, %v2685
    %v2687 = vsel %vm2684, %v2686, %v2682
    %v2688 = vmul.f32 1.0, %v2687
    %v2689 = vmul.f32 %v2668, %v2312
    %v2690 = vmul.f32 %v2649, %v2669
    %v2691 = vadd.f32 %v2689, %v2690
    %v2692 = vtanh.pop %v2691
    %v2693 = vmul.f32 %v2688, %v2692
    %2694 = vmatpush.msra.mxu0 %v261
    %2695 = vmatpush.msra.mxu0 %v257
    %2696 = vmatpush.msra.mxu0 %v253
    %2697 = vmatpush.msra.mxu0 %v249
    %2698 = vmatpush.msra.mxu0 %v245
    %2699 = vmatpush.msra.mxu0 %v241
    %2700 = vmatpush.msra.mxu0 %v237
    %2701 = vmatpush.msra.mxu0 %v233
    %2702 = vmatpush.msra.mxu0 %v229
    %2703 = vmatpush.msra.mxu0 %v225
    %2704 = vmatpush.msra.mxu0 %v221
    %2705 = vmatpush.msra.mxu0 %v217
    %2706 = vmatpush.msra.mxu0 %v213
    %2707 = vmatpush.msra.mxu0 %v209
    %2708 = vmatpush.msra.mxu0 %v205
    %2709 = vmatpush.msra.mxu0 %v201
    %2710 = vmatmul.f32.gmra.mxu0 %v2541
    %v2711 = vpop.f32.mrf.mxu0
    %v2712 = vadd.f32 0.0, %v2711
    %2713 = vdwg.mxu0
    %2714 = vmatpush.msra.mxu0 %v262
    %2715 = vmatpush.msra.mxu0 %v258
    %2716 = vmatpush.msra.mxu0 %v254
    %2717 = vmatpush.msra.mxu0 %v250
    %2718 = vmatpush.msra.mxu0 %v246
    %2719 = vmatpush.msra.mxu0 %v242
    %2720 = vmatpush.msra.mxu0 %v238
    %2721 = vmatpush.msra.mxu0 %v234
    %2722 = vmatpush.msra.mxu0 %v230
    %2723 = vmatpush.msra.mxu0 %v226
    %2724 = vmatpush.msra.mxu0 %v222
    %2725 = vmatpush.msra.mxu0 %v218
    %2726 = vmatpush.msra.mxu0 %v214
    %2727 = vmatpush.msra.mxu0 %v210
    %2728 = vmatpush.msra.mxu0 %v206
    %2729 = vmatpush.msra.mxu0 %v202
    %2730 = vmatmul.f32.gmra.mxu0 %v2541
    %v2731 = vpop.f32.mrf.mxu0
    %v2732 = vadd.f32 0.0, %v2731
    %2733 = vdwg.mxu0
    %2734 = vmatpush.msra.mxu0 %v263
    %2735 = vmatpush.msra.mxu0 %v259
    %2736 = vmatpush.msra.mxu0 %v255
    %2737 = vmatpush.msra.mxu0 %v251
    %2738 = vmatpush.msra.mxu0 %v247
    %2739 = vmatpush.msra.mxu0 %v243
    %2740 = vmatpush.msra.mxu0 %v239
    %2741 = vmatpush.msra.mxu0 %v235
    %2742 = vmatpush.msra.mxu0 %v231
    %2743 = vmatpush.msra.mxu0 %v227
    %2744 = vmatpush.msra.mxu0 %v223
    %2745 = vmatpush.msra.mxu0 %v219
    %2746 = vmatpush.msra.mxu0 %v215
    %2747 = vmatpush.msra.mxu0 %v211
    %2748 = vmatpush.msra.mxu0 %v207
    %2749 = vmatpush.msra.mxu0 %v203
    %2750 = vmatmul.f32.gmra.mxu0 %v2541
    %v2751 = vpop.f32.mrf.mxu0
    %v2752 = vadd.f32 0.0, %v2751
    %2753 = vdwg.mxu0
    %2754 = vmatpush.msra.mxu0 %v264
    %2755 = vmatpush.msra.mxu0 %v260
    %2756 = vmatpush.msra.mxu0 %v256
    %2757 = vmatpush.msra.mxu0 %v252
    %2758 = vmatpush.msra.mxu0 %v248
    %2759 = vmatpush.msra.mxu0 %v244
    %2760 = vmatpush.msra.mxu0 %v240
    %2761 = vmatpush.msra.mxu0 %v236
    %2762 = vmatpush.msra.mxu0 %v232
    %2763 = vmatpush.msra.mxu0 %v228
    %2764 = vmatpush.msra.mxu0 %v224
    %2765 = vmatpush.msra.mxu0 %v220
    %2766 = vmatpush.msra.mxu0 %v216
    %2767 = vmatpush.msra.mxu0 %v212
    %2768 = vmatpush.msra.mxu0 %v208
    %2769 = vmatpush.msra.mxu0 %v204
    %2770 = vmatmul.f32.gmra.mxu0 %v2541
    %v2771 = vpop.f32.mrf.mxu0
    %v2772 = vadd.f32 0.0, %v2771
    %2773 = vdwg.mxu0
    %2774 = vmatpush.msra.mxu0 %v197
    %2775 = vmatpush.msra.mxu0 %v193
    %2776 = vmatpush.msra.mxu0 %v189
    %2777 = vmatpush.msra.mxu0 %v185
    %2778 = vmatpush.msra.mxu0 %v181
    %2779 = vmatpush.msra.mxu0 %v177
    %2780 = vmatpush.msra.mxu0 %v173
    %2781 = vmatpush.msra.mxu0 %v169
    %2782 = vmatpush.msra.mxu0 %v165
    %2783 = vmatpush.msra.mxu0 %v161
    %2784 = vmatpush.msra.mxu0 %v157
    %2785 = vmatpush.msra.mxu0 %v153
    %2786 = vmatpush.msra.mxu0 %v149
    %2787 = vmatpush.msra.mxu0 %v145
    %2788 = vmatpush.msra.mxu0 %v141
    %2789 = vmatpush.msra.mxu0 %v137
    %2790 = vmatmul.f32.gmra.mxu0 %v2693
    %v2791 = vpop.f32.mrf.mxu0
    %v2792 = vadd.f32 %v2712, %v2791
    %2793 = vdwg.mxu0
    %2794 = vmatpush.msra.mxu0 %v198
    %2795 = vmatpush.msra.mxu0 %v194
    %2796 = vmatpush.msra.mxu0 %v190
    %2797 = vmatpush.msra.mxu0 %v186
    %2798 = vmatpush.msra.mxu0 %v182
    %2799 = vmatpush.msra.mxu0 %v178
    %2800 = vmatpush.msra.mxu0 %v174
    %2801 = vmatpush.msra.mxu0 %v170
    %2802 = vmatpush.msra.mxu0 %v166
    %2803 = vmatpush.msra.mxu0 %v162
    %2804 = vmatpush.msra.mxu0 %v158
    %2805 = vmatpush.msra.mxu0 %v154
    %2806 = vmatpush.msra.mxu0 %v150
    %2807 = vmatpush.msra.mxu0 %v146
    %2808 = vmatpush.msra.mxu0 %v142
    %2809 = vmatpush.msra.mxu0 %v138
    %2810 = vmatmul.f32.gmra.mxu0 %v2693
    %v2811 = vpop.f32.mrf.mxu0
    %v2812 = vadd.f32 %v2732, %v2811
    %2813 = vdwg.mxu0
    %2814 = vmatpush.msra.mxu0 %v199
    %2815 = vmatpush.msra.mxu0 %v195
    %2816 = vmatpush.msra.mxu0 %v191
    %2817 = vmatpush.msra.mxu0 %v187
    %2818 = vmatpush.msra.mxu0 %v183
    %2819 = vmatpush.msra.mxu0 %v179
    %2820 = vmatpush.msra.mxu0 %v175
    %2821 = vmatpush.msra.mxu0 %v171
    %2822 = vmatpush.msra.mxu0 %v167
    %2823 = vmatpush.msra.mxu0 %v163
    %2824 = vmatpush.msra.mxu0 %v159
    %2825 = vmatpush.msra.mxu0 %v155
    %2826 = vmatpush.msra.mxu0 %v151
    %2827 = vmatpush.msra.mxu0 %v147
    %2828 = vmatpush.msra.mxu0 %v143
    %2829 = vmatpush.msra.mxu0 %v139
    %2830 = vmatmul.f32.gmra.mxu0 %v2693
    %v2831 = vpop.f32.mrf.mxu0
    %v2832 = vadd.f32 %v2752, %v2831
    %2833 = vdwg.mxu0
    %2834 = vmatpush.msra.mxu0 %v200
    %2835 = vmatpush.msra.mxu0 %v196
    %2836 = vmatpush.msra.mxu0 %v192
    %2837 = vmatpush.msra.mxu0 %v188
    %2838 = vmatpush.msra.mxu0 %v184
    %2839 = vmatpush.msra.mxu0 %v180
    %2840 = vmatpush.msra.mxu0 %v176
    %2841 = vmatpush.msra.mxu0 %v172
    %2842 = vmatpush.msra.mxu0 %v168
    %2843 = vmatpush.msra.mxu0 %v164
    %2844 = vmatpush.msra.mxu0 %v160
    %2845 = vmatpush.msra.mxu0 %v156
    %2846 = vmatpush.msra.mxu0 %v152
    %2847 = vmatpush.msra.mxu0 %v148
    %2848 = vmatpush.msra.mxu0 %v144
    %2849 = vmatpush.msra.mxu0 %v140
    %2850 = vmatmul.f32.gmra.mxu0 %v2693
    %v2851 = vpop.f32.mrf.mxu0
    %v2852 = vadd.f32 %v2772, %v2851
    %2853 = vdwg.mxu0
    %v2854 = vadd.f32 %v2792, %v265
    %v2855 = vadd.f32 %v2812, %v266
    %v2856 = vadd.f32 %v2832, %v267
    %v2857 = vadd.f32 %v2852, %v268
    %v2858 = vxor.u32 %v2854, 2147483648
    %v2859 = vmul.f32 %v2858, 1.442695
    %v2860 = vpow.pop %v2859
    %v2861 = vadd.f32 %v2860, 1.0
    %v2862 = vrcp.pop %v2861
    %v2863 = vmul.f32 %v2861, %v2862
    %v2864 = vsub.f32 1.0, %v2863
    %v2865 = vmul.f32 %v2862, %v2864
    %v2866 = vadd.f32 %v2862, %v2865
    %vm2867 = vweird.f32 %v2861
    %vm2868 = vweird.f32 %v2862
    %vm2869 = vmor %vm2867, %vm2868
    %v2870 = vsel %vm2869, %v2862, %v2866
    %v2871 = vand.u32 2147483647, %v2861
    %vm2872 = vcmp.eq.f32.partialorder %v2871, 8.507059e+37
    %v2873 = vand.u32 %v2861, 2147483648
    %v2874 = vor.u32 1.1754944e-38, %v2873
    %v2875 = vsel %vm2872, %v2874, %v2870
    %v2876 = vmul.f32 1.0, %v2875
    %v2877 = vxor.u32 %v2855, 2147483648
    %v2878 = vmul.f32 %v2877, 1.442695
    %v2879 = vpow.pop %v2878
    %v2880 = vadd.f32 %v2879, 1.0
    %v2881 = vrcp.pop %v2880
    %v2882 = vmul.f32 %v2880, %v2881
    %v2883 = vsub.f32 1.0, %v2882
    %v2884 = vmul.f32 %v2881, %v2883
    %v2885 = vadd.f32 %v2881, %v2884
    %vm2886 = vweird.f32 %v2880
    %vm2887 = vweird.f32 %v2881
    %vm2888 = vmor %vm2886, %vm2887
    %v2889 = vsel %vm2888, %v2881, %v2885
    %v2890 = vand.u32 2147483647, %v2880
    %vm2891 = vcmp.eq.f32.partialorder %v2890, 8.507059e+37
    %v2892 = vand.u32 %v2880, 2147483648
    %v2893 = vor.u32 1.1754944e-38, %v2892
    %v2894 = vsel %vm2891, %v2893, %v2889
    %v2895 = vmul.f32 1.0, %v2894
    %v2896 = vtanh.pop %v2856
    %v2897 = vxor.u32 %v2857, 2147483648
    %v2898 = vmul.f32 %v2897, 1.442695
    %v2899 = vpow.pop %v2898
    %v2900 = vadd.f32 %v2899, 1.0
    %v2901 = vrcp.pop %v2900
    %v2902 = vmul.f32 %v2900, %v2901
    %v2903 = vsub.f32 1.0, %v2902
    %v2904 = vmul.f32 %v2901, %v2903
    %v2905 = vadd.f32 %v2901, %v2904
    %vm2906 = vweird.f32 %v2900
    %vm2907 = vweird.f32 %v2901
    %vm2908 = vmor %vm2906, %vm2907
    %v2909 = vsel %vm2908, %v2901, %v2905
    %v2910 = vand.u32 2147483647, %v2900
    %vm2911 = vcmp.eq.f32.partialorder %v2910, 8.507059e+37
    %v2912 = vand.u32 %v2900, 2147483648
    %v2913 = vor.u32 1.1754944e-38, %v2912
    %v2914 = vsel %vm2911, %v2913, %v2909
    %v2915 = vmul.f32 1.0, %v2914
    %v2916 = vmul.f32 %v2895, %v2539
    %v2917 = vmul.f32 %v2876, %v2896
    %v2918 = vadd.f32 %v2916, %v2917
    %v2919 = vtanh.pop %v2918
    %v2920 = vmul.f32 %v2915, %v2919
    %s2921 = scalar_lea.vmem %s0, 224
    %v2922 = vld [vmem:[%s2921] sm:$0xff]
    %v2923 = vld [vmem:[%s2921 + $0x8] sm:$0xff]
    %v2924 = vld [vmem:[%s2921 + $0x10] sm:$0xff]
    %v2925 = vld [vmem:[%s2921 + $0x18] sm:$0xff]
    %2926 = vmatpush.msra.mxu0 %v133
    %2927 = vmatpush.msra.mxu0 %v129
    %2928 = vmatpush.msra.mxu0 %v125
    %2929 = vmatpush.msra.mxu0 %v121
    %2930 = vmatpush.msra.mxu0 %v117
    %2931 = vmatpush.msra.mxu0 %v113
    %2932 = vmatpush.msra.mxu0 %v109
    %2933 = vmatpush.msra.mxu0 %v105
    %2934 = vmatpush.msra.mxu0 %v101
    %2935 = vmatpush.msra.mxu0 %v97
    %2936 = vmatpush.msra.mxu0 %v93
    %2937 = vmatpush.msra.mxu0 %v89
    %2938 = vmatpush.msra.mxu0 %v85
    %2939 = vmatpush.msra.mxu0 %v81
    %2940 = vmatpush.msra.mxu0 %v77
    %2941 = vmatpush.msra.mxu0 %v73
    %2942 = vmatmul.f32.gmra.mxu0 %v2693
    %v2943 = vpop.f32.mrf.mxu0
    %v2944 = vadd.f32 0.0, %v2943
    %2945 = vdwg.mxu0
    %2946 = vmatpush.msra.mxu0 %v134
    %2947 = vmatpush.msra.mxu0 %v130
    %2948 = vmatpush.msra.mxu0 %v126
    %2949 = vmatpush.msra.mxu0 %v122
    %2950 = vmatpush.msra.mxu0 %v118
    %2951 = vmatpush.msra.mxu0 %v114
    %2952 = vmatpush.msra.mxu0 %v110
    %2953 = vmatpush.msra.mxu0 %v106
    %2954 = vmatpush.msra.mxu0 %v102
    %2955 = vmatpush.msra.mxu0 %v98
    %2956 = vmatpush.msra.mxu0 %v94
    %2957 = vmatpush.msra.mxu0 %v90
    %2958 = vmatpush.msra.mxu0 %v86
    %2959 = vmatpush.msra.mxu0 %v82
    %2960 = vmatpush.msra.mxu0 %v78
    %2961 = vmatpush.msra.mxu0 %v74
    %2962 = vmatmul.f32.gmra.mxu0 %v2693
    %v2963 = vpop.f32.mrf.mxu0
    %v2964 = vadd.f32 0.0, %v2963
    %2965 = vdwg.mxu0
    %2966 = vmatpush.msra.mxu0 %v135
    %2967 = vmatpush.msra.mxu0 %v131
    %2968 = vmatpush.msra.mxu0 %v127
    %2969 = vmatpush.msra.mxu0 %v123
    %2970 = vmatpush.msra.mxu0 %v119
    %2971 = vmatpush.msra.mxu0 %v115
    %2972 = vmatpush.msra.mxu0 %v111
    %2973 = vmatpush.msra.mxu0 %v107
    %2974 = vmatpush.msra.mxu0 %v103
    %2975 = vmatpush.msra.mxu0 %v99
    %2976 = vmatpush.msra.mxu0 %v95
    %2977 = vmatpush.msra.mxu0 %v91
    %2978 = vmatpush.msra.mxu0 %v87
    %2979 = vmatpush.msra.mxu0 %v83
    %2980 = vmatpush.msra.mxu0 %v79
    %2981 = vmatpush.msra.mxu0 %v75
    %2982 = vmatmul.f32.gmra.mxu0 %v2693
    %v2983 = vpop.f32.mrf.mxu0
    %v2984 = vadd.f32 0.0, %v2983
    %2985 = vdwg.mxu0
    %2986 = vmatpush.msra.mxu0 %v136
    %2987 = vmatpush.msra.mxu0 %v132
    %2988 = vmatpush.msra.mxu0 %v128
    %2989 = vmatpush.msra.mxu0 %v124
    %2990 = vmatpush.msra.mxu0 %v120
    %2991 = vmatpush.msra.mxu0 %v116
    %2992 = vmatpush.msra.mxu0 %v112
    %2993 = vmatpush.msra.mxu0 %v108
    %2994 = vmatpush.msra.mxu0 %v104
    %2995 = vmatpush.msra.mxu0 %v100
    %2996 = vmatpush.msra.mxu0 %v96
    %2997 = vmatpush.msra.mxu0 %v92
    %2998 = vmatpush.msra.mxu0 %v88
    %2999 = vmatpush.msra.mxu0 %v84
    %3000 = vmatpush.msra.mxu0 %v80
    %3001 = vmatpush.msra.mxu0 %v76
    %3002 = vmatmul.f32.gmra.mxu0 %v2693
    %v3003 = vpop.f32.mrf.mxu0
    %v3004 = vadd.f32 0.0, %v3003
    %3005 = vdwg.mxu0
    %v3006 = vadd.f32 %v2922, %v2944
    %v3007 = vadd.f32 %v2923, %v2964
    %v3008 = vadd.f32 %v2924, %v2984
    %v3009 = vadd.f32 %v2925, %v3004
    %v3010 = vxor.u32 %v3006, 2147483648
    %v3011 = vmul.f32 %v3010, 1.442695
    %v3012 = vpow.pop %v3011
    %v3013 = vadd.f32 %v3012, 1.0
    %v3014 = vrcp.pop %v3013
    %v3015 = vmul.f32 %v3013, %v3014
    %v3016 = vsub.f32 1.0, %v3015
    %v3017 = vmul.f32 %v3014, %v3016
    %v3018 = vadd.f32 %v3014, %v3017
    %vm3019 = vweird.f32 %v3013
    %vm3020 = vweird.f32 %v3014
    %vm3021 = vmor %vm3019, %vm3020
    %v3022 = vsel %vm3021, %v3014, %v3018
    %v3023 = vand.u32 2147483647, %v3013
    %vm3024 = vcmp.eq.f32.partialorder %v3023, 8.507059e+37
    %v3025 = vand.u32 %v3013, 2147483648
    %v3026 = vor.u32 1.1754944e-38, %v3025
    %v3027 = vsel %vm3024, %v3026, %v3022
    %v3028 = vmul.f32 1.0, %v3027
    %v3029 = vxor.u32 %v3007, 2147483648
    %v3030 = vmul.f32 %v3029, 1.442695
    %v3031 = vpow.pop %v3030
    %v3032 = vadd.f32 %v3031, 1.0
    %v3033 = vrcp.pop %v3032
    %v3034 = vmul.f32 %v3032, %v3033
    %v3035 = vsub.f32 1.0, %v3034
    %v3036 = vmul.f32 %v3033, %v3035
    %v3037 = vadd.f32 %v3033, %v3036
    %vm3038 = vweird.f32 %v3032
    %vm3039 = vweird.f32 %v3033
    %vm3040 = vmor %vm3038, %vm3039
    %v3041 = vsel %vm3040, %v3033, %v3037
    %v3042 = vand.u32 2147483647, %v3032
    %vm3043 = vcmp.eq.f32.partialorder %v3042, 8.507059e+37
    %v3044 = vand.u32 %v3032, 2147483648
    %v3045 = vor.u32 1.1754944e-38, %v3044
    %v3046 = vsel %vm3043, %v3045, %v3041
    %v3047 = vmul.f32 1.0, %v3046
    %v3048 = vtanh.pop %v3008
    %v3049 = vxor.u32 %v3009, 2147483648
    %v3050 = vmul.f32 %v3049, 1.442695
    %v3051 = vpow.pop %v3050
    %v3052 = vadd.f32 %v3051, 1.0
    %v3053 = vrcp.pop %v3052
    %v3054 = vmul.f32 %v3052, %v3053
    %v3055 = vsub.f32 1.0, %v3054
    %v3056 = vmul.f32 %v3053, %v3055
    %v3057 = vadd.f32 %v3053, %v3056
    %vm3058 = vweird.f32 %v3052
    %vm3059 = vweird.f32 %v3053
    %vm3060 = vmor %vm3058, %vm3059
    %v3061 = vsel %vm3060, %v3053, %v3057
    %v3062 = vand.u32 2147483647, %v3052
    %vm3063 = vcmp.eq.f32.partialorder %v3062, 8.507059e+37
    %v3064 = vand.u32 %v3052, 2147483648
    %v3065 = vor.u32 1.1754944e-38, %v3064
    %v3066 = vsel %vm3063, %v3065, %v3061
    %v3067 = vmul.f32 1.0, %v3066
    %v3068 = vmul.f32 %v3047, %v2691
    %v3069 = vmul.f32 %v3028, %v3048
    %v3070 = vadd.f32 %v3068, %v3069
    %v3071 = vtanh.pop %v3070
    %v3072 = vmul.f32 %v3067, %v3071
    %3073 = vmatpush.msra.mxu0 %v261
    %3074 = vmatpush.msra.mxu0 %v257
    %3075 = vmatpush.msra.mxu0 %v253
    %3076 = vmatpush.msra.mxu0 %v249
    %3077 = vmatpush.msra.mxu0 %v245
    %3078 = vmatpush.msra.mxu0 %v241
    %3079 = vmatpush.msra.mxu0 %v237
    %3080 = vmatpush.msra.mxu0 %v233
    %3081 = vmatpush.msra.mxu0 %v229
    %3082 = vmatpush.msra.mxu0 %v225
    %3083 = vmatpush.msra.mxu0 %v221
    %3084 = vmatpush.msra.mxu0 %v217
    %3085 = vmatpush.msra.mxu0 %v213
    %3086 = vmatpush.msra.mxu0 %v209
    %3087 = vmatpush.msra.mxu0 %v205
    %3088 = vmatpush.msra.mxu0 %v201
    %3089 = vmatmul.f32.gmra.mxu0 %v2920
    %v3090 = vpop.f32.mrf.mxu0
    %v3091 = vadd.f32 0.0, %v3090
    %3092 = vdwg.mxu0
    %3093 = vmatpush.msra.mxu0 %v262
    %3094 = vmatpush.msra.mxu0 %v258
    %3095 = vmatpush.msra.mxu0 %v254
    %3096 = vmatpush.msra.mxu0 %v250
    %3097 = vmatpush.msra.mxu0 %v246
    %3098 = vmatpush.msra.mxu0 %v242
    %3099 = vmatpush.msra.mxu0 %v238
    %3100 = vmatpush.msra.mxu0 %v234
    %3101 = vmatpush.msra.mxu0 %v230
    %3102 = vmatpush.msra.mxu0 %v226
    %3103 = vmatpush.msra.mxu0 %v222
    %3104 = vmatpush.msra.mxu0 %v218
    %3105 = vmatpush.msra.mxu0 %v214
    %3106 = vmatpush.msra.mxu0 %v210
    %3107 = vmatpush.msra.mxu0 %v206
    %3108 = vmatpush.msra.mxu0 %v202
    %3109 = vmatmul.f32.gmra.mxu0 %v2920
    %v3110 = vpop.f32.mrf.mxu0
    %v3111 = vadd.f32 0.0, %v3110
    %3112 = vdwg.mxu0
    %3113 = vmatpush.msra.mxu0 %v263
    %3114 = vmatpush.msra.mxu0 %v259
    %3115 = vmatpush.msra.mxu0 %v255
    %3116 = vmatpush.msra.mxu0 %v251
    %3117 = vmatpush.msra.mxu0 %v247
    %3118 = vmatpush.msra.mxu0 %v243
    %3119 = vmatpush.msra.mxu0 %v239
    %3120 = vmatpush.msra.mxu0 %v235
    %3121 = vmatpush.msra.mxu0 %v231
    %3122 = vmatpush.msra.mxu0 %v227
    %3123 = vmatpush.msra.mxu0 %v223
    %3124 = vmatpush.msra.mxu0 %v219
    %3125 = vmatpush.msra.mxu0 %v215
    %3126 = vmatpush.msra.mxu0 %v211
    %3127 = vmatpush.msra.mxu0 %v207
    %3128 = vmatpush.msra.mxu0 %v203
    %3129 = vmatmul.f32.gmra.mxu0 %v2920
    %v3130 = vpop.f32.mrf.mxu0
    %v3131 = vadd.f32 0.0, %v3130
    %3132 = vdwg.mxu0
    %3133 = vmatpush.msra.mxu0 %v264
    %3134 = vmatpush.msra.mxu0 %v260
    %3135 = vmatpush.msra.mxu0 %v256
    %3136 = vmatpush.msra.mxu0 %v252
    %3137 = vmatpush.msra.mxu0 %v248
    %3138 = vmatpush.msra.mxu0 %v244
    %3139 = vmatpush.msra.mxu0 %v240
    %3140 = vmatpush.msra.mxu0 %v236
    %3141 = vmatpush.msra.mxu0 %v232
    %3142 = vmatpush.msra.mxu0 %v228
    %3143 = vmatpush.msra.mxu0 %v224
    %3144 = vmatpush.msra.mxu0 %v220
    %3145 = vmatpush.msra.mxu0 %v216
    %3146 = vmatpush.msra.mxu0 %v212
    %3147 = vmatpush.msra.mxu0 %v208
    %3148 = vmatpush.msra.mxu0 %v204
    %3149 = vmatmul.f32.gmra.mxu0 %v2920
    %v3150 = vpop.f32.mrf.mxu0
    %v3151 = vadd.f32 0.0, %v3150
    %3152 = vdwg.mxu0
    %3153 = vmatpush.msra.mxu0 %v197
    %3154 = vmatpush.msra.mxu0 %v193
    %3155 = vmatpush.msra.mxu0 %v189
    %3156 = vmatpush.msra.mxu0 %v185
    %3157 = vmatpush.msra.mxu0 %v181
    %3158 = vmatpush.msra.mxu0 %v177
    %3159 = vmatpush.msra.mxu0 %v173
    %3160 = vmatpush.msra.mxu0 %v169
    %3161 = vmatpush.msra.mxu0 %v165
    %3162 = vmatpush.msra.mxu0 %v161
    %3163 = vmatpush.msra.mxu0 %v157
    %3164 = vmatpush.msra.mxu0 %v153
    %3165 = vmatpush.msra.mxu0 %v149
    %3166 = vmatpush.msra.mxu0 %v145
    %3167 = vmatpush.msra.mxu0 %v141
    %3168 = vmatpush.msra.mxu0 %v137
    %3169 = vmatmul.f32.gmra.mxu0 %v3072
    %v3170 = vpop.f32.mrf.mxu0
    %v3171 = vadd.f32 %v3091, %v3170
    %3172 = vdwg.mxu0
    %3173 = vmatpush.msra.mxu0 %v198
    %3174 = vmatpush.msra.mxu0 %v194
    %3175 = vmatpush.msra.mxu0 %v190
    %3176 = vmatpush.msra.mxu0 %v186
    %3177 = vmatpush.msra.mxu0 %v182
    %3178 = vmatpush.msra.mxu0 %v178
    %3179 = vmatpush.msra.mxu0 %v174
    %3180 = vmatpush.msra.mxu0 %v170
    %3181 = vmatpush.msra.mxu0 %v166
    %3182 = vmatpush.msra.mxu0 %v162
    %3183 = vmatpush.msra.mxu0 %v158
    %3184 = vmatpush.msra.mxu0 %v154
    %3185 = vmatpush.msra.mxu0 %v150
    %3186 = vmatpush.msra.mxu0 %v146
    %3187 = vmatpush.msra.mxu0 %v142
    %3188 = vmatpush.msra.mxu0 %v138
    %3189 = vmatmul.f32.gmra.mxu0 %v3072
    %v3190 = vpop.f32.mrf.mxu0
    %v3191 = vadd.f32 %v3111, %v3190
    %3192 = vdwg.mxu0
    %3193 = vmatpush.msra.mxu0 %v199
    %3194 = vmatpush.msra.mxu0 %v195
    %3195 = vmatpush.msra.mxu0 %v191
    %3196 = vmatpush.msra.mxu0 %v187
    %3197 = vmatpush.msra.mxu0 %v183
    %3198 = vmatpush.msra.mxu0 %v179
    %3199 = vmatpush.msra.mxu0 %v175
    %3200 = vmatpush.msra.mxu0 %v171
    %3201 = vmatpush.msra.mxu0 %v167
    %3202 = vmatpush.msra.mxu0 %v163
    %3203 = vmatpush.msra.mxu0 %v159
    %3204 = vmatpush.msra.mxu0 %v155
    %3205 = vmatpush.msra.mxu0 %v151
    %3206 = vmatpush.msra.mxu0 %v147
    %3207 = vmatpush.msra.mxu0 %v143
    %3208 = vmatpush.msra.mxu0 %v139
    %3209 = vmatmul.f32.gmra.mxu0 %v3072
    %v3210 = vpop.f32.mrf.mxu0
    %v3211 = vadd.f32 %v3131, %v3210
    %3212 = vdwg.mxu0
    %3213 = vmatpush.msra.mxu0 %v200
    %3214 = vmatpush.msra.mxu0 %v196
    %3215 = vmatpush.msra.mxu0 %v192
    %3216 = vmatpush.msra.mxu0 %v188
    %3217 = vmatpush.msra.mxu0 %v184
    %3218 = vmatpush.msra.mxu0 %v180
    %3219 = vmatpush.msra.mxu0 %v176
    %3220 = vmatpush.msra.mxu0 %v172
    %3221 = vmatpush.msra.mxu0 %v168
    %3222 = vmatpush.msra.mxu0 %v164
    %3223 = vmatpush.msra.mxu0 %v160
    %3224 = vmatpush.msra.mxu0 %v156
    %3225 = vmatpush.msra.mxu0 %v152
    %3226 = vmatpush.msra.mxu0 %v148
    %3227 = vmatpush.msra.mxu0 %v144
    %3228 = vmatpush.msra.mxu0 %v140
    %3229 = vmatmul.f32.gmra.mxu0 %v3072
    %v3230 = vpop.f32.mrf.mxu0
    %v3231 = vadd.f32 %v3151, %v3230
    %3232 = vdwg.mxu0
    %v3233 = vadd.f32 %v3171, %v265
    %v3234 = vadd.f32 %v3191, %v266
    %v3235 = vadd.f32 %v3211, %v267
    %v3236 = vadd.f32 %v3231, %v268
    %v3237 = vxor.u32 %v3233, 2147483648
    %v3238 = vmul.f32 %v3237, 1.442695
    %v3239 = vpow.pop %v3238
    %v3240 = vadd.f32 %v3239, 1.0
    %v3241 = vrcp.pop %v3240
    %v3242 = vmul.f32 %v3240, %v3241
    %v3243 = vsub.f32 1.0, %v3242
    %v3244 = vmul.f32 %v3241, %v3243
    %v3245 = vadd.f32 %v3241, %v3244
    %vm3246 = vweird.f32 %v3240
    %vm3247 = vweird.f32 %v3241
    %vm3248 = vmor %vm3246, %vm3247
    %v3249 = vsel %vm3248, %v3241, %v3245
    %v3250 = vand.u32 2147483647, %v3240
    %vm3251 = vcmp.eq.f32.partialorder %v3250, 8.507059e+37
    %v3252 = vand.u32 %v3240, 2147483648
    %v3253 = vor.u32 1.1754944e-38, %v3252
    %v3254 = vsel %vm3251, %v3253, %v3249
    %v3255 = vmul.f32 1.0, %v3254
    %v3256 = vxor.u32 %v3234, 2147483648
    %v3257 = vmul.f32 %v3256, 1.442695
    %v3258 = vpow.pop %v3257
    %v3259 = vadd.f32 %v3258, 1.0
    %v3260 = vrcp.pop %v3259
    %v3261 = vmul.f32 %v3259, %v3260
    %v3262 = vsub.f32 1.0, %v3261
    %v3263 = vmul.f32 %v3260, %v3262
    %v3264 = vadd.f32 %v3260, %v3263
    %vm3265 = vweird.f32 %v3259
    %vm3266 = vweird.f32 %v3260
    %vm3267 = vmor %vm3265, %vm3266
    %v3268 = vsel %vm3267, %v3260, %v3264
    %v3269 = vand.u32 2147483647, %v3259
    %vm3270 = vcmp.eq.f32.partialorder %v3269, 8.507059e+37
    %v3271 = vand.u32 %v3259, 2147483648
    %v3272 = vor.u32 1.1754944e-38, %v3271
    %v3273 = vsel %vm3270, %v3272, %v3268
    %v3274 = vmul.f32 1.0, %v3273
    %v3275 = vtanh.pop %v3235
    %v3276 = vxor.u32 %v3236, 2147483648
    %v3277 = vmul.f32 %v3276, 1.442695
    %v3278 = vpow.pop %v3277
    %v3279 = vadd.f32 %v3278, 1.0
    %v3280 = vrcp.pop %v3279
    %v3281 = vmul.f32 %v3279, %v3280
    %v3282 = vsub.f32 1.0, %v3281
    %v3283 = vmul.f32 %v3280, %v3282
    %v3284 = vadd.f32 %v3280, %v3283
    %vm3285 = vweird.f32 %v3279
    %vm3286 = vweird.f32 %v3280
    %vm3287 = vmor %vm3285, %vm3286
    %v3288 = vsel %vm3287, %v3280, %v3284
    %v3289 = vand.u32 2147483647, %v3279
    %vm3290 = vcmp.eq.f32.partialorder %v3289, 8.507059e+37
    %v3291 = vand.u32 %v3279, 2147483648
    %v3292 = vor.u32 1.1754944e-38, %v3291
    %v3293 = vsel %vm3290, %v3292, %v3288
    %v3294 = vmul.f32 1.0, %v3293
    %v3295 = vmul.f32 %v3274, %v2918
    %v3296 = vmul.f32 %v3255, %v3275
    %v3297 = vadd.f32 %v3295, %v3296
    %v3298 = vtanh.pop %v3297
    %v3299 = vmul.f32 %v3294, %v3298
    %v3300 = vld [vmem:[%s5] sm:$0xff]
    %v3301 = vld [vmem:[%s5 + $0x8] sm:$0xff]
    %v3302 = vld [vmem:[%s5 + $0x10] sm:$0xff]
    %v3303 = vld [vmem:[%s5 + $0x18] sm:$0xff]
    %v3304 = vld [vmem:[%s5 + $0x20] sm:$0xff]
    %v3305 = vld [vmem:[%s5 + $0x28] sm:$0xff]
    %v3306 = vld [vmem:[%s5 + $0x30] sm:$0xff]
    %v3307 = vld [vmem:[%s5 + $0x38] sm:$0xff]
    %v3308 = vld [vmem:[%s5 + $0x40] sm:$0xff]
    %v3309 = vld [vmem:[%s5 + $0x48] sm:$0xff]
    %v3310 = vld [vmem:[%s5 + $0x50] sm:$0xff]
    %v3311 = vld [vmem:[%s5 + $0x58] sm:$0xff]
    %v3312 = vld [vmem:[%s5 + $0x60] sm:$0xff]
    %v3313 = vld [vmem:[%s5 + $0x68] sm:$0xff]
    %v3314 = vld [vmem:[%s5 + $0x70] sm:$0xff]
    %v3315 = vld [vmem:[%s5 + $0x78] sm:$0xff]
    %v3316 = vld [vmem:[%s6] sm:$0xff]
    %3317 = vmatpush.msra.mxu0 %v3315
    %3318 = vmatpush.msra.mxu0 %v3314
    %3319 = vmatpush.msra.mxu0 %v3313
    %3320 = vmatpush.msra.mxu0 %v3312
    %3321 = vmatpush.msra.mxu0 %v3311
    %3322 = vmatpush.msra.mxu0 %v3310
    %3323 = vmatpush.msra.mxu0 %v3309
    %3324 = vmatpush.msra.mxu0 %v3308
    %3325 = vmatpush.msra.mxu0 %v3307
    %3326 = vmatpush.msra.mxu0 %v3306
    %3327 = vmatpush.msra.mxu0 %v3305
    %3328 = vmatpush.msra.mxu0 %v3304
    %3329 = vmatpush.msra.mxu0 %v3303
    %3330 = vmatpush.msra.mxu0 %v3302
    %3331 = vmatpush.msra.mxu0 %v3301
    %3332 = vmatpush.msra.mxu0 %v3300
    %3333 = vmatmul.f32.gmra.mxu0 %v3299
    %v3334 = vpop.f32.mrf.mxu0
    %v3335 = vadd.f32 %v3316, %v3334
    %3336 = vdwg.mxu0
    %3337 = vst [vmem:[%s7] sm:$0xff] %v3335
    // Predicated region
    $region42: #{lstm_model_forward.1} parent=1 // pred_check
      _
    $region43: #{lstm_model_forward.1} parent=1 // pred_check_branch
      %3339 = sbr.rel (0) target = $region45
    $region44: #{lstm_model_forward.1} parent=1 // pred_region
      _
    $region45: #{lstm_model_forward.1} parent=1 // pred_fallthru
      _
    // Predicated region
    $region46: #{lstm_model_forward.1} parent=1 // pred_check
      _
    $region47: #{lstm_model_forward.1} parent=1 // pred_check_branch
      %3341 = sbr.rel (0) target = $region49
    $region48: #{lstm_model_forward.1} parent=1 // pred_region
      _
    $region49: #{lstm_model_forward.1} parent=1 // pred_fallthru
      _
    %3342 = vsyncpa [#allocation3], 1
    %3343 = vsyncpa [#allocation5], 1

</llo_original>
